<compile_context>
chip_gen: v6e
topology: v6e:2x2x1
jax: 0.10.0
libtpu: 0.0.40
codegen_flags: <defaults>
</compile_context>

<pallas_src>
import functools

import jax
import jax.numpy as jnp
from jax import lax
from jax.experimental import pallas as pl
from jax.experimental.pallas import tpu as pltpu


# ----------------------------------------------------------------------------
# Pallas kernel: fused double conv (banded MXU matmuls) + folded BN + ReLU.
# The whole (small) batch is processed in a single grid step.
# ----------------------------------------------------------------------------
def _down3_double_conv_kernel(x_ref, w1_ref, t1_ref, w2_ref, t2_ref, o_ref,
                              lhs1_ref, lhs2_ref):
    """
    x_ref   : (N, H, W*Cin)         f32   lane-flattened NHWC activations
    w1_ref  : (3*W*Cin, W*Cmid)     bf16  dy-merged block-banded conv1 weights
                                          (BN1 scale folded in)
    t1_ref  : (1, W*Cmid)           f32   BN1 shift (includes conv1 bias)
    w2_ref  : (3*W*Cmid, W*Cout)    bf16  dy-merged banded conv2 weights (BN2 scale)
    t2_ref  : (1, W*Cout)           f32   BN2 shift (includes conv2 bias)
    o_ref   : (N, H, W*Cout)        f32   lane-dense output block
    lhs1_ref: VMEM (N*H, 3*W*Cin)   bf16  dy-stacked LHS for conv1
    lhs2_ref: VMEM (N*H, 3*W*Cmid)  bf16  dy-stacked LHS for conv2
    """
    N, H, L1 = x_ref.shape
    L2 = w1_ref.shape[1]
    zero1 = jnp.zeros((1, L1), lhs1_ref.dtype)
    zero2 = jnp.zeros((1, L2), lhs2_ref.dtype)

    # ---- build conv1 LHS: row n*H+h holds [x[n,h-1] | x[n,h] | x[n,h+1]] ----
    # (H halo handled here: only the two halo rows per image are zeroed.)
    for n in range(N):
        r = n * H
        xb = x_ref[n, :, :].astype(lhs1_ref.dtype)          # (H, L1) bf16
        lhs1_ref[r:r + 1, 0:L1] = zero1                      # top halo (h=0)
        lhs1_ref[r + 1:r + H, 0:L1] = xb[0:H - 1, :]
        lhs1_ref[r:r + H, L1:2 * L1] = xb
        lhs1_ref[r:r + H - 1, 2 * L1:3 * L1] = xb[1:H, :]
        lhs1_ref[r + H - 1:r + H, 2 * L1:3 * L1] = zero1     # bottom halo

    # ---- conv1 + folded BN + ReLU: ONE bf16 MXU matmul, f32 accumulation ----
    acc1 = jnp.dot(lhs1_ref[...], w1_ref[...],
                   preferred_element_type=jnp.float32)       # (N*H, L2)
    y1 = jnp.maximum(acc1 + t1_ref[...], 0.0).astype(lhs2_ref.dtype)

    # ---- build conv2 LHS the same way (per-image H halo on y1) ----
    for n in range(N):
        r = n * H
        lhs2_ref[r:r + 1, 0:L2] = zero2
        lhs2_ref[r + 1:r + H, 0:L2] = y1[r:r + H - 1, :]
        lhs2_ref[r:r + H, L2:2 * L2] = y1[r:r + H, :]
        lhs2_ref[r:r + H - 1, 2 * L2:3 * L2] = y1[r + 1:r + H, :]
        lhs2_ref[r + H - 1:r + H, 2 * L2:3 * L2] = zero2

    # ---- conv2 + folded BN + ReLU: ONE bf16 MXU matmul ----
    acc2 = jnp.dot(lhs2_ref[...], w2_ref[...],
                   preferred_element_type=jnp.float32)       # (N*H, Lout)
    y2 = jnp.maximum(acc2 + t2_ref[...], 0.0)

    # ---- lane-dense, sublane-aligned (H % 8 == 0) full-width stores ----
    for n in range(N):
        o_ref[n] = y2[n * H:(n + 1) * H, :].astype(o_ref.dtype)


def double_conv_lane_dense(x_nhwc, packed):
    """x_nhwc: (N, H, W, Cin) f32 -> (N, H, W, Cout) f32 via the Pallas kernel."""
    w1b, t1, w2b, t2 = packed
    N, H, W, Cin = x_nhwc.shape
    L1 = W * Cin
    L2 = w1b.shape[1]                  # W * Cmid
    Lo = w2b.shape[1]                  # W * Cout
    Cout = Lo // W

    # lane flatten: lane index = w*Cin + c   (kept lane-dense, multiples of 128)
    x2d = x_nhwc.reshape(N, H, L1)

    # Whole batch in one grid step: maximal MXU M-rows per matmul, and the
    # banded weights are DMAed exactly once (no per-step / per-core duplicate
    # weight traffic).  For larger batches, chunk the batch along this grid
    # axis and mark the constant-index weight specs pipeline_mode=pl.Buffered(1)
    # so they are not double-buffered.
    y2d = pl.pallas_call(
        _down3_double_conv_kernel,
        out_shape=jax.ShapeDtypeStruct((N, H, Lo), jnp.float32),
        grid_spec=pltpu.PrefetchScalarGridSpec(
            num_scalar_prefetch=0,
            grid=(1,),
            in_specs=[
                pl.BlockSpec((N, H, L1), lambda g: (0, 0, 0)),
                pl.BlockSpec(w1b.shape, lambda g: (0, 0)),
                pl.BlockSpec((1, L2), lambda g: (0, 0)),
                pl.BlockSpec(w2b.shape, lambda g: (0, 0)),
                pl.BlockSpec((1, Lo), lambda g: (0, 0)),
            ],
            out_specs=pl.BlockSpec((N, H, Lo), lambda g: (0, 0, 0)),
            scratch_shapes=[
                pltpu.VMEM((N * H, 3 * L1), jnp.bfloat16),
                pltpu.VMEM((N * H, 3 * L2), jnp.bfloat16),
            ],
        ),
        compiler_params=pltpu.CompilerParams(
            dimension_semantics=("arbitrary",)),
    )(x2d, w1b, t1, w2b, t2)

    return y2d.reshape(N, H, W, Cout)


# ----------------------------------------------------------------------------
# Host-side weight packing: 3x3 HWIO weights -> dy-merged block-banded matrix
# B of shape (3*W*Cin, W*Cout) with  row = dy*W*Cin + wi*Cin + ci,
# col = wo*Cout + co, so a padded 3x3 conv of an (H, W*Cin) slab is one matmul
# given a dy-stacked LHS.  The band encodes the horizontal taps AND the zero
# padding along W.
# ----------------------------------------------------------------------------
def build_band(w_hwio, W):
    _, _, Cin, Co = w_hwio.shape
    wi = jnp.arange(W)[:, None]
    wo = jnp.arange(W)[None, :]
    dx = wi - wo + 1                                     # (W, W) horizontal tap
    valid = (dx >= 0) & (dx <= 2)
    taps = w_hwio[:, jnp.clip(dx, 0, 2)]                 # (3, W, W, Cin, Co)
    taps = jnp.where(valid[None, :, :, None, None], taps, 0.0)
    band = jnp.transpose(taps, (0, 1, 3, 2, 4))          # (3, W, Cin, W, Co)
    return band.reshape(3 * W * Cin, W * Co)


def pack_params(raw, W):
    """Fold BN scale into the conv weights, build bf16 bands, tile BN shifts."""
    w1, s1, t1, w2, s2, t2 = raw
    b1 = build_band(w1 * s1[None, None, None, :], W).astype(jnp.bfloat16)
    b2 = build_band(w2 * s2[None, None, None, :], W).astype(jnp.bfloat16)
    return (b1, jnp.tile(t1, W)[None, :].astype(jnp.float32),
            b2, jnp.tile(t2, W)[None, :].astype(jnp.float32))


# ----------------------------------------------------------------------------
# Down3 forward (NCHW interface, matching the PyTorch module)
# ----------------------------------------------------------------------------
def maxpool2_nchw(x):
    N, C, H, W = x.shape
    return x.reshape(N, C, H // 2, 2, W // 2, 2).max(axis=(3, 5))


def down3_forward(packed, x_nchw):
    # TODO(synk): nn.Dropout2d(p=0.4 / p=0.5) are identity in eval mode;
    # training-mode channel dropout is intentionally not implemented.
    xp = maxpool2_nchw(x_nchw)                   # MaxPool2d(2)
    x_nhwc = jnp.transpose(xp, (0, 2, 3, 1))     # NCHW -> NHWC glue
    y_nhwc = double_conv_lane_dense(x_nhwc, packed)
    return jnp.transpose(y_nhwc, (0, 3, 1, 2))   # back to NCHW


# ----------------------------------------------------------------------------
# Deterministic parameter init (shapes from HFR_module.__init__); BN applied in
# eval mode (running stats) and folded into per-channel scale/shift.
# ----------------------------------------------------------------------------
def _fold_bn(gamma, beta, mean, var, conv_bias, eps=1e-5):
    scale = gamma / jnp.sqrt(var + eps)
    shift = (conv_bias - mean) * scale + beta
    return scale, shift


def init_params(key, cin, cout):
    ks = jax.random.split(key, 12)
    w1 = jax.random.normal(ks[0], (3, 3, cin, cout), jnp.float32) * (2.0 / (9 * cin)) ** 0.5
    b1 = 0.05 * jax.random.normal(ks[1], (cout,), jnp.float32)
    g1 = 1.0 + 0.1 * jax.random.normal(ks[2], (cout,), jnp.float32)
    be1 = 0.1 * jax.random.normal(ks[3], (cout,), jnp.float32)
    m1 = 0.05 * jax.random.normal(ks[4], (cout,), jnp.float32)
    v1 = 1.0 + 0.2 * jax.random.uniform(ks[5], (cout,), jnp.float32)

    w2 = jax.random.normal(ks[6], (3, 3, cout, cout), jnp.float32) * (2.0 / (9 * cout)) ** 0.5
    b2 = 0.05 * jax.random.normal(ks[7], (cout,), jnp.float32)
    g2 = 1.0 + 0.1 * jax.random.normal(ks[8], (cout,), jnp.float32)
    be2 = 0.1 * jax.random.normal(ks[9], (cout,), jnp.float32)
    m2 = 0.05 * jax.random.normal(ks[10], (cout,), jnp.float32)
    v2 = 1.0 + 0.2 * jax.random.uniform(ks[11], (cout,), jnp.float32)

    s1, t1 = _fold_bn(g1, be1, m1, v1, b1)
    s2, t2 = _fold_bn(g2, be2, m2, v2, b2)
    return (w1, s1, t1, w2, s2, t2)


# ----------------------------------------------------------------------------
# Pure-JAX reference.  Mirrors the kernel's quantization points: bf16-rounded
# activations and (BN-scale-folded) weights, f32 accumulation, bf16 rounding of
# the inter-conv intermediate.
# ----------------------------------------------------------------------------
def _conv3x3_same_nhwc(x, w):
    N, H, W, _ = x.shape
    xp = jnp.pad(x, ((0, 0), (1, 1), (1, 1), (0, 0)))
    out = jnp.zeros((N, H, W, w.shape[3]), jnp.float32)
    for dy in range(3):
        for dx in range(3):
            out = out + jnp.einsum('nhwc,cd->nhwd',
                                   xp[:, dy:dy + H, dx:dx + W, :], w[dy, dx],
                                   precision=lax.Precision.HIGHEST)
    return out


def down3_ref(raw, x_nchw):
    w1, s1, t1, w2, s2, t2 = raw
    bf = lambda a: a.astype(jnp.bfloat16).astype(jnp.float32)
    xp = maxpool2_nchw(x_nchw)
    x_nhwc = jnp.transpose(xp, (0, 2, 3, 1))
    y = _conv3x3_same_nhwc(bf(x_nhwc), bf(w1 * s1[None, None, None, :]))
    y = jnp.maximum(y + t1, 0.0)
    y = _conv3x3_same_nhwc(bf(y), bf(w2 * s2[None, None, None, :]))
    y = jnp.maximum(y + t2, 0.0)
    return jnp.transpose(y, (0, 3, 1, 2))


if __name__ == "__main__":
    key = jax.random.PRNGKey(0)
    kx, kp = jax.random.split(key)

    # Down3(in_channels=16, out_channels=32); input 32x32 -> conv runs at 16x16.
    N, Cin, H0, W0 = 2, 16, 32, 32
    Cout = 32
    x = jax.random.normal(kx, (N, Cin, H0, W0), jnp.float32)

    raw = init_params(kp, Cin, Cout)
    packed = pack_params(raw, W0 // 2)

    fwd = jax.jit(functools.partial(down3_forward, packed))
    out = jax.block_until_ready(fwd(x))
    assert out.shape == (N, Cout, H0 // 2, W0 // 2), out.shape
    assert bool(jnp.all(jnp.isfinite(out)))

    ref = jax.block_until_ready(jax.jit(functools.partial(down3_ref, raw))(x))
    max_err = float(jnp.max(jnp.abs(out - ref)))
    # bf16 MXU operands + bf16 inter-conv intermediate across two chained
    # 3x3 convs: compare at bf16-level tolerance (observed max |err| ~2e-2).
    assert bool(jnp.allclose(out, ref, atol=5e-2, rtol=5e-2)), max_err

    print("KERNEL_OK")
</pallas_src>

<mosaic_0001>
module attributes {stable_mosaic.version = 11 : i64} {
  func.func @_down3_double_conv_kernel(%arg0: i32, %arg1: memref<2x16x256xf32, #tpu.memory_space<vmem>>, %arg2: memref<768x512xbf16, #tpu.memory_space<vmem>>, %arg3: memref<1x512xf32, #tpu.memory_space<vmem>>, %arg4: memref<1536x512xbf16, #tpu.memory_space<vmem>>, %arg5: memref<1x512xf32, #tpu.memory_space<vmem>>, %arg6: memref<2x16x512xf32, #tpu.memory_space<vmem>>, %arg7: memref<32x768xbf16, #tpu.memory_space<vmem>>, %arg8: memref<32x1536xbf16, #tpu.memory_space<vmem>>) attributes {dimension_semantics = [#tpu.dimension_semantics<arbitrary>], iteration_bounds = array<i64: 1>, scalar_prefetch = 0 : i64, scratch_operands = 2 : i64, tpu.core_type = #tpu.core_type<tc>, window_params = [{pipeline_mode = #tpu.pipeline_mode<synchronous>, transform_indices = @transform_0, window_bounds = array<i64: 2, 16, 256>}, {pipeline_mode = #tpu.pipeline_mode<synchronous>, transform_indices = @transform_1, window_bounds = array<i64: 768, 512>}, {pipeline_mode = #tpu.pipeline_mode<synchronous>, transform_indices = @transform_2, window_bounds = array<i64: 1, 512>}, {pipeline_mode = #tpu.pipeline_mode<synchronous>, transform_indices = @transform_3, window_bounds = array<i64: 1536, 512>}, {pipeline_mode = #tpu.pipeline_mode<synchronous>, transform_indices = @transform_4, window_bounds = array<i64: 1, 512>}, {pipeline_mode = #tpu.pipeline_mode<synchronous>, transform_indices = @transform_5, window_bounds = array<i64: 2, 16, 512>}]} {
    %cst = arith.constant 0.000000e+00 : bf16
    %0 = vector.broadcast %cst : bf16 to vector<1x256xbf16>
    %cst_0 = arith.constant 0.000000e+00 : bf16
    %1 = vector.broadcast %cst_0 : bf16 to vector<1x512xbf16>
    %c0 = arith.constant 0 : index
    %c0_1 = arith.constant 0 : index
    %c0_2 = arith.constant 0 : index
    %2 = vector.load %arg1[%c0, %c0_1, %c0_2] : memref<2x16x256xf32, #tpu.memory_space<vmem>>, vector<1x16x256xf32>
    %3 = vector.shape_cast %2 : vector<1x16x256xf32> to vector<16x256xf32>
    %4 = arith.truncf %3 : vector<16x256xf32> to vector<16x256xbf16>
    %c0_3 = arith.constant 0 : index
    %c0_4 = arith.constant 0 : index
    %5 = vector.load %arg7[%c0_3, %c0_4] : memref<32x768xbf16, #tpu.memory_space<vmem>>, vector<1x256xbf16>
    tpu.vector_store %arg7[%c0_3, %c0_4], %0 {strides = array<i32>} : memref<32x768xbf16, #tpu.memory_space<vmem>>, vector<1x256xbf16>,
    %6 = vector.extract_strided_slice %4 {offsets = [0, 0], sizes = [15, 256], strides = [1, 1]} : vector<16x256xbf16> to vector<15x256xbf16>
    %c1 = arith.constant 1 : index
    %c0_5 = arith.constant 0 : index
    %7 = vector.load %arg7[%c1, %c0_5] : memref<32x768xbf16, #tpu.memory_space<vmem>>, vector<15x256xbf16>
    tpu.vector_store %arg7[%c1, %c0_5], %6 {strides = array<i32>} : memref<32x768xbf16, #tpu.memory_space<vmem>>, vector<15x256xbf16>,
    %c0_6 = arith.constant 0 : index
    %c256 = arith.constant 256 : index
    %8 = vector.load %arg7[%c0_6, %c256] : memref<32x768xbf16, #tpu.memory_space<vmem>>, vector<16x256xbf16>
    tpu.vector_store %arg7[%c0_6, %c256], %4 {strides = array<i32>} : memref<32x768xbf16, #tpu.memory_space<vmem>>, vector<16x256xbf16>,
    %9 = vector.extract_strided_slice %4 {offsets = [1, 0], sizes = [15, 256], strides = [1, 1]} : vector<16x256xbf16> to vector<15x256xbf16>
    %c0_7 = arith.constant 0 : index
    %c512 = arith.constant 512 : index
    %10 = vector.load %arg7[%c0_7, %c512] : memref<32x768xbf16, #tpu.memory_space<vmem>>, vector<15x256xbf16>
    tpu.vector_store %arg7[%c0_7, %c512], %9 {strides = array<i32>} : memref<32x768xbf16, #tpu.memory_space<vmem>>, vector<15x256xbf16>,
    %c15 = arith.constant 15 : index
    %c512_8 = arith.constant 512 : index
    %11 = vector.load %arg7[%c15, %c512_8] : memref<32x768xbf16, #tpu.memory_space<vmem>>, vector<1x256xbf16>
    tpu.vector_store %arg7[%c15, %c512_8], %0 {strides = array<i32>} : memref<32x768xbf16, #tpu.memory_space<vmem>>, vector<1x256xbf16>,
    %c1_9 = arith.constant 1 : index
    %c0_10 = arith.constant 0 : index
    %c0_11 = arith.constant 0 : index
    %12 = vector.load %arg1[%c1_9, %c0_10, %c0_11] : memref<2x16x256xf32, #tpu.memory_space<vmem>>, vector<1x16x256xf32>
    %13 = vector.shape_cast %12 : vector<1x16x256xf32> to vector<16x256xf32>
    %14 = arith.truncf %13 : vector<16x256xf32> to vector<16x256xbf16>
    %c16 = arith.constant 16 : index
    %c0_12 = arith.constant 0 : index
    %15 = vector.load %arg7[%c16, %c0_12] : memref<32x768xbf16, #tpu.memory_space<vmem>>, vector<1x256xbf16>
    tpu.vector_store %arg7[%c16, %c0_12], %0 {strides = array<i32>} : memref<32x768xbf16, #tpu.memory_space<vmem>>, vector<1x256xbf16>,
    %16 = vector.extract_strided_slice %14 {offsets = [0, 0], sizes = [15, 256], strides = [1, 1]} : vector<16x256xbf16> to vector<15x256xbf16>
    %c17 = arith.constant 17 : index
    %c0_13 = arith.constant 0 : index
    %17 = vector.load %arg7[%c17, %c0_13] : memref<32x768xbf16, #tpu.memory_space<vmem>>, vector<15x256xbf16>
    tpu.vector_store %arg7[%c17, %c0_13], %16 {strides = array<i32>} : memref<32x768xbf16, #tpu.memory_space<vmem>>, vector<15x256xbf16>,
    %c16_14 = arith.constant 16 : index
    %c256_15 = arith.constant 256 : index
    %18 = vector.load %arg7[%c16_14, %c256_15] : memref<32x768xbf16, #tpu.memory_space<vmem>>, vector<16x256xbf16>
    tpu.vector_store %arg7[%c16_14, %c256_15], %14 {strides = array<i32>} : memref<32x768xbf16, #tpu.memory_space<vmem>>, vector<16x256xbf16>,
    %19 = vector.extract_strided_slice %14 {offsets = [1, 0], sizes = [15, 256], strides = [1, 1]} : vector<16x256xbf16> to vector<15x256xbf16>
    %c16_16 = arith.constant 16 : index
    %c512_17 = arith.constant 512 : index
    %20 = vector.load %arg7[%c16_16, %c512_17] : memref<32x768xbf16, #tpu.memory_space<vmem>>, vector<15x256xbf16>
    tpu.vector_store %arg7[%c16_16, %c512_17], %19 {strides = array<i32>} : memref<32x768xbf16, #tpu.memory_space<vmem>>, vector<15x256xbf16>,
    %c31 = arith.constant 31 : index
    %c512_18 = arith.constant 512 : index
    %21 = vector.load %arg7[%c31, %c512_18] : memref<32x768xbf16, #tpu.memory_space<vmem>>, vector<1x256xbf16>
    tpu.vector_store %arg7[%c31, %c512_18], %0 {strides = array<i32>} : memref<32x768xbf16, #tpu.memory_space<vmem>>, vector<1x256xbf16>,
    %c0_19 = arith.constant 0 : index
    %c0_20 = arith.constant 0 : index
    %22 = vector.load %arg7[%c0_19, %c0_20] : memref<32x768xbf16, #tpu.memory_space<vmem>>, vector<32x768xbf16>
    %c0_21 = arith.constant 0 : index
    %c0_22 = arith.constant 0 : index
    %23 = vector.load %arg2[%c0_21, %c0_22] : memref<768x512xbf16, #tpu.memory_space<vmem>>, vector<768x512xbf16>
    %cst_23 = arith.constant dense<0.000000e+00> : vector<32x512xf32>
    %24 = tpu.matmul %22, %23, %cst_23 {dimension_numbers = #tpu.dot_dimension_numbers<[1], [0], [0], [1], [0, 0, 1, 1], [], []>} : vector<32x768xbf16>, vector<768x512xbf16>, vector<32x512xf32> -> vector<32x512xf32>
    %c0_24 = arith.constant 0 : index
    %c0_25 = arith.constant 0 : index
    %25 = vector.load %arg3[%c0_24, %c0_25] : memref<1x512xf32, #tpu.memory_space<vmem>>, vector<1x512xf32>
    %26 = vector.broadcast %25 : vector<1x512xf32> to vector<32x512xf32>
    %27 = arith.addf %24, %26 : vector<32x512xf32>
    %cst_26 = arith.constant 0.000000e+00 : f32
    %28 = vector.broadcast %cst_26 : f32 to vector<32x512xf32>
    %29 = arith.maximumf %27, %28 : vector<32x512xf32>
    %30 = arith.truncf %29 : vector<32x512xf32> to vector<32x512xbf16>
    %c0_27 = arith.constant 0 : index
    %c0_28 = arith.constant 0 : index
    %31 = vector.load %arg8[%c0_27, %c0_28] : memref<32x1536xbf16, #tpu.memory_space<vmem>>, vector<1x512xbf16>
    tpu.vector_store %arg8[%c0_27, %c0_28], %1 {strides = array<i32>} : memref<32x1536xbf16, #tpu.memory_space<vmem>>, vector<1x512xbf16>,
    %32 = vector.extract_strided_slice %30 {offsets = [0, 0], sizes = [15, 512], strides = [1, 1]} : vector<32x512xbf16> to vector<15x512xbf16>
    %c1_29 = arith.constant 1 : index
    %c0_30 = arith.constant 0 : index
    %33 = vector.load %arg8[%c1_29, %c0_30] : memref<32x1536xbf16, #tpu.memory_space<vmem>>, vector<15x512xbf16>
    tpu.vector_store %arg8[%c1_29, %c0_30], %32 {strides = array<i32>} : memref<32x1536xbf16, #tpu.memory_space<vmem>>, vector<15x512xbf16>,
    %34 = vector.extract_strided_slice %30 {offsets = [0, 0], sizes = [16, 512], strides = [1, 1]} : vector<32x512xbf16> to vector<16x512xbf16>
    %c0_31 = arith.constant 0 : index
    %c512_32 = arith.constant 512 : index
    %35 = vector.load %arg8[%c0_31, %c512_32] : memref<32x1536xbf16, #tpu.memory_space<vmem>>, vector<16x512xbf16>
    tpu.vector_store %arg8[%c0_31, %c512_32], %34 {strides = array<i32>} : memref<32x1536xbf16, #tpu.memory_space<vmem>>, vector<16x512xbf16>,
    %36 = vector.extract_strided_slice %30 {offsets = [1, 0], sizes = [15, 512], strides = [1, 1]} : vector<32x512xbf16> to vector<15x512xbf16>
    %c0_33 = arith.constant 0 : index
    %c1024 = arith.constant 1024 : index
    %37 = vector.load %arg8[%c0_33, %c1024] : memref<32x1536xbf16, #tpu.memory_space<vmem>>, vector<15x512xbf16>
    tpu.vector_store %arg8[%c0_33, %c1024], %36 {strides = array<i32>} : memref<32x1536xbf16, #tpu.memory_space<vmem>>, vector<15x512xbf16>,
    %c15_34 = arith.constant 15 : index
    %c1024_35 = arith.constant 1024 : index
    %38 = vector.load %arg8[%c15_34, %c1024_35] : memref<32x1536xbf16, #tpu.memory_space<vmem>>, vector<1x512xbf16>
    tpu.vector_store %arg8[%c15_34, %c1024_35], %1 {strides = array<i32>} : memref<32x1536xbf16, #tpu.memory_space<vmem>>, vector<1x512xbf16>,
    %c16_36 = arith.constant 16 : index
    %c0_37 = arith.constant 0 : index
    %39 = vector.load %arg8[%c16_36, %c0_37] : memref<32x1536xbf16, #tpu.memory_space<vmem>>, vector<1x512xbf16>
    tpu.vector_store %arg8[%c16_36, %c0_37], %1 {strides = array<i32>} : memref<32x1536xbf16, #tpu.memory_space<vmem>>, vector<1x512xbf16>,
    %40 = vector.extract_strided_slice %30 {offsets = [16, 0], sizes = [15, 512], strides = [1, 1]} : vector<32x512xbf16> to vector<15x512xbf16>
    %c17_38 = arith.constant 17 : index
    %c0_39 = arith.constant 0 : index
    %41 = vector.load %arg8[%c17_38, %c0_39] : memref<32x1536xbf16, #tpu.memory_space<vmem>>, vector<15x512xbf16>
    tpu.vector_store %arg8[%c17_38, %c0_39], %40 {strides = array<i32>} : memref<32x1536xbf16, #tpu.memory_space<vmem>>, vector<15x512xbf16>,
    %42 = vector.extract_strided_slice %30 {offsets = [16, 0], sizes = [16, 512], strides = [1, 1]} : vector<32x512xbf16> to vector<16x512xbf16>
    %c16_40 = arith.constant 16 : index
    %c512_41 = arith.constant 512 : index
    %43 = vector.load %arg8[%c16_40, %c512_41] : memref<32x1536xbf16, #tpu.memory_space<vmem>>, vector<16x512xbf16>
    tpu.vector_store %arg8[%c16_40, %c512_41], %42 {strides = array<i32>} : memref<32x1536xbf16, #tpu.memory_space<vmem>>, vector<16x512xbf16>,
    %44 = vector.extract_strided_slice %30 {offsets = [17, 0], sizes = [15, 512], strides = [1, 1]} : vector<32x512xbf16> to vector<15x512xbf16>
    %c16_42 = arith.constant 16 : index
    %c1024_43 = arith.constant 1024 : index
    %45 = vector.load %arg8[%c16_42, %c1024_43] : memref<32x1536xbf16, #tpu.memory_space<vmem>>, vector<15x512xbf16>
    tpu.vector_store %arg8[%c16_42, %c1024_43], %44 {strides = array<i32>} : memref<32x1536xbf16, #tpu.memory_space<vmem>>, vector<15x512xbf16>,
    %c31_44 = arith.constant 31 : index
    %c1024_45 = arith.constant 1024 : index
    %46 = vector.load %arg8[%c31_44, %c1024_45] : memref<32x1536xbf16, #tpu.memory_space<vmem>>, vector<1x512xbf16>
    tpu.vector_store %arg8[%c31_44, %c1024_45], %1 {strides = array<i32>} : memref<32x1536xbf16, #tpu.memory_space<vmem>>, vector<1x512xbf16>,
    %c0_46 = arith.constant 0 : index
    %c0_47 = arith.constant 0 : index
    %47 = vector.load %arg8[%c0_46, %c0_47] : memref<32x1536xbf16, #tpu.memory_space<vmem>>, vector<32x1536xbf16>
    %c0_48 = arith.constant 0 : index
    %c0_49 = arith.constant 0 : index
    %48 = vector.load %arg4[%c0_48, %c0_49] : memref<1536x512xbf16, #tpu.memory_space<vmem>>, vector<1536x512xbf16>
    %cst_50 = arith.constant dense<0.000000e+00> : vector<32x512xf32>
    %49 = tpu.matmul %47, %48, %cst_50 {dimension_numbers = #tpu.dot_dimension_numbers<[1], [0], [0], [1], [0, 0, 1, 1], [], []>} : vector<32x1536xbf16>, vector<1536x512xbf16>, vector<32x512xf32> -> vector<32x512xf32>
    %c0_51 = arith.constant 0 : index
    %c0_52 = arith.constant 0 : index
    %50 = vector.load %arg5[%c0_51, %c0_52] : memref<1x512xf32, #tpu.memory_space<vmem>>, vector<1x512xf32>
    %51 = vector.broadcast %50 : vector<1x512xf32> to vector<32x512xf32>
    %52 = arith.addf %49, %51 : vector<32x512xf32>
    %cst_53 = arith.constant 0.000000e+00 : f32
    %53 = vector.broadcast %cst_53 : f32 to vector<32x512xf32>
    %54 = arith.maximumf %52, %53 : vector<32x512xf32>
    %55 = vector.extract_strided_slice %54 {offsets = [0, 0], sizes = [16, 512], strides = [1, 1]} : vector<32x512xf32> to vector<16x512xf32>
    %c0_54 = arith.constant 0 : index
    %c0_55 = arith.constant 0 : index
    %c0_56 = arith.constant 0 : index
    %56 = vector.load %arg6[%c0_54, %c0_55, %c0_56] : memref<2x16x512xf32, #tpu.memory_space<vmem>>, vector<1x16x512xf32>
    %57 = vector.shape_cast %56 : vector<1x16x512xf32> to vector<16x512xf32>
    %58 = vector.shape_cast %55 : vector<16x512xf32> to vector<1x16x512xf32>
    tpu.vector_store %arg6[%c0_54, %c0_55, %c0_56], %58 {strides = array<i32>} : memref<2x16x512xf32, #tpu.memory_space<vmem>>, vector<1x16x512xf32>,
    %59 = vector.extract_strided_slice %54 {offsets = [16, 0], sizes = [16, 512], strides = [1, 1]} : vector<32x512xf32> to vector<16x512xf32>
    %c1_57 = arith.constant 1 : index
    %c0_58 = arith.constant 0 : index
    %c0_59 = arith.constant 0 : index
    %60 = vector.load %arg6[%c1_57, %c0_58, %c0_59] : memref<2x16x512xf32, #tpu.memory_space<vmem>>, vector<1x16x512xf32>
    %61 = vector.shape_cast %60 : vector<1x16x512xf32> to vector<16x512xf32>
    %62 = vector.shape_cast %59 : vector<16x512xf32> to vector<1x16x512xf32>
    tpu.vector_store %arg6[%c1_57, %c0_58, %c0_59], %62 {strides = array<i32>} : memref<2x16x512xf32, #tpu.memory_space<vmem>>, vector<1x16x512xf32>,
    return
  }
  func.func @transform_0(%arg0: i32) -> (i32, i32, i32) {
    %c0_i32 = arith.constant 0 : i32
    %c0_i32_0 = arith.constant 0 : i32
    %c0_i32_1 = arith.constant 0 : i32
    %c0_i32_2 = arith.constant 0 : i32
    return %c0_i32, %c0_i32_0, %c0_i32_1 : i32, i32, i32
  }
  func.func @transform_1(%arg0: i32) -> (i32, i32) {
    %c0_i32 = arith.constant 0 : i32
    %c0_i32_0 = arith.constant 0 : i32
    %c0_i32_1 = arith.constant 0 : i32
    return %c0_i32, %c0_i32_0 : i32, i32
  }
  func.func @transform_2(%arg0: i32) -> (i32, i32) {
    %c0_i32 = arith.constant 0 : i32
    %c0_i32_0 = arith.constant 0 : i32
    %c0_i32_1 = arith.constant 0 : i32
    return %c0_i32, %c0_i32_0 : i32, i32
  }
  func.func @transform_3(%arg0: i32) -> (i32, i32) {
    %c0_i32 = arith.constant 0 : i32
    %c0_i32_0 = arith.constant 0 : i32
    %c0_i32_1 = arith.constant 0 : i32
    return %c0_i32, %c0_i32_0 : i32, i32
  }
  func.func @transform_4(%arg0: i32) -> (i32, i32) {
    %c0_i32 = arith.constant 0 : i32
    %c0_i32_0 = arith.constant 0 : i32
    %c0_i32_1 = arith.constant 0 : i32
    return %c0_i32, %c0_i32_0 : i32, i32
  }
  func.func @transform_5(%arg0: i32) -> (i32, i32, i32) {
    %c0_i32 = arith.constant 0 : i32
    %c0_i32_0 = arith.constant 0 : i32
    %c0_i32_1 = arith.constant 0 : i32
    %c0_i32_2 = arith.constant 0 : i32
    return %c0_i32, %c0_i32_0, %c0_i32_1 : i32, i32, i32
  }
}

</mosaic_0001>

<llo_original>
// kernel: down3_forward.1
$region0: #{down3_forward.1}
  #allocation0 [shape = 'u32[]', space=smem, size = 0x4, offset = 0x4, fixed_abs, tag = 'smem constant byte address 0x4 - core index']
  #allocation1 [shape = 'u32[144,128]{1,0:T(1,128)}', space=vmem, size = 0x12000, scoped, tag = 'internal scratch']
  #allocation2 [shape = 'bf16[32,768]{1,0:T(8,128)(2,1)}', space=vmem, size = 0xc000, scoped, tag = 'scratch operand']
  #allocation3 [shape = 'bf16[32,1536]{1,0:T(8,128)(2,1)}', space=vmem, size = 0x18000, scoped, tag = 'scratch operand']
  %s0 = inlined_call_operand.vmem [shape: f32[2,16,256], index: 0, kind: input, shape index: {}]
  %s1 = inlined_call_operand.vmem [shape: bf16[768,512], index: 1, kind: input, shape index: {}]
  %s2 = inlined_call_operand.vmem [shape: f32[1,512], index: 2, kind: input, shape index: {}]
  %s3 = inlined_call_operand.vmem [shape: bf16[1536,512], index: 3, kind: input, shape index: {}]
  %s4 = inlined_call_operand.vmem [shape: f32[1,512], index: 4, kind: input, shape index: {}]
  %s5 = inlined_call_operand.vmem [shape: f32[2,16,512], index: 5, kind: output, shape index: {}]
  %s6 = sld [smem:[#allocation0]]
  $region30: #{down3_forward.1} parent=0
    _
  %s8 = ssub.s32 1, %s6
  %s9 = scalar_select 0, %s8, %s6
  // Predicated region
  $region2: #{down3_forward.1} parent=0 // pred_check
    _
  $region3: #{down3_forward.1} parent=0 // pred_check_branch
    %11 = sbr.rel (0) target = $region5
  $region4: #{down3_forward.1} parent=0 // pred_region
    _
  $region5: #{down3_forward.1} parent=0 // pred_fallthru
    _
  // Predicated region
  $region6: #{down3_forward.1} parent=0 // pred_check
    _
  $region7: #{down3_forward.1} parent=0 // pred_check_branch
    %13 = sbr.rel (0) target = $region9
  $region8: #{down3_forward.1} parent=0 // pred_region
    _
  $region9: #{down3_forward.1} parent=0 // pred_fallthru
    _
  // Predicated region
  $region10: #{down3_forward.1} parent=0 // pred_check
    _
  $region11: #{down3_forward.1} parent=0 // pred_check_branch
    %15 = sbr.rel (0) target = $region13
  $region12: #{down3_forward.1} parent=0 // pred_region
    _
  $region13: #{down3_forward.1} parent=0 // pred_fallthru
    _
  // Predicated region
  $region14: #{down3_forward.1} parent=0 // pred_check
    _
  $region15: #{down3_forward.1} parent=0 // pred_check_branch
    %17 = sbr.rel (0) target = $region17
  $region16: #{down3_forward.1} parent=0 // pred_region
    _
  $region17: #{down3_forward.1} parent=0 // pred_fallthru
    _
  // Predicated region
  $region18: #{down3_forward.1} parent=0 // pred_check
    _
  $region19: #{down3_forward.1} parent=0 // pred_check_branch
    %19 = sbr.rel (0) target = $region21
  $region20: #{down3_forward.1} parent=0 // pred_region
    _
  $region21: #{down3_forward.1} parent=0 // pred_fallthru
    _
  %v21 = vld [vmem:[%s0] sm:$0xff]
  %v22 = vld [vmem:[%s0 + $0x8] sm:$0xff]
  %v23 = vld [vmem:[%s0 + $0x10] sm:$0xff]
  %v24 = vld [vmem:[%s0 + $0x18] sm:$0xff]
  %v25 = vpack.c.bf16 %v23, %v21
  %v26 = vpack.c.bf16 %v24, %v22
  %vm27 = vcmask 1040384
  %vm28 = vsmask.f32 256
  %vm29 = vmand %vm27, %vm28
  %vm30 = vcmask 1044484
  %vm31 = vsmask.f32 4352
  %vm32 = vmand %vm30, %vm31
  %vm33 = vmor %vm32, %vm29
  %v34 = vld [vmem:[#allocation2] sm:$0x11]
  %v35 = vsel %vm33, 0, %v34
  %36 = vst [vmem:[#allocation2] sm:$0x11] %v35
  %v39 = vunpack.c.l.b16 %v25
  %v40 = vunpack.c.l.b16 %v26
  %v41 = vunpack.c.h.b16 %v25
  %v42 = vunpack.c.h.b16 %v26
  %v43 = vpack.c.b16 %v40, %v39
  %v44 = vpack.c.b16 %v42, %v41
  %vm45 = vsmask.f32 4368
  %vm46 = vmor %vm28, %vm45
  %v48 = vshrl.u32 %v43, 16
  %v50 = vrot.slane %v48, 7
  %v51 = vshll.u32 %v43, 16
  %v53 = vor.u32 %v50, %v51
  %v54 = vrot.slane %v50, 4
  %v56 = vshrl.u32 %v44, 16
  %v58 = vrot.slane %v56, 7
  %v59 = vshll.u32 %v44, 16
  %v61 = vor.u32 %v58, %v59
  %v62 = vsel %vm46, %v54, %v61
  %vm65 = vcmask 1043456
  %vm66 = vsmask.f32 7938
  %vm67 = vmand %vm65, %vm66
  %vm68 = vcmask 1047556
  %vm69 = vsmask.f32 7954
  %vm70 = vmand %vm68, %vm69
  %vm71 = vmor %vm70, %vm67
  %v72 = vld [vmem:[#allocation2] sm:$0xff]
  %v73 = vsel %vm71, %v53, %v72
  %74 = vst [vmem:[#allocation2] sm:$0xff] %v73
  %75 = vst [vmem:[#allocation2 + $0x18] sm:$0xff] %v62
  %78 = vst [vmem:[#allocation2 + $0x8] sm:$0xff] %v43
  %79 = vst [vmem:[#allocation2 + $0x20] sm:$0xff] %v44
  %vm80 = vsmask.f32 3328
  %vm81 = vsmask.f32 7440
  %vm82 = vmor %vm80, %vm81
  %v83 = vrot.slane %v48, 4
  %v84 = vrot.slane %v51, 5
  %v85 = vor.u32 %v83, %v84
  %v86 = vrot.slane %v85, 4
  %v87 = vrot.slane %v59, 5
  %v88 = vsel %vm82, %v86, %v87
  %v89 = vrot.slane %v56, 4
  %v90 = vor.u32 %v89, %v87
  %v91 = vrot.slane %v90, 4
  %94 = vst [vmem:[#allocation2 + $0x10] sm:$0xff] %v88
  %vm95 = vmand %vm65, %vm80
  %vm96 = vsmask.f32 7424
  %vm97 = vmand %vm68, %vm96
  %vm98 = vmor %vm97, %vm95
  %v99 = vld [vmem:[#allocation2 + $0x28] sm:$0xff]
  %v100 = vsel %vm98, %v91, %v99
  %101 = vst [vmem:[#allocation2 + $0x28] sm:$0xff] %v100
  %vm102 = vcmask 1043459
  %vm103 = vsmask.f32 7950
  %vm104 = vmand %vm102, %vm103
  %vm105 = vcmask 1047559
  %vm106 = vsmask.f32 7966
  %vm107 = vmand %vm105, %vm106
  %vm108 = vmor %vm107, %vm104
  %v109 = vld [vmem:[#allocation2 + $0x28] sm:$0x88]
  %v110 = vsel %vm108, 0, %v109
  %111 = vst [vmem:[#allocation2 + $0x28] sm:$0x88] %v110
  %s112 = scalar_lea.vmem %s0, 32
  %v113 = vld [vmem:[%s112] sm:$0xff]
  %v114 = vld [vmem:[%s112 + $0x8] sm:$0xff]
  %v115 = vld [vmem:[%s112 + $0x10] sm:$0xff]
  %v116 = vld [vmem:[%s112 + $0x18] sm:$0xff]
  %v117 = vpack.c.bf16 %v115, %v113
  %v118 = vpack.c.bf16 %v116, %v114
  %v119 = vld [vmem:[#allocation2 + $0x30] sm:$0x11]
  %v120 = vsel %vm33, 0, %v119
  %121 = vst [vmem:[#allocation2 + $0x30] sm:$0x11] %v120
  %v124 = vunpack.c.l.b16 %v117
  %v125 = vunpack.c.l.b16 %v118
  %v126 = vunpack.c.h.b16 %v117
  %v127 = vunpack.c.h.b16 %v118
  %v128 = vpack.c.b16 %v125, %v124
  %v129 = vpack.c.b16 %v127, %v126
  %v131 = vshrl.u32 %v128, 16
  %v133 = vrot.slane %v131, 7
  %v134 = vshll.u32 %v128, 16
  %v136 = vor.u32 %v133, %v134
  %v137 = vrot.slane %v133, 4
  %v139 = vshrl.u32 %v129, 16
  %v141 = vrot.slane %v139, 7
  %v142 = vshll.u32 %v129, 16
  %v144 = vor.u32 %v141, %v142
  %v145 = vsel %vm46, %v137, %v144
  %v148 = vld [vmem:[#allocation2 + $0x30] sm:$0xff]
  %v149 = vsel %vm71, %v136, %v148
  %150 = vst [vmem:[#allocation2 + $0x30] sm:$0xff] %v149
  %151 = vst [vmem:[#allocation2 + $0x48] sm:$0xff] %v145
  %154 = vst [vmem:[#allocation2 + $0x38] sm:$0xff] %v128
  %155 = vst [vmem:[#allocation2 + $0x50] sm:$0xff] %v129
  %v156 = vrot.slane %v131, 4
  %v157 = vrot.slane %v134, 5
  %v158 = vor.u32 %v156, %v157
  %v159 = vrot.slane %v158, 4
  %v160 = vrot.slane %v142, 5
  %v161 = vsel %vm82, %v159, %v160
  %v162 = vrot.slane %v139, 4
  %v163 = vor.u32 %v162, %v160
  %v164 = vrot.slane %v163, 4
  %167 = vst [vmem:[#allocation2 + $0x40] sm:$0xff] %v161
  %v168 = vld [vmem:[#allocation2 + $0x58] sm:$0xff]
  %v169 = vsel %vm98, %v164, %v168
  %170 = vst [vmem:[#allocation2 + $0x58] sm:$0xff] %v169
  %v171 = vld [vmem:[#allocation2 + $0x58] sm:$0x88]
  %v172 = vsel %vm108, 0, %v171
  %173 = vst [vmem:[#allocation2 + $0x58] sm:$0x88] %v172
  %v174 = vld [vmem:[#allocation2] sm:$0xff]
  %v175 = vld [vmem:[#allocation2 + $0x8] sm:$0xff]
  %v176 = vld [vmem:[#allocation2 + $0x10] sm:$0xff]
  %v177 = vld [vmem:[#allocation2 + $0x18] sm:$0xff]
  %v178 = vld [vmem:[#allocation2 + $0x20] sm:$0xff]
  %v179 = vld [vmem:[#allocation2 + $0x28] sm:$0xff]
  %v180 = vld [vmem:[#allocation2 + $0x30] sm:$0xff]
  %v181 = vld [vmem:[#allocation2 + $0x38] sm:$0xff]
  %v182 = vld [vmem:[#allocation2 + $0x40] sm:$0xff]
  %v183 = vld [vmem:[#allocation2 + $0x48] sm:$0xff]
  %v184 = vld [vmem:[#allocation2 + $0x50] sm:$0xff]
  %v185 = vld [vmem:[#allocation2 + $0x58] sm:$0xff]
  %v186 = vld [vmem:[%s1] sm:$0xff]
  %v187 = vld [vmem:[%s1 + $0x8] sm:$0xff]
  %v188 = vld [vmem:[%s1 + $0x10] sm:$0xff]
  %v189 = vld [vmem:[%s1 + $0x18] sm:$0xff]
  %v190 = vld [vmem:[%s1 + $0x20] sm:$0xff]
  %v191 = vld [vmem:[%s1 + $0x28] sm:$0xff]
  %v192 = vld [vmem:[%s1 + $0x30] sm:$0xff]
  %v193 = vld [vmem:[%s1 + $0x38] sm:$0xff]
  %v194 = vld [vmem:[%s1 + $0x40] sm:$0xff]
  %v195 = vld [vmem:[%s1 + $0x48] sm:$0xff]
  %v196 = vld [vmem:[%s1 + $0x50] sm:$0xff]
  %v197 = vld [vmem:[%s1 + $0x58] sm:$0xff]
  %v198 = vld [vmem:[%s1 + $0x60] sm:$0xff]
  %v199 = vld [vmem:[%s1 + $0x68] sm:$0xff]
  %v200 = vld [vmem:[%s1 + $0x70] sm:$0xff]
  %v201 = vld [vmem:[%s1 + $0x78] sm:$0xff]
  %v202 = vld [vmem:[%s1 + $0x80] sm:$0xff]
  %v203 = vld [vmem:[%s1 + $0x88] sm:$0xff]
  %v204 = vld [vmem:[%s1 + $0x90] sm:$0xff]
  %v205 = vld [vmem:[%s1 + $0x98] sm:$0xff]
  %v206 = vld [vmem:[%s1 + $0xa0] sm:$0xff]
  %v207 = vld [vmem:[%s1 + $0xa8] sm:$0xff]
  %v208 = vld [vmem:[%s1 + $0xb0] sm:$0xff]
  %v209 = vld [vmem:[%s1 + $0xb8] sm:$0xff]
  %v210 = vld [vmem:[%s1 + $0xc0] sm:$0xff]
  %v211 = vld [vmem:[%s1 + $0xc8] sm:$0xff]
  %v212 = vld [vmem:[%s1 + $0xd0] sm:$0xff]
  %v213 = vld [vmem:[%s1 + $0xd8] sm:$0xff]
  %v214 = vld [vmem:[%s1 + $0xe0] sm:$0xff]
  %v215 = vld [vmem:[%s1 + $0xe8] sm:$0xff]
  %v216 = vld [vmem:[%s1 + $0xf0] sm:$0xff]
  %v217 = vld [vmem:[%s1 + $0xf8] sm:$0xff]
  %v218 = vld [vmem:[%s1 + $0x100] sm:$0xff]
  %v219 = vld [vmem:[%s1 + $0x108] sm:$0xff]
  %v220 = vld [vmem:[%s1 + $0x110] sm:$0xff]
  %v221 = vld [vmem:[%s1 + $0x118] sm:$0xff]
  %v222 = vld [vmem:[%s1 + $0x120] sm:$0xff]
  %v223 = vld [vmem:[%s1 + $0x128] sm:$0xff]
  %v224 = vld [vmem:[%s1 + $0x130] sm:$0xff]
  %v225 = vld [vmem:[%s1 + $0x138] sm:$0xff]
  %v226 = vld [vmem:[%s1 + $0x140] sm:$0xff]
  %v227 = vld [vmem:[%s1 + $0x148] sm:$0xff]
  %v228 = vld [vmem:[%s1 + $0x150] sm:$0xff]
  %v229 = vld [vmem:[%s1 + $0x158] sm:$0xff]
  %v230 = vld [vmem:[%s1 + $0x160] sm:$0xff]
  %v231 = vld [vmem:[%s1 + $0x168] sm:$0xff]
  %v232 = vld [vmem:[%s1 + $0x170] sm:$0xff]
  %v233 = vld [vmem:[%s1 + $0x178] sm:$0xff]
  %v234 = vld [vmem:[%s1 + $0x180] sm:$0xff]
  %v235 = vld [vmem:[%s1 + $0x188] sm:$0xff]
  %v236 = vld [vmem:[%s1 + $0x190] sm:$0xff]
  %v237 = vld [vmem:[%s1 + $0x198] sm:$0xff]
  %v238 = vld [vmem:[%s1 + $0x1a0] sm:$0xff]
  %v239 = vld [vmem:[%s1 + $0x1a8] sm:$0xff]
  %v240 = vld [vmem:[%s1 + $0x1b0] sm:$0xff]
  %v241 = vld [vmem:[%s1 + $0x1b8] sm:$0xff]
  %v242 = vld [vmem:[%s1 + $0x1c0] sm:$0xff]
  %v243 = vld [vmem:[%s1 + $0x1c8] sm:$0xff]
  %v244 = vld [vmem:[%s1 + $0x1d0] sm:$0xff]
  %v245 = vld [vmem:[%s1 + $0x1d8] sm:$0xff]
  %v246 = vld [vmem:[%s1 + $0x1e0] sm:$0xff]
  %v247 = vld [vmem:[%s1 + $0x1e8] sm:$0xff]
  %v248 = vld [vmem:[%s1 + $0x1f0] sm:$0xff]
  %v249 = vld [vmem:[%s1 + $0x1f8] sm:$0xff]
  %v250 = vld [vmem:[%s1 + $0x200] sm:$0xff]
  %v251 = vld [vmem:[%s1 + $0x208] sm:$0xff]
  %v252 = vld [vmem:[%s1 + $0x210] sm:$0xff]
  %v253 = vld [vmem:[%s1 + $0x218] sm:$0xff]
  %v254 = vld [vmem:[%s1 + $0x220] sm:$0xff]
  %v255 = vld [vmem:[%s1 + $0x228] sm:$0xff]
  %v256 = vld [vmem:[%s1 + $0x230] sm:$0xff]
  %v257 = vld [vmem:[%s1 + $0x238] sm:$0xff]
  %v258 = vld [vmem:[%s1 + $0x240] sm:$0xff]
  %v259 = vld [vmem:[%s1 + $0x248] sm:$0xff]
  %v260 = vld [vmem:[%s1 + $0x250] sm:$0xff]
  %v261 = vld [vmem:[%s1 + $0x258] sm:$0xff]
  %v262 = vld [vmem:[%s1 + $0x260] sm:$0xff]
  %v263 = vld [vmem:[%s1 + $0x268] sm:$0xff]
  %v264 = vld [vmem:[%s1 + $0x270] sm:$0xff]
  %v265 = vld [vmem:[%s1 + $0x278] sm:$0xff]
  %v266 = vld [vmem:[%s1 + $0x280] sm:$0xff]
  %v267 = vld [vmem:[%s1 + $0x288] sm:$0xff]
  %v268 = vld [vmem:[%s1 + $0x290] sm:$0xff]
  %v269 = vld [vmem:[%s1 + $0x298] sm:$0xff]
  %v270 = vld [vmem:[%s1 + $0x2a0] sm:$0xff]
  %v271 = vld [vmem:[%s1 + $0x2a8] sm:$0xff]
  %v272 = vld [vmem:[%s1 + $0x2b0] sm:$0xff]
  %v273 = vld [vmem:[%s1 + $0x2b8] sm:$0xff]
  %v274 = vld [vmem:[%s1 + $0x2c0] sm:$0xff]
  %v275 = vld [vmem:[%s1 + $0x2c8] sm:$0xff]
  %v276 = vld [vmem:[%s1 + $0x2d0] sm:$0xff]
  %v277 = vld [vmem:[%s1 + $0x2d8] sm:$0xff]
  %v278 = vld [vmem:[%s1 + $0x2e0] sm:$0xff]
  %v279 = vld [vmem:[%s1 + $0x2e8] sm:$0xff]
  %v280 = vld [vmem:[%s1 + $0x2f0] sm:$0xff]
  %v281 = vld [vmem:[%s1 + $0x2f8] sm:$0xff]
  %v282 = vld [vmem:[%s1 + $0x300] sm:$0xff]
  %v283 = vld [vmem:[%s1 + $0x308] sm:$0xff]
  %v284 = vld [vmem:[%s1 + $0x310] sm:$0xff]
  %v285 = vld [vmem:[%s1 + $0x318] sm:$0xff]
  %v286 = vld [vmem:[%s1 + $0x320] sm:$0xff]
  %v287 = vld [vmem:[%s1 + $0x328] sm:$0xff]
  %v288 = vld [vmem:[%s1 + $0x330] sm:$0xff]
  %v289 = vld [vmem:[%s1 + $0x338] sm:$0xff]
  %v290 = vld [vmem:[%s1 + $0x340] sm:$0xff]
  %v291 = vld [vmem:[%s1 + $0x348] sm:$0xff]
  %v292 = vld [vmem:[%s1 + $0x350] sm:$0xff]
  %v293 = vld [vmem:[%s1 + $0x358] sm:$0xff]
  %v294 = vld [vmem:[%s1 + $0x360] sm:$0xff]
  %v295 = vld [vmem:[%s1 + $0x368] sm:$0xff]
  %v296 = vld [vmem:[%s1 + $0x370] sm:$0xff]
  %v297 = vld [vmem:[%s1 + $0x378] sm:$0xff]
  %v298 = vld [vmem:[%s1 + $0x380] sm:$0xff]
  %v299 = vld [vmem:[%s1 + $0x388] sm:$0xff]
  %v300 = vld [vmem:[%s1 + $0x390] sm:$0xff]
  %v301 = vld [vmem:[%s1 + $0x398] sm:$0xff]
  %v302 = vld [vmem:[%s1 + $0x3a0] sm:$0xff]
  %v303 = vld [vmem:[%s1 + $0x3a8] sm:$0xff]
  %v304 = vld [vmem:[%s1 + $0x3b0] sm:$0xff]
  %v305 = vld [vmem:[%s1 + $0x3b8] sm:$0xff]
  %v306 = vld [vmem:[%s1 + $0x3c0] sm:$0xff]
  %v307 = vld [vmem:[%s1 + $0x3c8] sm:$0xff]
  %v308 = vld [vmem:[%s1 + $0x3d0] sm:$0xff]
  %v309 = vld [vmem:[%s1 + $0x3d8] sm:$0xff]
  %v310 = vld [vmem:[%s1 + $0x3e0] sm:$0xff]
  %v311 = vld [vmem:[%s1 + $0x3e8] sm:$0xff]
  %v312 = vld [vmem:[%s1 + $0x3f0] sm:$0xff]
  %v313 = vld [vmem:[%s1 + $0x3f8] sm:$0xff]
  %v314 = vld [vmem:[%s1 + $0x400] sm:$0xff]
  %v315 = vld [vmem:[%s1 + $0x408] sm:$0xff]
  %v316 = vld [vmem:[%s1 + $0x410] sm:$0xff]
  %v317 = vld [vmem:[%s1 + $0x418] sm:$0xff]
  %v318 = vld [vmem:[%s1 + $0x420] sm:$0xff]
  %v319 = vld [vmem:[%s1 + $0x428] sm:$0xff]
  %v320 = vld [vmem:[%s1 + $0x430] sm:$0xff]
  %v321 = vld [vmem:[%s1 + $0x438] sm:$0xff]
  %v322 = vld [vmem:[%s1 + $0x440] sm:$0xff]
  %v323 = vld [vmem:[%s1 + $0x448] sm:$0xff]
  %v324 = vld [vmem:[%s1 + $0x450] sm:$0xff]
  %v325 = vld [vmem:[%s1 + $0x458] sm:$0xff]
  %v326 = vld [vmem:[%s1 + $0x460] sm:$0xff]
  %v327 = vld [vmem:[%s1 + $0x468] sm:$0xff]
  %v328 = vld [vmem:[%s1 + $0x470] sm:$0xff]
  %v329 = vld [vmem:[%s1 + $0x478] sm:$0xff]
  %v330 = vld [vmem:[%s1 + $0x480] sm:$0xff]
  %v331 = vld [vmem:[%s1 + $0x488] sm:$0xff]
  %v332 = vld [vmem:[%s1 + $0x490] sm:$0xff]
  %v333 = vld [vmem:[%s1 + $0x498] sm:$0xff]
  %v334 = vld [vmem:[%s1 + $0x4a0] sm:$0xff]
  %v335 = vld [vmem:[%s1 + $0x4a8] sm:$0xff]
  %v336 = vld [vmem:[%s1 + $0x4b0] sm:$0xff]
  %v337 = vld [vmem:[%s1 + $0x4b8] sm:$0xff]
  %v338 = vld [vmem:[%s1 + $0x4c0] sm:$0xff]
  %v339 = vld [vmem:[%s1 + $0x4c8] sm:$0xff]
  %v340 = vld [vmem:[%s1 + $0x4d0] sm:$0xff]
  %v341 = vld [vmem:[%s1 + $0x4d8] sm:$0xff]
  %v342 = vld [vmem:[%s1 + $0x4e0] sm:$0xff]
  %v343 = vld [vmem:[%s1 + $0x4e8] sm:$0xff]
  %v344 = vld [vmem:[%s1 + $0x4f0] sm:$0xff]
  %v345 = vld [vmem:[%s1 + $0x4f8] sm:$0xff]
  %v346 = vld [vmem:[%s1 + $0x500] sm:$0xff]
  %v347 = vld [vmem:[%s1 + $0x508] sm:$0xff]
  %v348 = vld [vmem:[%s1 + $0x510] sm:$0xff]
  %v349 = vld [vmem:[%s1 + $0x518] sm:$0xff]
  %v350 = vld [vmem:[%s1 + $0x520] sm:$0xff]
  %v351 = vld [vmem:[%s1 + $0x528] sm:$0xff]
  %v352 = vld [vmem:[%s1 + $0x530] sm:$0xff]
  %v353 = vld [vmem:[%s1 + $0x538] sm:$0xff]
  %v354 = vld [vmem:[%s1 + $0x540] sm:$0xff]
  %v355 = vld [vmem:[%s1 + $0x548] sm:$0xff]
  %v356 = vld [vmem:[%s1 + $0x550] sm:$0xff]
  %v357 = vld [vmem:[%s1 + $0x558] sm:$0xff]
  %v358 = vld [vmem:[%s1 + $0x560] sm:$0xff]
  %v359 = vld [vmem:[%s1 + $0x568] sm:$0xff]
  %v360 = vld [vmem:[%s1 + $0x570] sm:$0xff]
  %v361 = vld [vmem:[%s1 + $0x578] sm:$0xff]
  %v362 = vld [vmem:[%s1 + $0x580] sm:$0xff]
  %v363 = vld [vmem:[%s1 + $0x588] sm:$0xff]
  %v364 = vld [vmem:[%s1 + $0x590] sm:$0xff]
  %v365 = vld [vmem:[%s1 + $0x598] sm:$0xff]
  %v366 = vld [vmem:[%s1 + $0x5a0] sm:$0xff]
  %v367 = vld [vmem:[%s1 + $0x5a8] sm:$0xff]
  %v368 = vld [vmem:[%s1 + $0x5b0] sm:$0xff]
  %v369 = vld [vmem:[%s1 + $0x5b8] sm:$0xff]
  %v370 = vld [vmem:[%s1 + $0x5c0] sm:$0xff]
  %v371 = vld [vmem:[%s1 + $0x5c8] sm:$0xff]
  %v372 = vld [vmem:[%s1 + $0x5d0] sm:$0xff]
  %v373 = vld [vmem:[%s1 + $0x5d8] sm:$0xff]
  %v374 = vld [vmem:[%s1 + $0x5e0] sm:$0xff]
  %v375 = vld [vmem:[%s1 + $0x5e8] sm:$0xff]
  %v376 = vld [vmem:[%s1 + $0x5f0] sm:$0xff]
  %v377 = vld [vmem:[%s1 + $0x5f8] sm:$0xff]
  %v378 = vld [vmem:[%s2] sm:$0xf]
  %v380 = vlaneseq
  %v381 = vshrl.u32 %v380, 7
  %v382 = vsub.s32 0, %v381
  %v383 = vrot.slane %v378, %v382
  %v384 = vlaneseq
  %v385 = vshrl.u32 %v384, 7
  %v386 = vsub.s32 1, %v385
  %v387 = vrot.slane %v378, %v386
  %v388 = vlaneseq
  %v389 = vshrl.u32 %v388, 7
  %v390 = vsub.s32 2, %v389
  %v391 = vrot.slane %v378, %v390
  %v392 = vlaneseq
  %v393 = vshrl.u32 %v392, 7
  %v394 = vsub.s32 3, %v393
  %v395 = vrot.slane %v378, %v394
  %v412 = vunpack.c.l.b16 %v174
  %v413 = vunpack.c.h.b16 %v174
  %v414 = vunpack.c.l.b16 %v175
  %v415 = vunpack.c.h.b16 %v175
  %v416 = vunpack.c.l.b16 %v176
  %v417 = vunpack.c.h.b16 %v176
  %v418 = vunpack.c.l.b16 %v177
  %v419 = vunpack.c.h.b16 %v177
  %v420 = vunpack.c.l.b16 %v178
  %v421 = vunpack.c.h.b16 %v178
  %v422 = vunpack.c.l.b16 %v179
  %v423 = vunpack.c.h.b16 %v179
  %v424 = vunpack.c.l.b16 %v180
  %v425 = vunpack.c.h.b16 %v180
  %v426 = vunpack.c.l.b16 %v181
  %v427 = vunpack.c.h.b16 %v181
  %v428 = vunpack.c.l.b16 %v182
  %v429 = vunpack.c.h.b16 %v182
  %v430 = vunpack.c.l.b16 %v183
  %v431 = vunpack.c.h.b16 %v183
  %v432 = vunpack.c.l.b16 %v184
  %v433 = vunpack.c.h.b16 %v184
  %v434 = vunpack.c.l.b16 %v185
  %v435 = vunpack.c.h.b16 %v185
  %v436 = vpack.c.b16 %v418, %v412
  %v437 = vpack.c.b16 %v419, %v413
  %v438 = vpack.c.b16 %v420, %v414
  %v439 = vpack.c.b16 %v421, %v415
  %v440 = vpack.c.b16 %v422, %v416
  %v441 = vpack.c.b16 %v423, %v417
  %v442 = vpack.c.b16 %v430, %v424
  %v443 = vpack.c.b16 %v431, %v425
  %v444 = vpack.c.b16 %v432, %v426
  %v445 = vpack.c.b16 %v433, %v427
  %v446 = vpack.c.b16 %v434, %v428
  %v447 = vpack.c.b16 %v435, %v429
  %v652 = vunpack.c.l.b16 %v186
  %v653 = vunpack.c.h.b16 %v186
  %v654 = vunpack.c.l.b16 %v187
  %v655 = vunpack.c.h.b16 %v187
  %v656 = vunpack.c.l.b16 %v188
  %v657 = vunpack.c.h.b16 %v188
  %v658 = vunpack.c.l.b16 %v189
  %v659 = vunpack.c.h.b16 %v189
  %v660 = vunpack.c.l.b16 %v190
  %v661 = vunpack.c.h.b16 %v190
  %v662 = vunpack.c.l.b16 %v191
  %v663 = vunpack.c.h.b16 %v191
  %v664 = vunpack.c.l.b16 %v192
  %v665 = vunpack.c.h.b16 %v192
  %v666 = vunpack.c.l.b16 %v193
  %v667 = vunpack.c.h.b16 %v193
  %v668 = vunpack.c.l.b16 %v194
  %v669 = vunpack.c.h.b16 %v194
  %v670 = vunpack.c.l.b16 %v195
  %v671 = vunpack.c.h.b16 %v195
  %v672 = vunpack.c.l.b16 %v196
  %v673 = vunpack.c.h.b16 %v196
  %v674 = vunpack.c.l.b16 %v197
  %v675 = vunpack.c.h.b16 %v197
  %v676 = vunpack.c.l.b16 %v198
  %v677 = vunpack.c.h.b16 %v198
  %v678 = vunpack.c.l.b16 %v199
  %v679 = vunpack.c.h.b16 %v199
  %v680 = vunpack.c.l.b16 %v200
  %v681 = vunpack.c.h.b16 %v200
  %v682 = vunpack.c.l.b16 %v201
  %v683 = vunpack.c.h.b16 %v201
  %v684 = vunpack.c.l.b16 %v202
  %v685 = vunpack.c.h.b16 %v202
  %v686 = vunpack.c.l.b16 %v203
  %v687 = vunpack.c.h.b16 %v203
  %v688 = vunpack.c.l.b16 %v204
  %v689 = vunpack.c.h.b16 %v204
  %v690 = vunpack.c.l.b16 %v205
  %v691 = vunpack.c.h.b16 %v205
  %v692 = vunpack.c.l.b16 %v206
  %v693 = vunpack.c.h.b16 %v206
  %v694 = vunpack.c.l.b16 %v207
  %v695 = vunpack.c.h.b16 %v207
  %v696 = vunpack.c.l.b16 %v208
  %v697 = vunpack.c.h.b16 %v208
  %v698 = vunpack.c.l.b16 %v209
  %v699 = vunpack.c.h.b16 %v209
  %v700 = vunpack.c.l.b16 %v210
  %v701 = vunpack.c.h.b16 %v210
  %v702 = vunpack.c.l.b16 %v211
  %v703 = vunpack.c.h.b16 %v211
  %v704 = vunpack.c.l.b16 %v212
  %v705 = vunpack.c.h.b16 %v212
  %v706 = vunpack.c.l.b16 %v213
  %v707 = vunpack.c.h.b16 %v213
  %v708 = vunpack.c.l.b16 %v214
  %v709 = vunpack.c.h.b16 %v214
  %v710 = vunpack.c.l.b16 %v215
  %v711 = vunpack.c.h.b16 %v215
  %v712 = vunpack.c.l.b16 %v216
  %v713 = vunpack.c.h.b16 %v216
  %v714 = vunpack.c.l.b16 %v217
  %v715 = vunpack.c.h.b16 %v217
  %v716 = vunpack.c.l.b16 %v218
  %v717 = vunpack.c.h.b16 %v218
  %v718 = vunpack.c.l.b16 %v219
  %v719 = vunpack.c.h.b16 %v219
  %v720 = vunpack.c.l.b16 %v220
  %v721 = vunpack.c.h.b16 %v220
  %v722 = vunpack.c.l.b16 %v221
  %v723 = vunpack.c.h.b16 %v221
  %v724 = vunpack.c.l.b16 %v222
  %v725 = vunpack.c.h.b16 %v222
  %v726 = vunpack.c.l.b16 %v223
  %v727 = vunpack.c.h.b16 %v223
  %v728 = vunpack.c.l.b16 %v224
  %v729 = vunpack.c.h.b16 %v224
  %v730 = vunpack.c.l.b16 %v225
  %v731 = vunpack.c.h.b16 %v225
  %v732 = vunpack.c.l.b16 %v226
  %v733 = vunpack.c.h.b16 %v226
  %v734 = vunpack.c.l.b16 %v227
  %v735 = vunpack.c.h.b16 %v227
  %v736 = vunpack.c.l.b16 %v228
  %v737 = vunpack.c.h.b16 %v228
  %v738 = vunpack.c.l.b16 %v229
  %v739 = vunpack.c.h.b16 %v229
  %v740 = vunpack.c.l.b16 %v230
  %v741 = vunpack.c.h.b16 %v230
  %v742 = vunpack.c.l.b16 %v231
  %v743 = vunpack.c.h.b16 %v231
  %v744 = vunpack.c.l.b16 %v232
  %v745 = vunpack.c.h.b16 %v232
  %v746 = vunpack.c.l.b16 %v233
  %v747 = vunpack.c.h.b16 %v233
  %v748 = vunpack.c.l.b16 %v234
  %v749 = vunpack.c.h.b16 %v234
  %v750 = vunpack.c.l.b16 %v235
  %v751 = vunpack.c.h.b16 %v235
  %v752 = vunpack.c.l.b16 %v236
  %v753 = vunpack.c.h.b16 %v236
  %v754 = vunpack.c.l.b16 %v237
  %v755 = vunpack.c.h.b16 %v237
  %v756 = vunpack.c.l.b16 %v238
  %v757 = vunpack.c.h.b16 %v238
  %v758 = vunpack.c.l.b16 %v239
  %v759 = vunpack.c.h.b16 %v239
  %v760 = vunpack.c.l.b16 %v240
  %v761 = vunpack.c.h.b16 %v240
  %v762 = vunpack.c.l.b16 %v241
  %v763 = vunpack.c.h.b16 %v241
  %v764 = vunpack.c.l.b16 %v242
  %v765 = vunpack.c.h.b16 %v242
  %v766 = vunpack.c.l.b16 %v243
  %v767 = vunpack.c.h.b16 %v243
  %v768 = vunpack.c.l.b16 %v244
  %v769 = vunpack.c.h.b16 %v244
  %v770 = vunpack.c.l.b16 %v245
  %v771 = vunpack.c.h.b16 %v245
  %v772 = vunpack.c.l.b16 %v246
  %v773 = vunpack.c.h.b16 %v246
  %v774 = vunpack.c.l.b16 %v247
  %v775 = vunpack.c.h.b16 %v247
  %v776 = vunpack.c.l.b16 %v248
  %v777 = vunpack.c.h.b16 %v248
  %v778 = vunpack.c.l.b16 %v249
  %v779 = vunpack.c.h.b16 %v249
  %v780 = vunpack.c.l.b16 %v250
  %v781 = vunpack.c.h.b16 %v250
  %v782 = vunpack.c.l.b16 %v251
  %v783 = vunpack.c.h.b16 %v251
  %v784 = vunpack.c.l.b16 %v252
  %v785 = vunpack.c.h.b16 %v252
  %v786 = vunpack.c.l.b16 %v253
  %v787 = vunpack.c.h.b16 %v253
  %v788 = vunpack.c.l.b16 %v254
  %v789 = vunpack.c.h.b16 %v254
  %v790 = vunpack.c.l.b16 %v255
  %v791 = vunpack.c.h.b16 %v255
  %v792 = vunpack.c.l.b16 %v256
  %v793 = vunpack.c.h.b16 %v256
  %v794 = vunpack.c.l.b16 %v257
  %v795 = vunpack.c.h.b16 %v257
  %v796 = vunpack.c.l.b16 %v258
  %v797 = vunpack.c.h.b16 %v258
  %v798 = vunpack.c.l.b16 %v259
  %v799 = vunpack.c.h.b16 %v259
  %v800 = vunpack.c.l.b16 %v260
  %v801 = vunpack.c.h.b16 %v260
  %v802 = vunpack.c.l.b16 %v261
  %v803 = vunpack.c.h.b16 %v261
  %v804 = vunpack.c.l.b16 %v262
  %v805 = vunpack.c.h.b16 %v262
  %v806 = vunpack.c.l.b16 %v263
  %v807 = vunpack.c.h.b16 %v263
  %v808 = vunpack.c.l.b16 %v264
  %v809 = vunpack.c.h.b16 %v264
  %v810 = vunpack.c.l.b16 %v265
  %v811 = vunpack.c.h.b16 %v265
  %v812 = vunpack.c.l.b16 %v266
  %v813 = vunpack.c.h.b16 %v266
  %v814 = vunpack.c.l.b16 %v267
  %v815 = vunpack.c.h.b16 %v267
  %v816 = vunpack.c.l.b16 %v268
  %v817 = vunpack.c.h.b16 %v268
  %v818 = vunpack.c.l.b16 %v269
  %v819 = vunpack.c.h.b16 %v269
  %v820 = vunpack.c.l.b16 %v270
  %v821 = vunpack.c.h.b16 %v270
  %v822 = vunpack.c.l.b16 %v271
  %v823 = vunpack.c.h.b16 %v271
  %v824 = vunpack.c.l.b16 %v272
  %v825 = vunpack.c.h.b16 %v272
  %v826 = vunpack.c.l.b16 %v273
  %v827 = vunpack.c.h.b16 %v273
  %v828 = vunpack.c.l.b16 %v274
  %v829 = vunpack.c.h.b16 %v274
  %v830 = vunpack.c.l.b16 %v275
  %v831 = vunpack.c.h.b16 %v275
  %v832 = vunpack.c.l.b16 %v276
  %v833 = vunpack.c.h.b16 %v276
  %v834 = vunpack.c.l.b16 %v277
  %v835 = vunpack.c.h.b16 %v277
  %v836 = vunpack.c.l.b16 %v278
  %v837 = vunpack.c.h.b16 %v278
  %v838 = vunpack.c.l.b16 %v279
  %v839 = vunpack.c.h.b16 %v279
  %v840 = vunpack.c.l.b16 %v280
  %v841 = vunpack.c.h.b16 %v280
  %v842 = vunpack.c.l.b16 %v281
  %v843 = vunpack.c.h.b16 %v281
  %v844 = vunpack.c.l.b16 %v282
  %v845 = vunpack.c.h.b16 %v282
  %v846 = vunpack.c.l.b16 %v283
  %v847 = vunpack.c.h.b16 %v283
  %v848 = vunpack.c.l.b16 %v284
  %v849 = vunpack.c.h.b16 %v284
  %v850 = vunpack.c.l.b16 %v285
  %v851 = vunpack.c.h.b16 %v285
  %v852 = vunpack.c.l.b16 %v286
  %v853 = vunpack.c.h.b16 %v286
  %v854 = vunpack.c.l.b16 %v287
  %v855 = vunpack.c.h.b16 %v287
  %v856 = vunpack.c.l.b16 %v288
  %v857 = vunpack.c.h.b16 %v288
  %v858 = vunpack.c.l.b16 %v289
  %v859 = vunpack.c.h.b16 %v289
  %v860 = vunpack.c.l.b16 %v290
  %v861 = vunpack.c.h.b16 %v290
  %v862 = vunpack.c.l.b16 %v291
  %v863 = vunpack.c.h.b16 %v291
  %v864 = vunpack.c.l.b16 %v292
  %v865 = vunpack.c.h.b16 %v292
  %v866 = vunpack.c.l.b16 %v293
  %v867 = vunpack.c.h.b16 %v293
  %v868 = vunpack.c.l.b16 %v294
  %v869 = vunpack.c.h.b16 %v294
  %v870 = vunpack.c.l.b16 %v295
  %v871 = vunpack.c.h.b16 %v295
  %v872 = vunpack.c.l.b16 %v296
  %v873 = vunpack.c.h.b16 %v296
  %v874 = vunpack.c.l.b16 %v297
  %v875 = vunpack.c.h.b16 %v297
  %v876 = vunpack.c.l.b16 %v298
  %v877 = vunpack.c.h.b16 %v298
  %v878 = vunpack.c.l.b16 %v299
  %v879 = vunpack.c.h.b16 %v299
  %v880 = vunpack.c.l.b16 %v300
  %v881 = vunpack.c.h.b16 %v300
  %v882 = vunpack.c.l.b16 %v301
  %v883 = vunpack.c.h.b16 %v301
  %v884 = vunpack.c.l.b16 %v302
  %v885 = vunpack.c.h.b16 %v302
  %v886 = vunpack.c.l.b16 %v303
  %v887 = vunpack.c.h.b16 %v303
  %v888 = vunpack.c.l.b16 %v304
  %v889 = vunpack.c.h.b16 %v304
  %v890 = vunpack.c.l.b16 %v305
  %v891 = vunpack.c.h.b16 %v305
  %v892 = vunpack.c.l.b16 %v306
  %v893 = vunpack.c.h.b16 %v306
  %v894 = vunpack.c.l.b16 %v307
  %v895 = vunpack.c.h.b16 %v307
  %v896 = vunpack.c.l.b16 %v308
  %v897 = vunpack.c.h.b16 %v308
  %v898 = vunpack.c.l.b16 %v309
  %v899 = vunpack.c.h.b16 %v309
  %v900 = vunpack.c.l.b16 %v310
  %v901 = vunpack.c.h.b16 %v310
  %v902 = vunpack.c.l.b16 %v311
  %v903 = vunpack.c.h.b16 %v311
  %v904 = vunpack.c.l.b16 %v312
  %v905 = vunpack.c.h.b16 %v312
  %v906 = vunpack.c.l.b16 %v313
  %v907 = vunpack.c.h.b16 %v313
  %v908 = vunpack.c.l.b16 %v314
  %v909 = vunpack.c.h.b16 %v314
  %v910 = vunpack.c.l.b16 %v315
  %v911 = vunpack.c.h.b16 %v315
  %v912 = vunpack.c.l.b16 %v316
  %v913 = vunpack.c.h.b16 %v316
  %v914 = vunpack.c.l.b16 %v317
  %v915 = vunpack.c.h.b16 %v317
  %v916 = vunpack.c.l.b16 %v318
  %v917 = vunpack.c.h.b16 %v318
  %v918 = vunpack.c.l.b16 %v319
  %v919 = vunpack.c.h.b16 %v319
  %v920 = vunpack.c.l.b16 %v320
  %v921 = vunpack.c.h.b16 %v320
  %v922 = vunpack.c.l.b16 %v321
  %v923 = vunpack.c.h.b16 %v321
  %v924 = vunpack.c.l.b16 %v322
  %v925 = vunpack.c.h.b16 %v322
  %v926 = vunpack.c.l.b16 %v323
  %v927 = vunpack.c.h.b16 %v323
  %v928 = vunpack.c.l.b16 %v324
  %v929 = vunpack.c.h.b16 %v324
  %v930 = vunpack.c.l.b16 %v325
  %v931 = vunpack.c.h.b16 %v325
  %v932 = vunpack.c.l.b16 %v326
  %v933 = vunpack.c.h.b16 %v326
  %v934 = vunpack.c.l.b16 %v327
  %v935 = vunpack.c.h.b16 %v327
  %v936 = vunpack.c.l.b16 %v328
  %v937 = vunpack.c.h.b16 %v328
  %v938 = vunpack.c.l.b16 %v329
  %v939 = vunpack.c.h.b16 %v329
  %v940 = vunpack.c.l.b16 %v330
  %v941 = vunpack.c.h.b16 %v330
  %v942 = vunpack.c.l.b16 %v331
  %v943 = vunpack.c.h.b16 %v331
  %v944 = vunpack.c.l.b16 %v332
  %v945 = vunpack.c.h.b16 %v332
  %v946 = vunpack.c.l.b16 %v333
  %v947 = vunpack.c.h.b16 %v333
  %v948 = vunpack.c.l.b16 %v334
  %v949 = vunpack.c.h.b16 %v334
  %v950 = vunpack.c.l.b16 %v335
  %v951 = vunpack.c.h.b16 %v335
  %v952 = vunpack.c.l.b16 %v336
  %v953 = vunpack.c.h.b16 %v336
  %v954 = vunpack.c.l.b16 %v337
  %v955 = vunpack.c.h.b16 %v337
  %v956 = vunpack.c.l.b16 %v338
  %v957 = vunpack.c.h.b16 %v338
  %v958 = vunpack.c.l.b16 %v339
  %v959 = vunpack.c.h.b16 %v339
  %v960 = vunpack.c.l.b16 %v340
  %v961 = vunpack.c.h.b16 %v340
  %v962 = vunpack.c.l.b16 %v341
  %v963 = vunpack.c.h.b16 %v341
  %v964 = vunpack.c.l.b16 %v342
  %v965 = vunpack.c.h.b16 %v342
  %v966 = vunpack.c.l.b16 %v343
  %v967 = vunpack.c.h.b16 %v343
  %v968 = vunpack.c.l.b16 %v344
  %v969 = vunpack.c.h.b16 %v344
  %v970 = vunpack.c.l.b16 %v345
  %v971 = vunpack.c.h.b16 %v345
  %v972 = vunpack.c.l.b16 %v346
  %v973 = vunpack.c.h.b16 %v346
  %v974 = vunpack.c.l.b16 %v347
  %v975 = vunpack.c.h.b16 %v347
  %v976 = vunpack.c.l.b16 %v348
  %v977 = vunpack.c.h.b16 %v348
  %v978 = vunpack.c.l.b16 %v349
  %v979 = vunpack.c.h.b16 %v349
  %v980 = vunpack.c.l.b16 %v350
  %v981 = vunpack.c.h.b16 %v350
  %v982 = vunpack.c.l.b16 %v351
  %v983 = vunpack.c.h.b16 %v351
  %v984 = vunpack.c.l.b16 %v352
  %v985 = vunpack.c.h.b16 %v352
  %v986 = vunpack.c.l.b16 %v353
  %v987 = vunpack.c.h.b16 %v353
  %v988 = vunpack.c.l.b16 %v354
  %v989 = vunpack.c.h.b16 %v354
  %v990 = vunpack.c.l.b16 %v355
  %v991 = vunpack.c.h.b16 %v355
  %v992 = vunpack.c.l.b16 %v356
  %v993 = vunpack.c.h.b16 %v356
  %v994 = vunpack.c.l.b16 %v357
  %v995 = vunpack.c.h.b16 %v357
  %v996 = vunpack.c.l.b16 %v358
  %v997 = vunpack.c.h.b16 %v358
  %v998 = vunpack.c.l.b16 %v359
  %v999 = vunpack.c.h.b16 %v359
  %v1000 = vunpack.c.l.b16 %v360
  %v1001 = vunpack.c.h.b16 %v360
  %v1002 = vunpack.c.l.b16 %v361
  %v1003 = vunpack.c.h.b16 %v361
  %v1004 = vunpack.c.l.b16 %v362
  %v1005 = vunpack.c.h.b16 %v362
  %v1006 = vunpack.c.l.b16 %v363
  %v1007 = vunpack.c.h.b16 %v363
  %v1008 = vunpack.c.l.b16 %v364
  %v1009 = vunpack.c.h.b16 %v364
  %v1010 = vunpack.c.l.b16 %v365
  %v1011 = vunpack.c.h.b16 %v365
  %v1012 = vunpack.c.l.b16 %v366
  %v1013 = vunpack.c.h.b16 %v366
  %v1014 = vunpack.c.l.b16 %v367
  %v1015 = vunpack.c.h.b16 %v367
  %v1016 = vunpack.c.l.b16 %v368
  %v1017 = vunpack.c.h.b16 %v368
  %v1018 = vunpack.c.l.b16 %v369
  %v1019 = vunpack.c.h.b16 %v369
  %v1020 = vunpack.c.l.b16 %v370
  %v1021 = vunpack.c.h.b16 %v370
  %v1022 = vunpack.c.l.b16 %v371
  %v1023 = vunpack.c.h.b16 %v371
  %v1024 = vunpack.c.l.b16 %v372
  %v1025 = vunpack.c.h.b16 %v372
  %v1026 = vunpack.c.l.b16 %v373
  %v1027 = vunpack.c.h.b16 %v373
  %v1028 = vunpack.c.l.b16 %v374
  %v1029 = vunpack.c.h.b16 %v374
  %v1030 = vunpack.c.l.b16 %v375
  %v1031 = vunpack.c.h.b16 %v375
  %v1032 = vunpack.c.l.b16 %v376
  %v1033 = vunpack.c.h.b16 %v376
  %v1034 = vunpack.c.l.b16 %v377
  %v1035 = vunpack.c.h.b16 %v377
  %v1036 = vpack.c.b16 %v656, %v652
  %v1037 = vpack.c.b16 %v657, %v653
  %v1038 = vpack.c.b16 %v658, %v654
  %v1039 = vpack.c.b16 %v659, %v655
  %v1040 = vpack.c.b16 %v664, %v660
  %v1041 = vpack.c.b16 %v665, %v661
  %v1042 = vpack.c.b16 %v666, %v662
  %v1043 = vpack.c.b16 %v667, %v663
  %v1044 = vpack.c.b16 %v672, %v668
  %v1045 = vpack.c.b16 %v673, %v669
  %v1046 = vpack.c.b16 %v674, %v670
  %v1047 = vpack.c.b16 %v675, %v671
  %v1048 = vpack.c.b16 %v680, %v676
  %v1049 = vpack.c.b16 %v681, %v677
  %v1050 = vpack.c.b16 %v682, %v678
  %v1051 = vpack.c.b16 %v683, %v679
  %v1052 = vpack.c.b16 %v688, %v684
  %v1053 = vpack.c.b16 %v689, %v685
  %v1054 = vpack.c.b16 %v690, %v686
  %v1055 = vpack.c.b16 %v691, %v687
  %v1056 = vpack.c.b16 %v696, %v692
  %v1057 = vpack.c.b16 %v697, %v693
  %v1058 = vpack.c.b16 %v698, %v694
  %v1059 = vpack.c.b16 %v699, %v695
  %v1060 = vpack.c.b16 %v704, %v700
  %v1061 = vpack.c.b16 %v705, %v701
  %v1062 = vpack.c.b16 %v706, %v702
  %v1063 = vpack.c.b16 %v707, %v703
  %v1064 = vpack.c.b16 %v712, %v708
  %v1065 = vpack.c.b16 %v713, %v709
  %v1066 = vpack.c.b16 %v714, %v710
  %v1067 = vpack.c.b16 %v715, %v711
  %v1068 = vpack.c.b16 %v720, %v716
  %v1069 = vpack.c.b16 %v721, %v717
  %v1070 = vpack.c.b16 %v722, %v718
  %v1071 = vpack.c.b16 %v723, %v719
  %v1072 = vpack.c.b16 %v728, %v724
  %v1073 = vpack.c.b16 %v729, %v725
  %v1074 = vpack.c.b16 %v730, %v726
  %v1075 = vpack.c.b16 %v731, %v727
  %v1076 = vpack.c.b16 %v736, %v732
  %v1077 = vpack.c.b16 %v737, %v733
  %v1078 = vpack.c.b16 %v738, %v734
  %v1079 = vpack.c.b16 %v739, %v735
  %v1080 = vpack.c.b16 %v744, %v740
  %v1081 = vpack.c.b16 %v745, %v741
  %v1082 = vpack.c.b16 %v746, %v742
  %v1083 = vpack.c.b16 %v747, %v743
  %v1084 = vpack.c.b16 %v752, %v748
  %v1085 = vpack.c.b16 %v753, %v749
  %v1086 = vpack.c.b16 %v754, %v750
  %v1087 = vpack.c.b16 %v755, %v751
  %v1088 = vpack.c.b16 %v760, %v756
  %v1089 = vpack.c.b16 %v761, %v757
  %v1090 = vpack.c.b16 %v762, %v758
  %v1091 = vpack.c.b16 %v763, %v759
  %v1092 = vpack.c.b16 %v768, %v764
  %v1093 = vpack.c.b16 %v769, %v765
  %v1094 = vpack.c.b16 %v770, %v766
  %v1095 = vpack.c.b16 %v771, %v767
  %v1096 = vpack.c.b16 %v776, %v772
  %v1097 = vpack.c.b16 %v777, %v773
  %v1098 = vpack.c.b16 %v778, %v774
  %v1099 = vpack.c.b16 %v779, %v775
  %v1100 = vpack.c.b16 %v784, %v780
  %v1101 = vpack.c.b16 %v785, %v781
  %v1102 = vpack.c.b16 %v786, %v782
  %v1103 = vpack.c.b16 %v787, %v783
  %v1104 = vpack.c.b16 %v792, %v788
  %v1105 = vpack.c.b16 %v793, %v789
  %v1106 = vpack.c.b16 %v794, %v790
  %v1107 = vpack.c.b16 %v795, %v791
  %v1108 = vpack.c.b16 %v800, %v796
  %v1109 = vpack.c.b16 %v801, %v797
  %v1110 = vpack.c.b16 %v802, %v798
  %v1111 = vpack.c.b16 %v803, %v799
  %v1112 = vpack.c.b16 %v808, %v804
  %v1113 = vpack.c.b16 %v809, %v805
  %v1114 = vpack.c.b16 %v810, %v806
  %v1115 = vpack.c.b16 %v811, %v807
  %v1116 = vpack.c.b16 %v816, %v812
  %v1117 = vpack.c.b16 %v817, %v813
  %v1118 = vpack.c.b16 %v818, %v814
  %v1119 = vpack.c.b16 %v819, %v815
  %v1120 = vpack.c.b16 %v824, %v820
  %v1121 = vpack.c.b16 %v825, %v821
  %v1122 = vpack.c.b16 %v826, %v822
  %v1123 = vpack.c.b16 %v827, %v823
  %v1124 = vpack.c.b16 %v832, %v828
  %v1125 = vpack.c.b16 %v833, %v829
  %v1126 = vpack.c.b16 %v834, %v830
  %v1127 = vpack.c.b16 %v835, %v831
  %v1128 = vpack.c.b16 %v840, %v836
  %v1129 = vpack.c.b16 %v841, %v837
  %v1130 = vpack.c.b16 %v842, %v838
  %v1131 = vpack.c.b16 %v843, %v839
  %v1132 = vpack.c.b16 %v848, %v844
  %v1133 = vpack.c.b16 %v849, %v845
  %v1134 = vpack.c.b16 %v850, %v846
  %v1135 = vpack.c.b16 %v851, %v847
  %v1136 = vpack.c.b16 %v856, %v852
  %v1137 = vpack.c.b16 %v857, %v853
  %v1138 = vpack.c.b16 %v858, %v854
  %v1139 = vpack.c.b16 %v859, %v855
  %v1140 = vpack.c.b16 %v864, %v860
  %v1141 = vpack.c.b16 %v865, %v861
  %v1142 = vpack.c.b16 %v866, %v862
  %v1143 = vpack.c.b16 %v867, %v863
  %v1144 = vpack.c.b16 %v872, %v868
  %v1145 = vpack.c.b16 %v873, %v869
  %v1146 = vpack.c.b16 %v874, %v870
  %v1147 = vpack.c.b16 %v875, %v871
  %v1148 = vpack.c.b16 %v880, %v876
  %v1149 = vpack.c.b16 %v881, %v877
  %v1150 = vpack.c.b16 %v882, %v878
  %v1151 = vpack.c.b16 %v883, %v879
  %v1152 = vpack.c.b16 %v888, %v884
  %v1153 = vpack.c.b16 %v889, %v885
  %v1154 = vpack.c.b16 %v890, %v886
  %v1155 = vpack.c.b16 %v891, %v887
  %v1156 = vpack.c.b16 %v896, %v892
  %v1157 = vpack.c.b16 %v897, %v893
  %v1158 = vpack.c.b16 %v898, %v894
  %v1159 = vpack.c.b16 %v899, %v895
  %v1160 = vpack.c.b16 %v904, %v900
  %v1161 = vpack.c.b16 %v905, %v901
  %v1162 = vpack.c.b16 %v906, %v902
  %v1163 = vpack.c.b16 %v907, %v903
  %v1164 = vpack.c.b16 %v912, %v908
  %v1165 = vpack.c.b16 %v913, %v909
  %v1166 = vpack.c.b16 %v914, %v910
  %v1167 = vpack.c.b16 %v915, %v911
  %v1168 = vpack.c.b16 %v920, %v916
  %v1169 = vpack.c.b16 %v921, %v917
  %v1170 = vpack.c.b16 %v922, %v918
  %v1171 = vpack.c.b16 %v923, %v919
  %v1172 = vpack.c.b16 %v928, %v924
  %v1173 = vpack.c.b16 %v929, %v925
  %v1174 = vpack.c.b16 %v930, %v926
  %v1175 = vpack.c.b16 %v931, %v927
  %v1176 = vpack.c.b16 %v936, %v932
  %v1177 = vpack.c.b16 %v937, %v933
  %v1178 = vpack.c.b16 %v938, %v934
  %v1179 = vpack.c.b16 %v939, %v935
  %v1180 = vpack.c.b16 %v944, %v940
  %v1181 = vpack.c.b16 %v945, %v941
  %v1182 = vpack.c.b16 %v946, %v942
  %v1183 = vpack.c.b16 %v947, %v943
  %v1184 = vpack.c.b16 %v952, %v948
  %v1185 = vpack.c.b16 %v953, %v949
  %v1186 = vpack.c.b16 %v954, %v950
  %v1187 = vpack.c.b16 %v955, %v951
  %v1188 = vpack.c.b16 %v960, %v956
  %v1189 = vpack.c.b16 %v961, %v957
  %v1190 = vpack.c.b16 %v962, %v958
  %v1191 = vpack.c.b16 %v963, %v959
  %v1192 = vpack.c.b16 %v968, %v964
  %v1193 = vpack.c.b16 %v969, %v965
  %v1194 = vpack.c.b16 %v970, %v966
  %v1195 = vpack.c.b16 %v971, %v967
  %v1196 = vpack.c.b16 %v976, %v972
  %v1197 = vpack.c.b16 %v977, %v973
  %v1198 = vpack.c.b16 %v978, %v974
  %v1199 = vpack.c.b16 %v979, %v975
  %v1200 = vpack.c.b16 %v984, %v980
  %v1201 = vpack.c.b16 %v985, %v981
  %v1202 = vpack.c.b16 %v986, %v982
  %v1203 = vpack.c.b16 %v987, %v983
  %v1204 = vpack.c.b16 %v992, %v988
  %v1205 = vpack.c.b16 %v993, %v989
  %v1206 = vpack.c.b16 %v994, %v990
  %v1207 = vpack.c.b16 %v995, %v991
  %v1208 = vpack.c.b16 %v1000, %v996
  %v1209 = vpack.c.b16 %v1001, %v997
  %v1210 = vpack.c.b16 %v1002, %v998
  %v1211 = vpack.c.b16 %v1003, %v999
  %v1212 = vpack.c.b16 %v1008, %v1004
  %v1213 = vpack.c.b16 %v1009, %v1005
  %v1214 = vpack.c.b16 %v1010, %v1006
  %v1215 = vpack.c.b16 %v1011, %v1007
  %v1216 = vpack.c.b16 %v1016, %v1012
  %v1217 = vpack.c.b16 %v1017, %v1013
  %v1218 = vpack.c.b16 %v1018, %v1014
  %v1219 = vpack.c.b16 %v1019, %v1015
  %v1220 = vpack.c.b16 %v1024, %v1020
  %v1221 = vpack.c.b16 %v1025, %v1021
  %v1222 = vpack.c.b16 %v1026, %v1022
  %v1223 = vpack.c.b16 %v1027, %v1023
  %v1224 = vpack.c.b16 %v1032, %v1028
  %v1225 = vpack.c.b16 %v1033, %v1029
  %v1226 = vpack.c.b16 %v1034, %v1030
  %v1227 = vpack.c.b16 %v1035, %v1031
  %1420 = vmatprep.subr.bf16.mxu0 %v1065
  %1421 = vmatpush1.bf16.msra.mxu0 %v1064
  %1422 = vmatprep.subr.bf16.mxu0 %v1061
  %1423 = vmatpush1.bf16.msra.mxu0 %v1060
  %1424 = vmatprep.subr.bf16.mxu0 %v1057
  %1425 = vmatpush1.bf16.msra.mxu0 %v1056
  %1426 = vmatprep.subr.bf16.mxu0 %v1053
  %1427 = vmatpush1.bf16.msra.mxu0 %v1052
  %1428 = vmatprep.subr.bf16.mxu0 %v1049
  %1429 = vmatpush1.bf16.msra.mxu0 %v1048
  %1430 = vmatprep.subr.bf16.mxu0 %v1045
  %1431 = vmatpush1.bf16.msra.mxu0 %v1044
  %1432 = vmatprep.subr.bf16.mxu0 %v1041
  %1433 = vmatpush1.bf16.msra.mxu0 %v1040
  %1434 = vmatprep.subr.bf16.mxu0 %v1037
  %1435 = vmatpush1.bf16.msra.mxu0 %v1036
  %1436 = vmatprep.subr.bf16.mxu0 %v1097
  %1437 = vmatpush2.bf16.msra.mxu0 %v1096
  %1438 = vmatprep.subr.bf16.mxu0 %v1093
  %1439 = vmatpush2.bf16.msra.mxu0 %v1092
  %1440 = vmatprep.subr.bf16.mxu0 %v1089
  %1441 = vmatpush2.bf16.msra.mxu0 %v1088
  %1442 = vmatprep.subr.bf16.mxu0 %v1085
  %1443 = vmatpush2.bf16.msra.mxu0 %v1084
  %1444 = vmatprep.subr.bf16.mxu0 %v1081
  %1445 = vmatpush2.bf16.msra.mxu0 %v1080
  %1446 = vmatprep.subr.bf16.mxu0 %v1077
  %1447 = vmatpush2.bf16.msra.mxu0 %v1076
  %1448 = vmatprep.subr.bf16.mxu0 %v1073
  %1449 = vmatpush2.bf16.msra.mxu0 %v1072
  %1450 = vmatprep.subr.bf16.mxu0 %v1069
  %1451 = vmatpush2.bf16.msra.mxu0 %v1068
  %1452 = vmatprep.mubr.bf16.mxu0 %v437
  %1453 = vmatmul.mubr.bf16.gmra.mxu0 %v436
  %v1454 = vpop.f32.mrf.mxu0
  %v1455 = vadd.f32 %v383, %v1454
  %v1456 = vpop.f32.mrf.mxu0
  %v1457 = vadd.f32 %v387, %v1456
  %v1458 = vpop.f32.mrf.mxu0
  %v1459 = vadd.f32 %v383, %v1458
  %v1460 = vpop.f32.mrf.mxu0
  %v1461 = vadd.f32 %v387, %v1460
  %1462 = vmatprep.mubr.bf16.mxu0 %v443
  %1463 = vmatmul.mubr.bf16.gmra.mxu0 %v442
  %v1464 = vpop.f32.mrf.mxu0
  %v1465 = vadd.f32 %v383, %v1464
  %v1466 = vpop.f32.mrf.mxu0
  %v1467 = vadd.f32 %v387, %v1466
  %v1468 = vpop.f32.mrf.mxu0
  %v1469 = vadd.f32 %v383, %v1468
  %v1470 = vpop.f32.mrf.mxu0
  %v1471 = vadd.f32 %v387, %v1470
  %1472 = vdwg.mxu0
  %1473 = vmatprep.subr.bf16.mxu0 %v1129
  %1474 = vmatpush1.bf16.msra.mxu0 %v1128
  %1475 = vmatprep.subr.bf16.mxu0 %v1125
  %1476 = vmatpush1.bf16.msra.mxu0 %v1124
  %1477 = vmatprep.subr.bf16.mxu0 %v1121
  %1478 = vmatpush1.bf16.msra.mxu0 %v1120
  %1479 = vmatprep.subr.bf16.mxu0 %v1117
  %1480 = vmatpush1.bf16.msra.mxu0 %v1116
  %1481 = vmatprep.subr.bf16.mxu0 %v1113
  %1482 = vmatpush1.bf16.msra.mxu0 %v1112
  %1483 = vmatprep.subr.bf16.mxu0 %v1109
  %1484 = vmatpush1.bf16.msra.mxu0 %v1108
  %1485 = vmatprep.subr.bf16.mxu0 %v1105
  %1486 = vmatpush1.bf16.msra.mxu0 %v1104
  %1487 = vmatprep.subr.bf16.mxu0 %v1101
  %1488 = vmatpush1.bf16.msra.mxu0 %v1100
  %1489 = vmatprep.subr.bf16.mxu0 %v1161
  %1490 = vmatpush2.bf16.msra.mxu0 %v1160
  %1491 = vmatprep.subr.bf16.mxu0 %v1157
  %1492 = vmatpush2.bf16.msra.mxu0 %v1156
  %1493 = vmatprep.subr.bf16.mxu0 %v1153
  %1494 = vmatpush2.bf16.msra.mxu0 %v1152
  %1495 = vmatprep.subr.bf16.mxu0 %v1149
  %1496 = vmatpush2.bf16.msra.mxu0 %v1148
  %1497 = vmatprep.subr.bf16.mxu0 %v1145
  %1498 = vmatpush2.bf16.msra.mxu0 %v1144
  %1499 = vmatprep.subr.bf16.mxu0 %v1141
  %1500 = vmatpush2.bf16.msra.mxu0 %v1140
  %1501 = vmatprep.subr.bf16.mxu0 %v1137
  %1502 = vmatpush2.bf16.msra.mxu0 %v1136
  %1503 = vmatprep.subr.bf16.mxu0 %v1133
  %1504 = vmatpush2.bf16.msra.mxu0 %v1132
  %1505 = vmatprep.mubr.bf16.mxu0 %v439
  %1506 = vmatmul.mubr.bf16.gmra.mxu0 %v438
  %v1507 = vpop.f32.mrf.mxu0
  %v1508 = vadd.f32 %v1455, %v1507
  %v1509 = vpop.f32.mrf.mxu0
  %v1510 = vadd.f32 %v1457, %v1509
  %v1511 = vpop.f32.mrf.mxu0
  %v1512 = vadd.f32 %v1459, %v1511
  %v1513 = vpop.f32.mrf.mxu0
  %v1514 = vadd.f32 %v1461, %v1513
  %1515 = vmatprep.mubr.bf16.mxu0 %v445
  %1516 = vmatmul.mubr.bf16.gmra.mxu0 %v444
  %v1517 = vpop.f32.mrf.mxu0
  %v1518 = vadd.f32 %v1465, %v1517
  %v1519 = vpop.f32.mrf.mxu0
  %v1520 = vadd.f32 %v1467, %v1519
  %v1521 = vpop.f32.mrf.mxu0
  %v1522 = vadd.f32 %v1469, %v1521
  %v1523 = vpop.f32.mrf.mxu0
  %v1524 = vadd.f32 %v1471, %v1523
  %1525 = vdwg.mxu0
  %1526 = vmatprep.subr.bf16.mxu0 %v1193
  %1527 = vmatpush1.bf16.msra.mxu0 %v1192
  %1528 = vmatprep.subr.bf16.mxu0 %v1189
  %1529 = vmatpush1.bf16.msra.mxu0 %v1188
  %1530 = vmatprep.subr.bf16.mxu0 %v1185
  %1531 = vmatpush1.bf16.msra.mxu0 %v1184
  %1532 = vmatprep.subr.bf16.mxu0 %v1181
  %1533 = vmatpush1.bf16.msra.mxu0 %v1180
  %1534 = vmatprep.subr.bf16.mxu0 %v1177
  %1535 = vmatpush1.bf16.msra.mxu0 %v1176
  %1536 = vmatprep.subr.bf16.mxu0 %v1173
  %1537 = vmatpush1.bf16.msra.mxu0 %v1172
  %1538 = vmatprep.subr.bf16.mxu0 %v1169
  %1539 = vmatpush1.bf16.msra.mxu0 %v1168
  %1540 = vmatprep.subr.bf16.mxu0 %v1165
  %1541 = vmatpush1.bf16.msra.mxu0 %v1164
  %1542 = vmatprep.subr.bf16.mxu0 %v1225
  %1543 = vmatpush2.bf16.msra.mxu0 %v1224
  %1544 = vmatprep.subr.bf16.mxu0 %v1221
  %1545 = vmatpush2.bf16.msra.mxu0 %v1220
  %1546 = vmatprep.subr.bf16.mxu0 %v1217
  %1547 = vmatpush2.bf16.msra.mxu0 %v1216
  %1548 = vmatprep.subr.bf16.mxu0 %v1213
  %1549 = vmatpush2.bf16.msra.mxu0 %v1212
  %1550 = vmatprep.subr.bf16.mxu0 %v1209
  %1551 = vmatpush2.bf16.msra.mxu0 %v1208
  %1552 = vmatprep.subr.bf16.mxu0 %v1205
  %1553 = vmatpush2.bf16.msra.mxu0 %v1204
  %1554 = vmatprep.subr.bf16.mxu0 %v1201
  %1555 = vmatpush2.bf16.msra.mxu0 %v1200
  %1556 = vmatprep.subr.bf16.mxu0 %v1197
  %1557 = vmatpush2.bf16.msra.mxu0 %v1196
  %1558 = vmatprep.mubr.bf16.mxu0 %v441
  %1559 = vmatmul.mubr.bf16.gmra.mxu0 %v440
  %v1560 = vpop.f32.mrf.mxu0
  %v1561 = vadd.f32 %v1508, %v1560
  %v1562 = vpop.f32.mrf.mxu0
  %v1563 = vadd.f32 %v1510, %v1562
  %v1564 = vpop.f32.mrf.mxu0
  %v1565 = vadd.f32 %v1512, %v1564
  %v1566 = vpop.f32.mrf.mxu0
  %v1567 = vadd.f32 %v1514, %v1566
  %1568 = vmatprep.mubr.bf16.mxu0 %v447
  %1569 = vmatmul.mubr.bf16.gmra.mxu0 %v446
  %v1570 = vpop.f32.mrf.mxu0
  %v1571 = vadd.f32 %v1518, %v1570
  %v1572 = vpop.f32.mrf.mxu0
  %v1573 = vadd.f32 %v1520, %v1572
  %v1574 = vpop.f32.mrf.mxu0
  %v1575 = vadd.f32 %v1522, %v1574
  %v1576 = vpop.f32.mrf.mxu0
  %v1577 = vadd.f32 %v1524, %v1576
  %1578 = vdwg.mxu0
  %1579 = vmatprep.subr.bf16.mxu0 %v1067
  %1580 = vmatpush1.bf16.msra.mxu0 %v1066
  %1581 = vmatprep.subr.bf16.mxu0 %v1063
  %1582 = vmatpush1.bf16.msra.mxu0 %v1062
  %1583 = vmatprep.subr.bf16.mxu0 %v1059
  %1584 = vmatpush1.bf16.msra.mxu0 %v1058
  %1585 = vmatprep.subr.bf16.mxu0 %v1055
  %1586 = vmatpush1.bf16.msra.mxu0 %v1054
  %1587 = vmatprep.subr.bf16.mxu0 %v1051
  %1588 = vmatpush1.bf16.msra.mxu0 %v1050
  %1589 = vmatprep.subr.bf16.mxu0 %v1047
  %1590 = vmatpush1.bf16.msra.mxu0 %v1046
  %1591 = vmatprep.subr.bf16.mxu0 %v1043
  %1592 = vmatpush1.bf16.msra.mxu0 %v1042
  %1593 = vmatprep.subr.bf16.mxu0 %v1039
  %1594 = vmatpush1.bf16.msra.mxu0 %v1038
  %1595 = vmatprep.subr.bf16.mxu0 %v1099
  %1596 = vmatpush2.bf16.msra.mxu0 %v1098
  %1597 = vmatprep.subr.bf16.mxu0 %v1095
  %1598 = vmatpush2.bf16.msra.mxu0 %v1094
  %1599 = vmatprep.subr.bf16.mxu0 %v1091
  %1600 = vmatpush2.bf16.msra.mxu0 %v1090
  %1601 = vmatprep.subr.bf16.mxu0 %v1087
  %1602 = vmatpush2.bf16.msra.mxu0 %v1086
  %1603 = vmatprep.subr.bf16.mxu0 %v1083
  %1604 = vmatpush2.bf16.msra.mxu0 %v1082
  %1605 = vmatprep.subr.bf16.mxu0 %v1079
  %1606 = vmatpush2.bf16.msra.mxu0 %v1078
  %1607 = vmatprep.subr.bf16.mxu0 %v1075
  %1608 = vmatpush2.bf16.msra.mxu0 %v1074
  %1609 = vmatprep.subr.bf16.mxu0 %v1071
  %1610 = vmatpush2.bf16.msra.mxu0 %v1070
  %1611 = vmatprep.mubr.bf16.mxu0 %v437
  %1612 = vmatmul.mubr.bf16.gmra.mxu0 %v436
  %v1613 = vpop.f32.mrf.mxu0
  %v1614 = vadd.f32 %v391, %v1613
  %v1615 = vpop.f32.mrf.mxu0
  %v1616 = vadd.f32 %v395, %v1615
  %v1617 = vpop.f32.mrf.mxu0
  %v1618 = vadd.f32 %v391, %v1617
  %v1619 = vpop.f32.mrf.mxu0
  %v1620 = vadd.f32 %v395, %v1619
  %1621 = vmatprep.mubr.bf16.mxu0 %v443
  %1622 = vmatmul.mubr.bf16.gmra.mxu0 %v442
  %v1623 = vpop.f32.mrf.mxu0
  %v1624 = vadd.f32 %v391, %v1623
  %v1625 = vpop.f32.mrf.mxu0
  %v1626 = vadd.f32 %v395, %v1625
  %v1627 = vpop.f32.mrf.mxu0
  %v1628 = vadd.f32 %v391, %v1627
  %v1629 = vpop.f32.mrf.mxu0
  %v1630 = vadd.f32 %v395, %v1629
  %1631 = vdwg.mxu0
  %1632 = vmatprep.subr.bf16.mxu0 %v1131
  %1633 = vmatpush1.bf16.msra.mxu0 %v1130
  %1634 = vmatprep.subr.bf16.mxu0 %v1127
  %1635 = vmatpush1.bf16.msra.mxu0 %v1126
  %1636 = vmatprep.subr.bf16.mxu0 %v1123
  %1637 = vmatpush1.bf16.msra.mxu0 %v1122
  %1638 = vmatprep.subr.bf16.mxu0 %v1119
  %1639 = vmatpush1.bf16.msra.mxu0 %v1118
  %1640 = vmatprep.subr.bf16.mxu0 %v1115
  %1641 = vmatpush1.bf16.msra.mxu0 %v1114
  %1642 = vmatprep.subr.bf16.mxu0 %v1111
  %1643 = vmatpush1.bf16.msra.mxu0 %v1110
  %1644 = vmatprep.subr.bf16.mxu0 %v1107
  %1645 = vmatpush1.bf16.msra.mxu0 %v1106
  %1646 = vmatprep.subr.bf16.mxu0 %v1103
  %1647 = vmatpush1.bf16.msra.mxu0 %v1102
  %1648 = vmatprep.subr.bf16.mxu0 %v1163
  %1649 = vmatpush2.bf16.msra.mxu0 %v1162
  %1650 = vmatprep.subr.bf16.mxu0 %v1159
  %1651 = vmatpush2.bf16.msra.mxu0 %v1158
  %1652 = vmatprep.subr.bf16.mxu0 %v1155
  %1653 = vmatpush2.bf16.msra.mxu0 %v1154
  %1654 = vmatprep.subr.bf16.mxu0 %v1151
  %1655 = vmatpush2.bf16.msra.mxu0 %v1150
  %1656 = vmatprep.subr.bf16.mxu0 %v1147
  %1657 = vmatpush2.bf16.msra.mxu0 %v1146
  %1658 = vmatprep.subr.bf16.mxu0 %v1143
  %1659 = vmatpush2.bf16.msra.mxu0 %v1142
  %1660 = vmatprep.subr.bf16.mxu0 %v1139
  %1661 = vmatpush2.bf16.msra.mxu0 %v1138
  %1662 = vmatprep.subr.bf16.mxu0 %v1135
  %1663 = vmatpush2.bf16.msra.mxu0 %v1134
  %1664 = vmatprep.mubr.bf16.mxu0 %v439
  %1665 = vmatmul.mubr.bf16.gmra.mxu0 %v438
  %v1666 = vpop.f32.mrf.mxu0
  %v1667 = vadd.f32 %v1614, %v1666
  %v1668 = vpop.f32.mrf.mxu0
  %v1669 = vadd.f32 %v1616, %v1668
  %v1670 = vpop.f32.mrf.mxu0
  %v1671 = vadd.f32 %v1618, %v1670
  %v1672 = vpop.f32.mrf.mxu0
  %v1673 = vadd.f32 %v1620, %v1672
  %1674 = vmatprep.mubr.bf16.mxu0 %v445
  %1675 = vmatmul.mubr.bf16.gmra.mxu0 %v444
  %v1676 = vpop.f32.mrf.mxu0
  %v1677 = vadd.f32 %v1624, %v1676
  %v1678 = vpop.f32.mrf.mxu0
  %v1679 = vadd.f32 %v1626, %v1678
  %v1680 = vpop.f32.mrf.mxu0
  %v1681 = vadd.f32 %v1628, %v1680
  %v1682 = vpop.f32.mrf.mxu0
  %v1683 = vadd.f32 %v1630, %v1682
  %1684 = vdwg.mxu0
  %1685 = vmatprep.subr.bf16.mxu0 %v1195
  %1686 = vmatpush1.bf16.msra.mxu0 %v1194
  %1687 = vmatprep.subr.bf16.mxu0 %v1191
  %1688 = vmatpush1.bf16.msra.mxu0 %v1190
  %1689 = vmatprep.subr.bf16.mxu0 %v1187
  %1690 = vmatpush1.bf16.msra.mxu0 %v1186
  %1691 = vmatprep.subr.bf16.mxu0 %v1183
  %1692 = vmatpush1.bf16.msra.mxu0 %v1182
  %1693 = vmatprep.subr.bf16.mxu0 %v1179
  %1694 = vmatpush1.bf16.msra.mxu0 %v1178
  %1695 = vmatprep.subr.bf16.mxu0 %v1175
  %1696 = vmatpush1.bf16.msra.mxu0 %v1174
  %1697 = vmatprep.subr.bf16.mxu0 %v1171
  %1698 = vmatpush1.bf16.msra.mxu0 %v1170
  %1699 = vmatprep.subr.bf16.mxu0 %v1167
  %1700 = vmatpush1.bf16.msra.mxu0 %v1166
  %1701 = vmatprep.subr.bf16.mxu0 %v1227
  %1702 = vmatpush2.bf16.msra.mxu0 %v1226
  %1703 = vmatprep.subr.bf16.mxu0 %v1223
  %1704 = vmatpush2.bf16.msra.mxu0 %v1222
  %1705 = vmatprep.subr.bf16.mxu0 %v1219
  %1706 = vmatpush2.bf16.msra.mxu0 %v1218
  %1707 = vmatprep.subr.bf16.mxu0 %v1215
  %1708 = vmatpush2.bf16.msra.mxu0 %v1214
  %1709 = vmatprep.subr.bf16.mxu0 %v1211
  %1710 = vmatpush2.bf16.msra.mxu0 %v1210
  %1711 = vmatprep.subr.bf16.mxu0 %v1207
  %1712 = vmatpush2.bf16.msra.mxu0 %v1206
  %1713 = vmatprep.subr.bf16.mxu0 %v1203
  %1714 = vmatpush2.bf16.msra.mxu0 %v1202
  %1715 = vmatprep.subr.bf16.mxu0 %v1199
  %1716 = vmatpush2.bf16.msra.mxu0 %v1198
  %1717 = vmatprep.mubr.bf16.mxu0 %v441
  %1718 = vmatmul.mubr.bf16.gmra.mxu0 %v440
  %v1719 = vpop.f32.mrf.mxu0
  %v1720 = vadd.f32 %v1667, %v1719
  %v1721 = vpop.f32.mrf.mxu0
  %v1722 = vadd.f32 %v1669, %v1721
  %v1723 = vpop.f32.mrf.mxu0
  %v1724 = vadd.f32 %v1671, %v1723
  %v1725 = vpop.f32.mrf.mxu0
  %v1726 = vadd.f32 %v1673, %v1725
  %1727 = vmatprep.mubr.bf16.mxu0 %v447
  %1728 = vmatmul.mubr.bf16.gmra.mxu0 %v446
  %v1729 = vpop.f32.mrf.mxu0
  %v1730 = vadd.f32 %v1677, %v1729
  %v1731 = vpop.f32.mrf.mxu0
  %v1732 = vadd.f32 %v1679, %v1731
  %v1733 = vpop.f32.mrf.mxu0
  %v1734 = vadd.f32 %v1681, %v1733
  %v1735 = vpop.f32.mrf.mxu0
  %v1736 = vadd.f32 %v1683, %v1735
  %1737 = vdwg.mxu0
  %v1738 = vmax.f32 %v1561, 0.0
  %v1739 = vmax.f32 %v1563, 0.0
  %v1740 = vmax.f32 %v1720, 0.0
  %v1741 = vmax.f32 %v1722, 0.0
  %v1742 = vmax.f32 %v1565, 0.0
  %v1743 = vmax.f32 %v1567, 0.0
  %v1744 = vmax.f32 %v1724, 0.0
  %v1745 = vmax.f32 %v1726, 0.0
  %v1746 = vmax.f32 %v1571, 0.0
  %v1747 = vmax.f32 %v1573, 0.0
  %v1748 = vmax.f32 %v1730, 0.0
  %v1749 = vmax.f32 %v1732, 0.0
  %v1750 = vmax.f32 %v1575, 0.0
  %v1751 = vmax.f32 %v1577, 0.0
  %v1752 = vmax.f32 %v1734, 0.0
  %v1753 = vmax.f32 %v1736, 0.0
  %v1754 = vpack.c.bf16 %v1742, %v1738
  %v1755 = vpack.c.bf16 %v1743, %v1739
  %v1756 = vpack.c.bf16 %v1744, %v1740
  %v1757 = vpack.c.bf16 %v1745, %v1741
  %v1758 = vpack.c.bf16 %v1750, %v1746
  %v1759 = vpack.c.bf16 %v1751, %v1747
  %v1760 = vpack.c.bf16 %v1752, %v1748
  %v1761 = vpack.c.bf16 %v1753, %v1749
  %v1762 = vld [vmem:[#allocation3] sm:$0x11]
  %v1763 = vsel %vm33, 0, %v1762
  %1764 = vst [vmem:[#allocation3] sm:$0x11] %v1763
  %v1765 = vld [vmem:[#allocation3 + $0x8] sm:$0x11]
  %v1766 = vsel %vm33, 0, %v1765
  %1767 = vst [vmem:[#allocation3 + $0x8] sm:$0x11] %v1766
  %v1772 = vunpack.c.l.b16 %v1754
  %v1773 = vunpack.c.l.b16 %v1755
  %v1774 = vunpack.c.l.b16 %v1756
  %v1775 = vunpack.c.l.b16 %v1757
  %v1776 = vunpack.c.h.b16 %v1754
  %v1777 = vunpack.c.h.b16 %v1755
  %v1778 = vunpack.c.h.b16 %v1756
  %v1779 = vunpack.c.h.b16 %v1757
  %v1780 = vpack.c.b16 %v1773, %v1772
  %v1781 = vpack.c.b16 %v1775, %v1774
  %v1782 = vpack.c.b16 %v1777, %v1776
  %v1783 = vpack.c.b16 %v1779, %v1778
  %v1785 = vshrl.u32 %v1780, 16
  %v1787 = vrot.slane %v1785, 7
  %v1788 = vshll.u32 %v1780, 16
  %v1790 = vor.u32 %v1787, %v1788
  %v1792 = vshrl.u32 %v1781, 16
  %v1794 = vrot.slane %v1792, 7
  %v1795 = vshll.u32 %v1781, 16
  %v1797 = vor.u32 %v1794, %v1795
  %v1798 = vrot.slane %v1787, 4
  %v1800 = vshrl.u32 %v1782, 16
  %v1802 = vrot.slane %v1800, 7
  %v1803 = vshll.u32 %v1782, 16
  %v1805 = vor.u32 %v1802, %v1803
  %v1806 = vsel %vm46, %v1798, %v1805
  %v1807 = vrot.slane %v1794, 4
  %v1809 = vshrl.u32 %v1783, 16
  %v1811 = vrot.slane %v1809, 7
  %v1812 = vshll.u32 %v1783, 16
  %v1814 = vor.u32 %v1811, %v1812
  %v1815 = vsel %vm46, %v1807, %v1814
  %v1820 = vld [vmem:[#allocation3] sm:$0xff]
  %v1821 = vsel %vm71, %v1790, %v1820
  %1822 = vst [vmem:[#allocation3] sm:$0xff] %v1821
  %v1823 = vld [vmem:[#allocation3 + $0x8] sm:$0xff]
  %v1824 = vsel %vm71, %v1797, %v1823
  %1825 = vst [vmem:[#allocation3 + $0x8] sm:$0xff] %v1824
  %1826 = vst [vmem:[#allocation3 + $0x30] sm:$0xff] %v1806
  %1827 = vst [vmem:[#allocation3 + $0x38] sm:$0xff] %v1815
  %1832 = vst [vmem:[#allocation3 + $0x10] sm:$0xff] %v1780
  %1833 = vst [vmem:[#allocation3 + $0x18] sm:$0xff] %v1781
  %1834 = vst [vmem:[#allocation3 + $0x40] sm:$0xff] %v1782
  %1835 = vst [vmem:[#allocation3 + $0x48] sm:$0xff] %v1783
  %v1836 = vrot.slane %v1785, 4
  %v1837 = vrot.slane %v1788, 5
  %v1838 = vor.u32 %v1836, %v1837
  %v1839 = vrot.slane %v1838, 4
  %v1840 = vrot.slane %v1803, 5
  %v1841 = vsel %vm82, %v1839, %v1840
  %v1842 = vrot.slane %v1792, 4
  %v1843 = vrot.slane %v1795, 5
  %v1844 = vor.u32 %v1842, %v1843
  %v1845 = vrot.slane %v1844, 4
  %v1846 = vrot.slane %v1812, 5
  %v1847 = vsel %vm82, %v1845, %v1846
  %v1848 = vrot.slane %v1800, 4
  %v1849 = vor.u32 %v1848, %v1840
  %v1850 = vrot.slane %v1849, 4
  %v1851 = vrot.slane %v1809, 4
  %v1852 = vor.u32 %v1851, %v1846
  %v1853 = vrot.slane %v1852, 4
  %1858 = vst [vmem:[#allocation3 + $0x20] sm:$0xff] %v1841
  %1859 = vst [vmem:[#allocation3 + $0x28] sm:$0xff] %v1847
  %v1860 = vld [vmem:[#allocation3 + $0x50] sm:$0xff]
  %v1861 = vsel %vm98, %v1850, %v1860
  %1862 = vst [vmem:[#allocation3 + $0x50] sm:$0xff] %v1861
  %v1863 = vld [vmem:[#allocation3 + $0x58] sm:$0xff]
  %v1864 = vsel %vm98, %v1853, %v1863
  %1865 = vst [vmem:[#allocation3 + $0x58] sm:$0xff] %v1864
  %v1866 = vld [vmem:[#allocation3 + $0x50] sm:$0x88]
  %v1867 = vsel %vm108, 0, %v1866
  %1868 = vst [vmem:[#allocation3 + $0x50] sm:$0x88] %v1867
  %v1869 = vld [vmem:[#allocation3 + $0x58] sm:$0x88]
  %v1870 = vsel %vm108, 0, %v1869
  %1871 = vst [vmem:[#allocation3 + $0x58] sm:$0x88] %v1870
  %v1872 = vld [vmem:[#allocation3 + $0x60] sm:$0x11]
  %v1873 = vsel %vm33, 0, %v1872
  %1874 = vst [vmem:[#allocation3 + $0x60] sm:$0x11] %v1873
  %v1875 = vld [vmem:[#allocation3 + $0x68] sm:$0x11]
  %v1876 = vsel %vm33, 0, %v1875
  %1877 = vst [vmem:[#allocation3 + $0x68] sm:$0x11] %v1876
  %v1882 = vunpack.c.l.b16 %v1758
  %v1883 = vunpack.c.l.b16 %v1759
  %v1884 = vunpack.c.l.b16 %v1760
  %v1885 = vunpack.c.l.b16 %v1761
  %v1886 = vunpack.c.h.b16 %v1758
  %v1887 = vunpack.c.h.b16 %v1759
  %v1888 = vunpack.c.h.b16 %v1760
  %v1889 = vunpack.c.h.b16 %v1761
  %v1890 = vpack.c.b16 %v1883, %v1882
  %v1891 = vpack.c.b16 %v1885, %v1884
  %v1892 = vpack.c.b16 %v1887, %v1886
  %v1893 = vpack.c.b16 %v1889, %v1888
  %v1895 = vshrl.u32 %v1890, 16
  %v1897 = vrot.slane %v1895, 7
  %v1898 = vshll.u32 %v1890, 16
  %v1900 = vor.u32 %v1897, %v1898
  %v1902 = vshrl.u32 %v1891, 16
  %v1904 = vrot.slane %v1902, 7
  %v1905 = vshll.u32 %v1891, 16
  %v1907 = vor.u32 %v1904, %v1905
  %v1908 = vrot.slane %v1897, 4
  %v1910 = vshrl.u32 %v1892, 16
  %v1912 = vrot.slane %v1910, 7
  %v1913 = vshll.u32 %v1892, 16
  %v1915 = vor.u32 %v1912, %v1913
  %v1916 = vsel %vm46, %v1908, %v1915
  %v1917 = vrot.slane %v1904, 4
  %v1919 = vshrl.u32 %v1893, 16
  %v1921 = vrot.slane %v1919, 7
  %v1922 = vshll.u32 %v1893, 16
  %v1924 = vor.u32 %v1921, %v1922
  %v1925 = vsel %vm46, %v1917, %v1924
  %v1930 = vld [vmem:[#allocation3 + $0x60] sm:$0xff]
  %v1931 = vsel %vm71, %v1900, %v1930
  %1932 = vst [vmem:[#allocation3 + $0x60] sm:$0xff] %v1931
  %v1933 = vld [vmem:[#allocation3 + $0x68] sm:$0xff]
  %v1934 = vsel %vm71, %v1907, %v1933
  %1935 = vst [vmem:[#allocation3 + $0x68] sm:$0xff] %v1934
  %1936 = vst [vmem:[#allocation3 + $0x90] sm:$0xff] %v1916
  %1937 = vst [vmem:[#allocation3 + $0x98] sm:$0xff] %v1925
  %1942 = vst [vmem:[#allocation3 + $0x70] sm:$0xff] %v1890
  %1943 = vst [vmem:[#allocation3 + $0x78] sm:$0xff] %v1891
  %1944 = vst [vmem:[#allocation3 + $0xa0] sm:$0xff] %v1892
  %1945 = vst [vmem:[#allocation3 + $0xa8] sm:$0xff] %v1893
  %v1946 = vrot.slane %v1895, 4
  %v1947 = vrot.slane %v1898, 5
  %v1948 = vor.u32 %v1946, %v1947
  %v1949 = vrot.slane %v1948, 4
  %v1950 = vrot.slane %v1913, 5
  %v1951 = vsel %vm82, %v1949, %v1950
  %v1952 = vrot.slane %v1902, 4
  %v1953 = vrot.slane %v1905, 5
  %v1954 = vor.u32 %v1952, %v1953
  %v1955 = vrot.slane %v1954, 4
  %v1956 = vrot.slane %v1922, 5
  %v1957 = vsel %vm82, %v1955, %v1956
  %v1958 = vrot.slane %v1910, 4
  %v1959 = vor.u32 %v1958, %v1950
  %v1960 = vrot.slane %v1959, 4
  %v1961 = vrot.slane %v1919, 4
  %v1962 = vor.u32 %v1961, %v1956
  %v1963 = vrot.slane %v1962, 4
  %1968 = vst [vmem:[#allocation3 + $0x80] sm:$0xff] %v1951
  %1969 = vst [vmem:[#allocation3 + $0x88] sm:$0xff] %v1957
  %v1970 = vld [vmem:[#allocation3 + $0xb0] sm:$0xff]
  %v1971 = vsel %vm98, %v1960, %v1970
  %1972 = vst [vmem:[#allocation3 + $0xb0] sm:$0xff] %v1971
  %v1973 = vld [vmem:[#allocation3 + $0xb8] sm:$0xff]
  %v1974 = vsel %vm98, %v1963, %v1973
  %1975 = vst [vmem:[#allocation3 + $0xb8] sm:$0xff] %v1974
  %v1976 = vld [vmem:[#allocation3 + $0xb0] sm:$0x88]
  %v1977 = vsel %vm108, 0, %v1976
  %1978 = vst [vmem:[#allocation3 + $0xb0] sm:$0x88] %v1977
  %v1979 = vld [vmem:[#allocation3 + $0xb8] sm:$0x88]
  %v1980 = vsel %vm108, 0, %v1979
  %1981 = vst [vmem:[#allocation3 + $0xb8] sm:$0x88] %v1980
  %v1982 = vld [vmem:[#allocation3] sm:$0xff]
  %v1983 = vld [vmem:[#allocation3 + $0x8] sm:$0xff]
  %v1984 = vld [vmem:[#allocation3 + $0x10] sm:$0xff]
  %v1985 = vld [vmem:[#allocation3 + $0x18] sm:$0xff]
  %v1986 = vld [vmem:[#allocation3 + $0x20] sm:$0xff]
  %v1987 = vld [vmem:[#allocation3 + $0x28] sm:$0xff]
  %v1988 = vld [vmem:[#allocation3 + $0x30] sm:$0xff]
  %v1989 = vld [vmem:[#allocation3 + $0x38] sm:$0xff]
  %v1990 = vld [vmem:[#allocation3 + $0x40] sm:$0xff]
  %v1991 = vld [vmem:[#allocation3 + $0x48] sm:$0xff]
  %v1992 = vld [vmem:[#allocation3 + $0x50] sm:$0xff]
  %v1993 = vld [vmem:[#allocation3 + $0x58] sm:$0xff]
  %v1994 = vld [vmem:[#allocation3 + $0x60] sm:$0xff]
  %v1995 = vld [vmem:[#allocation3 + $0x68] sm:$0xff]
  %v1996 = vld [vmem:[#allocation3 + $0x70] sm:$0xff]
  %v1997 = vld [vmem:[#allocation3 + $0x78] sm:$0xff]
  %v1998 = vld [vmem:[#allocation3 + $0x80] sm:$0xff]
  %v1999 = vld [vmem:[#allocation3 + $0x88] sm:$0xff]
  %v2000 = vld [vmem:[#allocation3 + $0x90] sm:$0xff]
  %v2001 = vld [vmem:[#allocation3 + $0x98] sm:$0xff]
  %v2002 = vld [vmem:[#allocation3 + $0xa0] sm:$0xff]
  %v2003 = vld [vmem:[#allocation3 + $0xa8] sm:$0xff]
  %v2004 = vld [vmem:[#allocation3 + $0xb0] sm:$0xff]
  %v2005 = vld [vmem:[#allocation3 + $0xb8] sm:$0xff]
  %v2006 = vld [vmem:[%s3] sm:$0xff]
  %v2007 = vld [vmem:[%s3 + $0x8] sm:$0xff]
  %v2008 = vld [vmem:[%s3 + $0x10] sm:$0xff]
  %v2009 = vld [vmem:[%s3 + $0x18] sm:$0xff]
  %v2010 = vld [vmem:[%s3 + $0x20] sm:$0xff]
  %v2011 = vld [vmem:[%s3 + $0x28] sm:$0xff]
  %v2012 = vld [vmem:[%s3 + $0x30] sm:$0xff]
  %v2013 = vld [vmem:[%s3 + $0x38] sm:$0xff]
  %v2014 = vld [vmem:[%s3 + $0x40] sm:$0xff]
  %v2015 = vld [vmem:[%s3 + $0x48] sm:$0xff]
  %v2016 = vld [vmem:[%s3 + $0x50] sm:$0xff]
  %v2017 = vld [vmem:[%s3 + $0x58] sm:$0xff]
  %v2018 = vld [vmem:[%s3 + $0x60] sm:$0xff]
  %v2019 = vld [vmem:[%s3 + $0x68] sm:$0xff]
  %v2020 = vld [vmem:[%s3 + $0x70] sm:$0xff]
  %v2021 = vld [vmem:[%s3 + $0x78] sm:$0xff]
  %v2022 = vld [vmem:[%s3 + $0x80] sm:$0xff]
  %v2023 = vld [vmem:[%s3 + $0x88] sm:$0xff]
  %v2024 = vld [vmem:[%s3 + $0x90] sm:$0xff]
  %v2025 = vld [vmem:[%s3 + $0x98] sm:$0xff]
  %v2026 = vld [vmem:[%s3 + $0xa0] sm:$0xff]
  %v2027 = vld [vmem:[%s3 + $0xa8] sm:$0xff]
  %v2028 = vld [vmem:[%s3 + $0xb0] sm:$0xff]
  %v2029 = vld [vmem:[%s3 + $0xb8] sm:$0xff]
  %v2030 = vld [vmem:[%s3 + $0xc0] sm:$0xff]
  %v2031 = vld [vmem:[%s3 + $0xc8] sm:$0xff]
  %v2032 = vld [vmem:[%s3 + $0xd0] sm:$0xff]
  %v2033 = vld [vmem:[%s3 + $0xd8] sm:$0xff]
  %v2034 = vld [vmem:[%s3 + $0xe0] sm:$0xff]
  %v2035 = vld [vmem:[%s3 + $0xe8] sm:$0xff]
  %v2036 = vld [vmem:[%s3 + $0xf0] sm:$0xff]
  %v2037 = vld [vmem:[%s3 + $0xf8] sm:$0xff]
  %v2038 = vld [vmem:[%s3 + $0x100] sm:$0xff]
  %v2039 = vld [vmem:[%s3 + $0x108] sm:$0xff]
  %v2040 = vld [vmem:[%s3 + $0x110] sm:$0xff]
  %v2041 = vld [vmem:[%s3 + $0x118] sm:$0xff]
  %v2042 = vld [vmem:[%s3 + $0x120] sm:$0xff]
  %v2043 = vld [vmem:[%s3 + $0x128] sm:$0xff]
  %v2044 = vld [vmem:[%s3 + $0x130] sm:$0xff]
  %v2045 = vld [vmem:[%s3 + $0x138] sm:$0xff]
  %v2046 = vld [vmem:[%s3 + $0x140] sm:$0xff]
  %v2047 = vld [vmem:[%s3 + $0x148] sm:$0xff]
  %v2048 = vld [vmem:[%s3 + $0x150] sm:$0xff]
  %v2049 = vld [vmem:[%s3 + $0x158] sm:$0xff]
  %v2050 = vld [vmem:[%s3 + $0x160] sm:$0xff]
  %v2051 = vld [vmem:[%s3 + $0x168] sm:$0xff]
  %v2052 = vld [vmem:[%s3 + $0x170] sm:$0xff]
  %v2053 = vld [vmem:[%s3 + $0x178] sm:$0xff]
  %v2054 = vld [vmem:[%s3 + $0x180] sm:$0xff]
  %v2055 = vld [vmem:[%s3 + $0x188] sm:$0xff]
  %v2056 = vld [vmem:[%s3 + $0x190] sm:$0xff]
  %v2057 = vld [vmem:[%s3 + $0x198] sm:$0xff]
  %v2058 = vld [vmem:[%s3 + $0x1a0] sm:$0xff]
  %v2059 = vld [vmem:[%s3 + $0x1a8] sm:$0xff]
  %v2060 = vld [vmem:[%s3 + $0x1b0] sm:$0xff]
  %v2061 = vld [vmem:[%s3 + $0x1b8] sm:$0xff]
  %v2062 = vld [vmem:[%s3 + $0x1c0] sm:$0xff]
  %v2063 = vld [vmem:[%s3 + $0x1c8] sm:$0xff]
  %v2064 = vld [vmem:[%s3 + $0x1d0] sm:$0xff]
  %v2065 = vld [vmem:[%s3 + $0x1d8] sm:$0xff]
  %v2066 = vld [vmem:[%s3 + $0x1e0] sm:$0xff]
  %v2067 = vld [vmem:[%s3 + $0x1e8] sm:$0xff]
  %v2068 = vld [vmem:[%s3 + $0x1f0] sm:$0xff]
  %v2069 = vld [vmem:[%s3 + $0x1f8] sm:$0xff]
  %v2070 = vld [vmem:[%s3 + $0x200] sm:$0xff]
  %v2071 = vld [vmem:[%s3 + $0x208] sm:$0xff]
  %v2072 = vld [vmem:[%s3 + $0x210] sm:$0xff]
  %v2073 = vld [vmem:[%s3 + $0x218] sm:$0xff]
  %v2074 = vld [vmem:[%s3 + $0x220] sm:$0xff]
  %v2075 = vld [vmem:[%s3 + $0x228] sm:$0xff]
  %v2076 = vld [vmem:[%s3 + $0x230] sm:$0xff]
  %v2077 = vld [vmem:[%s3 + $0x238] sm:$0xff]
  %v2078 = vld [vmem:[%s3 + $0x240] sm:$0xff]
  %v2079 = vld [vmem:[%s3 + $0x248] sm:$0xff]
  %v2080 = vld [vmem:[%s3 + $0x250] sm:$0xff]
  %v2081 = vld [vmem:[%s3 + $0x258] sm:$0xff]
  %v2082 = vld [vmem:[%s3 + $0x260] sm:$0xff]
  %v2083 = vld [vmem:[%s3 + $0x268] sm:$0xff]
  %v2084 = vld [vmem:[%s3 + $0x270] sm:$0xff]
  %v2085 = vld [vmem:[%s3 + $0x278] sm:$0xff]
  %v2086 = vld [vmem:[%s3 + $0x280] sm:$0xff]
  %v2087 = vld [vmem:[%s3 + $0x288] sm:$0xff]
  %v2088 = vld [vmem:[%s3 + $0x290] sm:$0xff]
  %v2089 = vld [vmem:[%s3 + $0x298] sm:$0xff]
  %v2090 = vld [vmem:[%s3 + $0x2a0] sm:$0xff]
  %v2091 = vld [vmem:[%s3 + $0x2a8] sm:$0xff]
  %v2092 = vld [vmem:[%s3 + $0x2b0] sm:$0xff]
  %v2093 = vld [vmem:[%s3 + $0x2b8] sm:$0xff]
  %v2094 = vld [vmem:[%s3 + $0x2c0] sm:$0xff]
  %v2095 = vld [vmem:[%s3 + $0x2c8] sm:$0xff]
  %v2096 = vld [vmem:[%s3 + $0x2d0] sm:$0xff]
  %v2097 = vld [vmem:[%s3 + $0x2d8] sm:$0xff]
  %v2098 = vld [vmem:[%s3 + $0x2e0] sm:$0xff]
  %v2099 = vld [vmem:[%s3 + $0x2e8] sm:$0xff]
  %v2100 = vld [vmem:[%s3 + $0x2f0] sm:$0xff]
  %v2101 = vld [vmem:[%s3 + $0x2f8] sm:$0xff]
  %v2102 = vld [vmem:[%s3 + $0x300] sm:$0xff]
  %v2103 = vld [vmem:[%s3 + $0x308] sm:$0xff]
  %v2104 = vld [vmem:[%s3 + $0x310] sm:$0xff]
  %v2105 = vld [vmem:[%s3 + $0x318] sm:$0xff]
  %v2106 = vld [vmem:[%s3 + $0x320] sm:$0xff]
  %v2107 = vld [vmem:[%s3 + $0x328] sm:$0xff]
  %v2108 = vld [vmem:[%s3 + $0x330] sm:$0xff]
  %v2109 = vld [vmem:[%s3 + $0x338] sm:$0xff]
  %v2110 = vld [vmem:[%s3 + $0x340] sm:$0xff]
  %v2111 = vld [vmem:[%s3 + $0x348] sm:$0xff]
  %v2112 = vld [vmem:[%s3 + $0x350] sm:$0xff]
  %v2113 = vld [vmem:[%s3 + $0x358] sm:$0xff]
  %v2114 = vld [vmem:[%s3 + $0x360] sm:$0xff]
  %v2115 = vld [vmem:[%s3 + $0x368] sm:$0xff]
  %v2116 = vld [vmem:[%s3 + $0x370] sm:$0xff]
  %v2117 = vld [vmem:[%s3 + $0x378] sm:$0xff]
  %v2118 = vld [vmem:[%s3 + $0x380] sm:$0xff]
  %v2119 = vld [vmem:[%s3 + $0x388] sm:$0xff]
  %v2120 = vld [vmem:[%s3 + $0x390] sm:$0xff]
  %v2121 = vld [vmem:[%s3 + $0x398] sm:$0xff]
  %v2122 = vld [vmem:[%s3 + $0x3a0] sm:$0xff]
  %v2123 = vld [vmem:[%s3 + $0x3a8] sm:$0xff]
  %v2124 = vld [vmem:[%s3 + $0x3b0] sm:$0xff]
  %v2125 = vld [vmem:[%s3 + $0x3b8] sm:$0xff]
  %v2126 = vld [vmem:[%s3 + $0x3c0] sm:$0xff]
  %v2127 = vld [vmem:[%s3 + $0x3c8] sm:$0xff]
  %v2128 = vld [vmem:[%s3 + $0x3d0] sm:$0xff]
  %v2129 = vld [vmem:[%s3 + $0x3d8] sm:$0xff]
  %v2130 = vld [vmem:[%s3 + $0x3e0] sm:$0xff]
  %v2131 = vld [vmem:[%s3 + $0x3e8] sm:$0xff]
  %v2132 = vld [vmem:[%s3 + $0x3f0] sm:$0xff]
  %v2133 = vld [vmem:[%s3 + $0x3f8] sm:$0xff]
  %v2134 = vld [vmem:[%s3 + $0x400] sm:$0xff]
  %v2135 = vld [vmem:[%s3 + $0x408] sm:$0xff]
  %v2136 = vld [vmem:[%s3 + $0x410] sm:$0xff]
  %v2137 = vld [vmem:[%s3 + $0x418] sm:$0xff]
  %v2138 = vld [vmem:[%s3 + $0x420] sm:$0xff]
  %v2139 = vld [vmem:[%s3 + $0x428] sm:$0xff]
  %v2140 = vld [vmem:[%s3 + $0x430] sm:$0xff]
  %v2141 = vld [vmem:[%s3 + $0x438] sm:$0xff]
  %v2142 = vld [vmem:[%s3 + $0x440] sm:$0xff]
  %v2143 = vld [vmem:[%s3 + $0x448] sm:$0xff]
  %v2144 = vld [vmem:[%s3 + $0x450] sm:$0xff]
  %v2145 = vld [vmem:[%s3 + $0x458] sm:$0xff]
  %v2146 = vld [vmem:[%s3 + $0x460] sm:$0xff]
  %v2147 = vld [vmem:[%s3 + $0x468] sm:$0xff]
  %v2148 = vld [vmem:[%s3 + $0x470] sm:$0xff]
  %v2149 = vld [vmem:[%s3 + $0x478] sm:$0xff]
  %v2150 = vld [vmem:[%s3 + $0x480] sm:$0xff]
  %v2151 = vld [vmem:[%s3 + $0x488] sm:$0xff]
  %v2152 = vld [vmem:[%s3 + $0x490] sm:$0xff]
  %v2153 = vld [vmem:[%s3 + $0x498] sm:$0xff]
  %v2154 = vld [vmem:[%s3 + $0x4a0] sm:$0xff]
  %v2155 = vld [vmem:[%s3 + $0x4a8] sm:$0xff]
  %v2156 = vld [vmem:[%s3 + $0x4b0] sm:$0xff]
  %v2157 = vld [vmem:[%s3 + $0x4b8] sm:$0xff]
  %v2158 = vld [vmem:[%s3 + $0x4c0] sm:$0xff]
  %v2159 = vld [vmem:[%s3 + $0x4c8] sm:$0xff]
  %v2160 = vld [vmem:[%s3 + $0x4d0] sm:$0xff]
  %v2161 = vld [vmem:[%s3 + $0x4d8] sm:$0xff]
  %v2162 = vld [vmem:[%s3 + $0x4e0] sm:$0xff]
  %v2163 = vld [vmem:[%s3 + $0x4e8] sm:$0xff]
  %v2164 = vld [vmem:[%s3 + $0x4f0] sm:$0xff]
  %v2165 = vld [vmem:[%s3 + $0x4f8] sm:$0xff]
  %v2166 = vld [vmem:[%s3 + $0x500] sm:$0xff]
  %v2167 = vld [vmem:[%s3 + $0x508] sm:$0xff]
  %v2168 = vld [vmem:[%s3 + $0x510] sm:$0xff]
  %v2169 = vld [vmem:[%s3 + $0x518] sm:$0xff]
  %v2170 = vld [vmem:[%s3 + $0x520] sm:$0xff]
  %v2171 = vld [vmem:[%s3 + $0x528] sm:$0xff]
  %v2172 = vld [vmem:[%s3 + $0x530] sm:$0xff]
  %v2173 = vld [vmem:[%s3 + $0x538] sm:$0xff]
  %v2174 = vld [vmem:[%s3 + $0x540] sm:$0xff]
  %v2175 = vld [vmem:[%s3 + $0x548] sm:$0xff]
  %v2176 = vld [vmem:[%s3 + $0x550] sm:$0xff]
  %v2177 = vld [vmem:[%s3 + $0x558] sm:$0xff]
  %v2178 = vld [vmem:[%s3 + $0x560] sm:$0xff]
  %v2179 = vld [vmem:[%s3 + $0x568] sm:$0xff]
  %v2180 = vld [vmem:[%s3 + $0x570] sm:$0xff]
  %v2181 = vld [vmem:[%s3 + $0x578] sm:$0xff]
  %v2182 = vld [vmem:[%s3 + $0x580] sm:$0xff]
  %v2183 = vld [vmem:[%s3 + $0x588] sm:$0xff]
  %v2184 = vld [vmem:[%s3 + $0x590] sm:$0xff]
  %v2185 = vld [vmem:[%s3 + $0x598] sm:$0xff]
  %v2186 = vld [vmem:[%s3 + $0x5a0] sm:$0xff]
  %v2187 = vld [vmem:[%s3 + $0x5a8] sm:$0xff]
  %v2188 = vld [vmem:[%s3 + $0x5b0] sm:$0xff]
  %v2189 = vld [vmem:[%s3 + $0x5b8] sm:$0xff]
  %v2190 = vld [vmem:[%s3 + $0x5c0] sm:$0xff]
  %v2191 = vld [vmem:[%s3 + $0x5c8] sm:$0xff]
  %v2192 = vld [vmem:[%s3 + $0x5d0] sm:$0xff]
  %v2193 = vld [vmem:[%s3 + $0x5d8] sm:$0xff]
  %v2194 = vld [vmem:[%s3 + $0x5e0] sm:$0xff]
  %v2195 = vld [vmem:[%s3 + $0x5e8] sm:$0xff]
  %v2196 = vld [vmem:[%s3 + $0x5f0] sm:$0xff]
  %v2197 = vld [vmem:[%s3 + $0x5f8] sm:$0xff]
  %v2198 = vld [vmem:[%s3 + $0x600] sm:$0xff]
  %v2199 = vld [vmem:[%s3 + $0x608] sm:$0xff]
  %v2200 = vld [vmem:[%s3 + $0x610] sm:$0xff]
  %v2201 = vld [vmem:[%s3 + $0x618] sm:$0xff]
  %v2202 = vld [vmem:[%s3 + $0x620] sm:$0xff]
  %v2203 = vld [vmem:[%s3 + $0x628] sm:$0xff]
  %v2204 = vld [vmem:[%s3 + $0x630] sm:$0xff]
  %v2205 = vld [vmem:[%s3 + $0x638] sm:$0xff]
  %v2206 = vld [vmem:[%s3 + $0x640] sm:$0xff]
  %v2207 = vld [vmem:[%s3 + $0x648] sm:$0xff]
  %v2208 = vld [vmem:[%s3 + $0x650] sm:$0xff]
  %v2209 = vld [vmem:[%s3 + $0x658] sm:$0xff]
  %v2210 = vld [vmem:[%s3 + $0x660] sm:$0xff]
  %v2211 = vld [vmem:[%s3 + $0x668] sm:$0xff]
  %v2212 = vld [vmem:[%s3 + $0x670] sm:$0xff]
  %v2213 = vld [vmem:[%s3 + $0x678] sm:$0xff]
  %v2214 = vld [vmem:[%s3 + $0x680] sm:$0xff]
  %v2215 = vld [vmem:[%s3 + $0x688] sm:$0xff]
  %v2216 = vld [vmem:[%s3 + $0x690] sm:$0xff]
  %v2217 = vld [vmem:[%s3 + $0x698] sm:$0xff]
  %v2218 = vld [vmem:[%s3 + $0x6a0] sm:$0xff]
  %v2219 = vld [vmem:[%s3 + $0x6a8] sm:$0xff]
  %v2220 = vld [vmem:[%s3 + $0x6b0] sm:$0xff]
  %v2221 = vld [vmem:[%s3 + $0x6b8] sm:$0xff]
  %v2222 = vld [vmem:[%s3 + $0x6c0] sm:$0xff]
  %v2223 = vld [vmem:[%s3 + $0x6c8] sm:$0xff]
  %v2224 = vld [vmem:[%s3 + $0x6d0] sm:$0xff]
  %v2225 = vld [vmem:[%s3 + $0x6d8] sm:$0xff]
  %v2226 = vld [vmem:[%s3 + $0x6e0] sm:$0xff]
  %v2227 = vld [vmem:[%s3 + $0x6e8] sm:$0xff]
  %v2228 = vld [vmem:[%s3 + $0x6f0] sm:$0xff]
  %v2229 = vld [vmem:[%s3 + $0x6f8] sm:$0xff]
  %v2230 = vld [vmem:[%s3 + $0x700] sm:$0xff]
  %v2231 = vld [vmem:[%s3 + $0x708] sm:$0xff]
  %v2232 = vld [vmem:[%s3 + $0x710] sm:$0xff]
  %v2233 = vld [vmem:[%s3 + $0x718] sm:$0xff]
  %v2234 = vld [vmem:[%s3 + $0x720] sm:$0xff]
  %v2235 = vld [vmem:[%s3 + $0x728] sm:$0xff]
  %v2236 = vld [vmem:[%s3 + $0x730] sm:$0xff]
  %v2237 = vld [vmem:[%s3 + $0x738] sm:$0xff]
  %v2238 = vld [vmem:[%s3 + $0x740] sm:$0xff]
  %v2239 = vld [vmem:[%s3 + $0x748] sm:$0xff]
  %v2240 = vld [vmem:[%s3 + $0x750] sm:$0xff]
  %v2241 = vld [vmem:[%s3 + $0x758] sm:$0xff]
  %v2242 = vld [vmem:[%s3 + $0x760] sm:$0xff]
  %v2243 = vld [vmem:[%s3 + $0x768] sm:$0xff]
  %v2244 = vld [vmem:[%s3 + $0x770] sm:$0xff]
  %v2245 = vld [vmem:[%s3 + $0x778] sm:$0xff]
  %v2246 = vld [vmem:[%s3 + $0x780] sm:$0xff]
  %v2247 = vld [vmem:[%s3 + $0x788] sm:$0xff]
  %v2248 = vld [vmem:[%s3 + $0x790] sm:$0xff]
  %v2249 = vld [vmem:[%s3 + $0x798] sm:$0xff]
  %v2250 = vld [vmem:[%s3 + $0x7a0] sm:$0xff]
  %v2251 = vld [vmem:[%s3 + $0x7a8] sm:$0xff]
  %v2252 = vld [vmem:[%s3 + $0x7b0] sm:$0xff]
  %v2253 = vld [vmem:[%s3 + $0x7b8] sm:$0xff]
  %v2254 = vld [vmem:[%s3 + $0x7c0] sm:$0xff]
  %v2255 = vld [vmem:[%s3 + $0x7c8] sm:$0xff]
  %v2256 = vld [vmem:[%s3 + $0x7d0] sm:$0xff]
  %v2257 = vld [vmem:[%s3 + $0x7d8] sm:$0xff]
  %v2258 = vld [vmem:[%s3 + $0x7e0] sm:$0xff]
  %v2259 = vld [vmem:[%s3 + $0x7e8] sm:$0xff]
  %v2260 = vld [vmem:[%s3 + $0x7f0] sm:$0xff]
  %v2261 = vld [vmem:[%s3 + $0x7f8] sm:$0xff]
  %v2262 = vld [vmem:[%s3 + $0x800] sm:$0xff]
  %v2263 = vld [vmem:[%s3 + $0x808] sm:$0xff]
  %v2264 = vld [vmem:[%s3 + $0x810] sm:$0xff]
  %v2265 = vld [vmem:[%s3 + $0x818] sm:$0xff]
  %v2266 = vld [vmem:[%s3 + $0x820] sm:$0xff]
  %v2267 = vld [vmem:[%s3 + $0x828] sm:$0xff]
  %v2268 = vld [vmem:[%s3 + $0x830] sm:$0xff]
  %v2269 = vld [vmem:[%s3 + $0x838] sm:$0xff]
  %v2270 = vld [vmem:[%s3 + $0x840] sm:$0xff]
  %v2271 = vld [vmem:[%s3 + $0x848] sm:$0xff]
  %v2272 = vld [vmem:[%s3 + $0x850] sm:$0xff]
  %v2273 = vld [vmem:[%s3 + $0x858] sm:$0xff]
  %v2274 = vld [vmem:[%s3 + $0x860] sm:$0xff]
  %v2275 = vld [vmem:[%s3 + $0x868] sm:$0xff]
  %v2276 = vld [vmem:[%s3 + $0x870] sm:$0xff]
  %v2277 = vld [vmem:[%s3 + $0x878] sm:$0xff]
  %v2278 = vld [vmem:[%s3 + $0x880] sm:$0xff]
  %v2279 = vld [vmem:[%s3 + $0x888] sm:$0xff]
  %v2280 = vld [vmem:[%s3 + $0x890] sm:$0xff]
  %v2281 = vld [vmem:[%s3 + $0x898] sm:$0xff]
  %v2282 = vld [vmem:[%s3 + $0x8a0] sm:$0xff]
  %v2283 = vld [vmem:[%s3 + $0x8a8] sm:$0xff]
  %v2284 = vld [vmem:[%s3 + $0x8b0] sm:$0xff]
  %v2285 = vld [vmem:[%s3 + $0x8b8] sm:$0xff]
  %v2286 = vld [vmem:[%s3 + $0x8c0] sm:$0xff]
  %v2287 = vld [vmem:[%s3 + $0x8c8] sm:$0xff]
  %v2288 = vld [vmem:[%s3 + $0x8d0] sm:$0xff]
  %v2289 = vld [vmem:[%s3 + $0x8d8] sm:$0xff]
  %v2290 = vld [vmem:[%s3 + $0x8e0] sm:$0xff]
  %v2291 = vld [vmem:[%s3 + $0x8e8] sm:$0xff]
  %v2292 = vld [vmem:[%s3 + $0x8f0] sm:$0xff]
  %v2293 = vld [vmem:[%s3 + $0x8f8] sm:$0xff]
  %v2294 = vld [vmem:[%s3 + $0x900] sm:$0xff]
  %v2295 = vld [vmem:[%s3 + $0x908] sm:$0xff]
  %v2296 = vld [vmem:[%s3 + $0x910] sm:$0xff]
  %v2297 = vld [vmem:[%s3 + $0x918] sm:$0xff]
  %v2298 = vld [vmem:[%s3 + $0x920] sm:$0xff]
  %v2299 = vld [vmem:[%s3 + $0x928] sm:$0xff]
  %v2300 = vld [vmem:[%s3 + $0x930] sm:$0xff]
  %v2301 = vld [vmem:[%s3 + $0x938] sm:$0xff]
  %v2302 = vld [vmem:[%s3 + $0x940] sm:$0xff]
  %v2303 = vld [vmem:[%s3 + $0x948] sm:$0xff]
  %v2304 = vld [vmem:[%s3 + $0x950] sm:$0xff]
  %v2305 = vld [vmem:[%s3 + $0x958] sm:$0xff]
  %v2306 = vld [vmem:[%s3 + $0x960] sm:$0xff]
  %v2307 = vld [vmem:[%s3 + $0x968] sm:$0xff]
  %v2308 = vld [vmem:[%s3 + $0x970] sm:$0xff]
  %v2309 = vld [vmem:[%s3 + $0x978] sm:$0xff]
  %v2310 = vld [vmem:[%s3 + $0x980] sm:$0xff]
  %v2311 = vld [vmem:[%s3 + $0x988] sm:$0xff]
  %v2312 = vld [vmem:[%s3 + $0x990] sm:$0xff]
  %v2313 = vld [vmem:[%s3 + $0x998] sm:$0xff]
  %v2314 = vld [vmem:[%s3 + $0x9a0] sm:$0xff]
  %v2315 = vld [vmem:[%s3 + $0x9a8] sm:$0xff]
  %v2316 = vld [vmem:[%s3 + $0x9b0] sm:$0xff]
  %v2317 = vld [vmem:[%s3 + $0x9b8] sm:$0xff]
  %v2318 = vld [vmem:[%s3 + $0x9c0] sm:$0xff]
  %v2319 = vld [vmem:[%s3 + $0x9c8] sm:$0xff]
  %v2320 = vld [vmem:[%s3 + $0x9d0] sm:$0xff]
  %v2321 = vld [vmem:[%s3 + $0x9d8] sm:$0xff]
  %v2322 = vld [vmem:[%s3 + $0x9e0] sm:$0xff]
  %v2323 = vld [vmem:[%s3 + $0x9e8] sm:$0xff]
  %v2324 = vld [vmem:[%s3 + $0x9f0] sm:$0xff]
  %v2325 = vld [vmem:[%s3 + $0x9f8] sm:$0xff]
  %v2326 = vld [vmem:[%s3 + $0xa00] sm:$0xff]
  %v2327 = vld [vmem:[%s3 + $0xa08] sm:$0xff]
  %v2328 = vld [vmem:[%s3 + $0xa10] sm:$0xff]
  %v2329 = vld [vmem:[%s3 + $0xa18] sm:$0xff]
  %v2330 = vld [vmem:[%s3 + $0xa20] sm:$0xff]
  %v2331 = vld [vmem:[%s3 + $0xa28] sm:$0xff]
  %v2332 = vld [vmem:[%s3 + $0xa30] sm:$0xff]
  %v2333 = vld [vmem:[%s3 + $0xa38] sm:$0xff]
  %v2334 = vld [vmem:[%s3 + $0xa40] sm:$0xff]
  %v2335 = vld [vmem:[%s3 + $0xa48] sm:$0xff]
  %v2336 = vld [vmem:[%s3 + $0xa50] sm:$0xff]
  %v2337 = vld [vmem:[%s3 + $0xa58] sm:$0xff]
  %v2338 = vld [vmem:[%s3 + $0xa60] sm:$0xff]
  %v2339 = vld [vmem:[%s3 + $0xa68] sm:$0xff]
  %v2340 = vld [vmem:[%s3 + $0xa70] sm:$0xff]
  %v2341 = vld [vmem:[%s3 + $0xa78] sm:$0xff]
  %v2342 = vld [vmem:[%s3 + $0xa80] sm:$0xff]
  %v2343 = vld [vmem:[%s3 + $0xa88] sm:$0xff]
  %v2344 = vld [vmem:[%s3 + $0xa90] sm:$0xff]
  %v2345 = vld [vmem:[%s3 + $0xa98] sm:$0xff]
  %v2346 = vld [vmem:[%s3 + $0xaa0] sm:$0xff]
  %v2347 = vld [vmem:[%s3 + $0xaa8] sm:$0xff]
  %v2348 = vld [vmem:[%s3 + $0xab0] sm:$0xff]
  %v2349 = vld [vmem:[%s3 + $0xab8] sm:$0xff]
  %v2350 = vld [vmem:[%s3 + $0xac0] sm:$0xff]
  %v2351 = vld [vmem:[%s3 + $0xac8] sm:$0xff]
  %v2352 = vld [vmem:[%s3 + $0xad0] sm:$0xff]
  %v2353 = vld [vmem:[%s3 + $0xad8] sm:$0xff]
  %v2354 = vld [vmem:[%s3 + $0xae0] sm:$0xff]
  %v2355 = vld [vmem:[%s3 + $0xae8] sm:$0xff]
  %v2356 = vld [vmem:[%s3 + $0xaf0] sm:$0xff]
  %v2357 = vld [vmem:[%s3 + $0xaf8] sm:$0xff]
  %v2358 = vld [vmem:[%s3 + $0xb00] sm:$0xff]
  %v2359 = vld [vmem:[%s3 + $0xb08] sm:$0xff]
  %v2360 = vld [vmem:[%s3 + $0xb10] sm:$0xff]
  %v2361 = vld [vmem:[%s3 + $0xb18] sm:$0xff]
  %v2362 = vld [vmem:[%s3 + $0xb20] sm:$0xff]
  %v2363 = vld [vmem:[%s3 + $0xb28] sm:$0xff]
  %v2364 = vld [vmem:[%s3 + $0xb30] sm:$0xff]
  %v2365 = vld [vmem:[%s3 + $0xb38] sm:$0xff]
  %v2366 = vld [vmem:[%s3 + $0xb40] sm:$0xff]
  %v2367 = vld [vmem:[%s3 + $0xb48] sm:$0xff]
  %v2368 = vld [vmem:[%s3 + $0xb50] sm:$0xff]
  %v2369 = vld [vmem:[%s3 + $0xb58] sm:$0xff]
  %v2370 = vld [vmem:[%s3 + $0xb60] sm:$0xff]
  %v2371 = vld [vmem:[%s3 + $0xb68] sm:$0xff]
  %v2372 = vld [vmem:[%s3 + $0xb70] sm:$0xff]
  %v2373 = vld [vmem:[%s3 + $0xb78] sm:$0xff]
  %v2374 = vld [vmem:[%s3 + $0xb80] sm:$0xff]
  %v2375 = vld [vmem:[%s3 + $0xb88] sm:$0xff]
  %v2376 = vld [vmem:[%s3 + $0xb90] sm:$0xff]
  %v2377 = vld [vmem:[%s3 + $0xb98] sm:$0xff]
  %v2378 = vld [vmem:[%s3 + $0xba0] sm:$0xff]
  %v2379 = vld [vmem:[%s3 + $0xba8] sm:$0xff]
  %v2380 = vld [vmem:[%s3 + $0xbb0] sm:$0xff]
  %v2381 = vld [vmem:[%s3 + $0xbb8] sm:$0xff]
  %v2382 = vld [vmem:[%s3 + $0xbc0] sm:$0xff]
  %v2383 = vld [vmem:[%s3 + $0xbc8] sm:$0xff]
  %v2384 = vld [vmem:[%s3 + $0xbd0] sm:$0xff]
  %v2385 = vld [vmem:[%s3 + $0xbd8] sm:$0xff]
  %v2386 = vld [vmem:[%s3 + $0xbe0] sm:$0xff]
  %v2387 = vld [vmem:[%s3 + $0xbe8] sm:$0xff]
  %v2388 = vld [vmem:[%s3 + $0xbf0] sm:$0xff]
  %v2389 = vld [vmem:[%s3 + $0xbf8] sm:$0xff]
  %v2390 = vld [vmem:[%s4] sm:$0xf]
  %v2392 = vlaneseq
  %v2393 = vshrl.u32 %v2392, 7
  %v2394 = vsub.s32 0, %v2393
  %v2395 = vrot.slane %v2390, %v2394
  %v2396 = vlaneseq
  %v2397 = vshrl.u32 %v2396, 7
  %v2398 = vsub.s32 1, %v2397
  %v2399 = vrot.slane %v2390, %v2398
  %v2400 = vlaneseq
  %v2401 = vshrl.u32 %v2400, 7
  %v2402 = vsub.s32 2, %v2401
  %v2403 = vrot.slane %v2390, %v2402
  %v2404 = vlaneseq
  %v2405 = vshrl.u32 %v2404, 7
  %v2406 = vsub.s32 3, %v2405
  %v2407 = vrot.slane %v2390, %v2406
  %v2436 = vunpack.c.l.b16 %v1982
  %v2437 = vunpack.c.h.b16 %v1982
  %v2438 = vunpack.c.l.b16 %v1983
  %v2439 = vunpack.c.h.b16 %v1983
  %v2440 = vunpack.c.l.b16 %v1984
  %v2441 = vunpack.c.h.b16 %v1984
  %v2442 = vunpack.c.l.b16 %v1985
  %v2443 = vunpack.c.h.b16 %v1985
  %v2444 = vunpack.c.l.b16 %v1986
  %v2445 = vunpack.c.h.b16 %v1986
  %v2446 = vunpack.c.l.b16 %v1987
  %v2447 = vunpack.c.h.b16 %v1987
  %v2448 = vunpack.c.l.b16 %v1988
  %v2449 = vunpack.c.h.b16 %v1988
  %v2450 = vunpack.c.l.b16 %v1989
  %v2451 = vunpack.c.h.b16 %v1989
  %v2452 = vunpack.c.l.b16 %v1990
  %v2453 = vunpack.c.h.b16 %v1990
  %v2454 = vunpack.c.l.b16 %v1991
  %v2455 = vunpack.c.h.b16 %v1991
  %v2456 = vunpack.c.l.b16 %v1992
  %v2457 = vunpack.c.h.b16 %v1992
  %v2458 = vunpack.c.l.b16 %v1993
  %v2459 = vunpack.c.h.b16 %v1993
  %v2460 = vunpack.c.l.b16 %v1994
  %v2461 = vunpack.c.h.b16 %v1994
  %v2462 = vunpack.c.l.b16 %v1995
  %v2463 = vunpack.c.h.b16 %v1995
  %v2464 = vunpack.c.l.b16 %v1996
  %v2465 = vunpack.c.h.b16 %v1996
  %v2466 = vunpack.c.l.b16 %v1997
  %v2467 = vunpack.c.h.b16 %v1997
  %v2468 = vunpack.c.l.b16 %v1998
  %v2469 = vunpack.c.h.b16 %v1998
  %v2470 = vunpack.c.l.b16 %v1999
  %v2471 = vunpack.c.h.b16 %v1999
  %v2472 = vunpack.c.l.b16 %v2000
  %v2473 = vunpack.c.h.b16 %v2000
  %v2474 = vunpack.c.l.b16 %v2001
  %v2475 = vunpack.c.h.b16 %v2001
  %v2476 = vunpack.c.l.b16 %v2002
  %v2477 = vunpack.c.h.b16 %v2002
  %v2478 = vunpack.c.l.b16 %v2003
  %v2479 = vunpack.c.h.b16 %v2003
  %v2480 = vunpack.c.l.b16 %v2004
  %v2481 = vunpack.c.h.b16 %v2004
  %v2482 = vunpack.c.l.b16 %v2005
  %v2483 = vunpack.c.h.b16 %v2005
  %v2484 = vpack.c.b16 %v2448, %v2436
  %v2485 = vpack.c.b16 %v2449, %v2437
  %v2486 = vpack.c.b16 %v2450, %v2438
  %v2487 = vpack.c.b16 %v2451, %v2439
  %v2488 = vpack.c.b16 %v2452, %v2440
  %v2489 = vpack.c.b16 %v2453, %v2441
  %v2490 = vpack.c.b16 %v2454, %v2442
  %v2491 = vpack.c.b16 %v2455, %v2443
  %v2492 = vpack.c.b16 %v2456, %v2444
  %v2493 = vpack.c.b16 %v2457, %v2445
  %v2494 = vpack.c.b16 %v2458, %v2446
  %v2495 = vpack.c.b16 %v2459, %v2447
  %v2496 = vpack.c.b16 %v2472, %v2460
  %v2497 = vpack.c.b16 %v2473, %v2461
  %v2498 = vpack.c.b16 %v2474, %v2462
  %v2499 = vpack.c.b16 %v2475, %v2463
  %v2500 = vpack.c.b16 %v2476, %v2464
  %v2501 = vpack.c.b16 %v2477, %v2465
  %v2502 = vpack.c.b16 %v2478, %v2466
  %v2503 = vpack.c.b16 %v2479, %v2467
  %v2504 = vpack.c.b16 %v2480, %v2468
  %v2505 = vpack.c.b16 %v2481, %v2469
  %v2506 = vpack.c.b16 %v2482, %v2470
  %v2507 = vpack.c.b16 %v2483, %v2471
  %v2916 = vunpack.c.l.b16 %v2006
  %v2917 = vunpack.c.h.b16 %v2006
  %v2918 = vunpack.c.l.b16 %v2007
  %v2919 = vunpack.c.h.b16 %v2007
  %v2920 = vunpack.c.l.b16 %v2008
  %v2921 = vunpack.c.h.b16 %v2008
  %v2922 = vunpack.c.l.b16 %v2009
  %v2923 = vunpack.c.h.b16 %v2009
  %v2924 = vunpack.c.l.b16 %v2010
  %v2925 = vunpack.c.h.b16 %v2010
  %v2926 = vunpack.c.l.b16 %v2011
  %v2927 = vunpack.c.h.b16 %v2011
  %v2928 = vunpack.c.l.b16 %v2012
  %v2929 = vunpack.c.h.b16 %v2012
  %v2930 = vunpack.c.l.b16 %v2013
  %v2931 = vunpack.c.h.b16 %v2013
  %v2932 = vunpack.c.l.b16 %v2014
  %v2933 = vunpack.c.h.b16 %v2014
  %v2934 = vunpack.c.l.b16 %v2015
  %v2935 = vunpack.c.h.b16 %v2015
  %v2936 = vunpack.c.l.b16 %v2016
  %v2937 = vunpack.c.h.b16 %v2016
  %v2938 = vunpack.c.l.b16 %v2017
  %v2939 = vunpack.c.h.b16 %v2017
  %v2940 = vunpack.c.l.b16 %v2018
  %v2941 = vunpack.c.h.b16 %v2018
  %v2942 = vunpack.c.l.b16 %v2019
  %v2943 = vunpack.c.h.b16 %v2019
  %v2944 = vunpack.c.l.b16 %v2020
  %v2945 = vunpack.c.h.b16 %v2020
  %v2946 = vunpack.c.l.b16 %v2021
  %v2947 = vunpack.c.h.b16 %v2021
  %v2948 = vunpack.c.l.b16 %v2022
  %v2949 = vunpack.c.h.b16 %v2022
  %v2950 = vunpack.c.l.b16 %v2023
  %v2951 = vunpack.c.h.b16 %v2023
  %v2952 = vunpack.c.l.b16 %v2024
  %v2953 = vunpack.c.h.b16 %v2024
  %v2954 = vunpack.c.l.b16 %v2025
  %v2955 = vunpack.c.h.b16 %v2025
  %v2956 = vunpack.c.l.b16 %v2026
  %v2957 = vunpack.c.h.b16 %v2026
  %v2958 = vunpack.c.l.b16 %v2027
  %v2959 = vunpack.c.h.b16 %v2027
  %v2960 = vunpack.c.l.b16 %v2028
  %v2961 = vunpack.c.h.b16 %v2028
  %v2962 = vunpack.c.l.b16 %v2029
  %v2963 = vunpack.c.h.b16 %v2029
  %v2964 = vunpack.c.l.b16 %v2030
  %v2965 = vunpack.c.h.b16 %v2030
  %v2966 = vunpack.c.l.b16 %v2031
  %v2967 = vunpack.c.h.b16 %v2031
  %v2968 = vunpack.c.l.b16 %v2032
  %v2969 = vunpack.c.h.b16 %v2032
  %v2970 = vunpack.c.l.b16 %v2033
  %v2971 = vunpack.c.h.b16 %v2033
  %v2972 = vunpack.c.l.b16 %v2034
  %v2973 = vunpack.c.h.b16 %v2034
  %v2974 = vunpack.c.l.b16 %v2035
  %v2975 = vunpack.c.h.b16 %v2035
  %v2976 = vunpack.c.l.b16 %v2036
  %v2977 = vunpack.c.h.b16 %v2036
  %v2978 = vunpack.c.l.b16 %v2037
  %v2979 = vunpack.c.h.b16 %v2037
  %v2980 = vunpack.c.l.b16 %v2038
  %v2981 = vunpack.c.h.b16 %v2038
  %v2982 = vunpack.c.l.b16 %v2039
  %v2983 = vunpack.c.h.b16 %v2039
  %v2984 = vunpack.c.l.b16 %v2040
  %v2985 = vunpack.c.h.b16 %v2040
  %v2986 = vunpack.c.l.b16 %v2041
  %v2987 = vunpack.c.h.b16 %v2041
  %v2988 = vunpack.c.l.b16 %v2042
  %v2989 = vunpack.c.h.b16 %v2042
  %v2990 = vunpack.c.l.b16 %v2043
  %v2991 = vunpack.c.h.b16 %v2043
  %v2992 = vunpack.c.l.b16 %v2044
  %v2993 = vunpack.c.h.b16 %v2044
  %v2994 = vunpack.c.l.b16 %v2045
  %v2995 = vunpack.c.h.b16 %v2045
  %v2996 = vunpack.c.l.b16 %v2046
  %v2997 = vunpack.c.h.b16 %v2046
  %v2998 = vunpack.c.l.b16 %v2047
  %v2999 = vunpack.c.h.b16 %v2047
  %v3000 = vunpack.c.l.b16 %v2048
  %v3001 = vunpack.c.h.b16 %v2048
  %v3002 = vunpack.c.l.b16 %v2049
  %v3003 = vunpack.c.h.b16 %v2049
  %v3004 = vunpack.c.l.b16 %v2050
  %v3005 = vunpack.c.h.b16 %v2050
  %v3006 = vunpack.c.l.b16 %v2051
  %v3007 = vunpack.c.h.b16 %v2051
  %v3008 = vunpack.c.l.b16 %v2052
  %v3009 = vunpack.c.h.b16 %v2052
  %v3010 = vunpack.c.l.b16 %v2053
  %v3011 = vunpack.c.h.b16 %v2053
  %v3012 = vunpack.c.l.b16 %v2054
  %v3013 = vunpack.c.h.b16 %v2054
  %v3014 = vunpack.c.l.b16 %v2055
  %v3015 = vunpack.c.h.b16 %v2055
  %v3016 = vunpack.c.l.b16 %v2056
  %v3017 = vunpack.c.h.b16 %v2056
  %v3018 = vunpack.c.l.b16 %v2057
  %v3019 = vunpack.c.h.b16 %v2057
  %v3020 = vunpack.c.l.b16 %v2058
  %v3021 = vunpack.c.h.b16 %v2058
  %v3022 = vunpack.c.l.b16 %v2059
  %v3023 = vunpack.c.h.b16 %v2059
  %v3024 = vunpack.c.l.b16 %v2060
  %v3025 = vunpack.c.h.b16 %v2060
  %v3026 = vunpack.c.l.b16 %v2061
  %v3027 = vunpack.c.h.b16 %v2061
  %v3028 = vunpack.c.l.b16 %v2062
  %v3029 = vunpack.c.h.b16 %v2062
  %v3030 = vunpack.c.l.b16 %v2063
  %v3031 = vunpack.c.h.b16 %v2063
  %v3032 = vunpack.c.l.b16 %v2064
  %v3033 = vunpack.c.h.b16 %v2064
  %v3034 = vunpack.c.l.b16 %v2065
  %v3035 = vunpack.c.h.b16 %v2065
  %v3036 = vunpack.c.l.b16 %v2066
  %v3037 = vunpack.c.h.b16 %v2066
  %v3038 = vunpack.c.l.b16 %v2067
  %v3039 = vunpack.c.h.b16 %v2067
  %v3040 = vunpack.c.l.b16 %v2068
  %v3041 = vunpack.c.h.b16 %v2068
  %v3042 = vunpack.c.l.b16 %v2069
  %v3043 = vunpack.c.h.b16 %v2069
  %v3044 = vunpack.c.l.b16 %v2070
  %v3045 = vunpack.c.h.b16 %v2070
  %v3046 = vunpack.c.l.b16 %v2071
  %v3047 = vunpack.c.h.b16 %v2071
  %v3048 = vunpack.c.l.b16 %v2072
  %v3049 = vunpack.c.h.b16 %v2072
  %v3050 = vunpack.c.l.b16 %v2073
  %v3051 = vunpack.c.h.b16 %v2073
  %v3052 = vunpack.c.l.b16 %v2074
  %v3053 = vunpack.c.h.b16 %v2074
  %v3054 = vunpack.c.l.b16 %v2075
  %v3055 = vunpack.c.h.b16 %v2075
  %v3056 = vunpack.c.l.b16 %v2076
  %v3057 = vunpack.c.h.b16 %v2076
  %v3058 = vunpack.c.l.b16 %v2077
  %v3059 = vunpack.c.h.b16 %v2077
  %v3060 = vunpack.c.l.b16 %v2078
  %v3061 = vunpack.c.h.b16 %v2078
  %v3062 = vunpack.c.l.b16 %v2079
  %v3063 = vunpack.c.h.b16 %v2079
  %v3064 = vunpack.c.l.b16 %v2080
  %v3065 = vunpack.c.h.b16 %v2080
  %v3066 = vunpack.c.l.b16 %v2081
  %v3067 = vunpack.c.h.b16 %v2081
  %v3068 = vunpack.c.l.b16 %v2082
  %v3069 = vunpack.c.h.b16 %v2082
  %v3070 = vunpack.c.l.b16 %v2083
  %v3071 = vunpack.c.h.b16 %v2083
  %v3072 = vunpack.c.l.b16 %v2084
  %v3073 = vunpack.c.h.b16 %v2084
  %v3074 = vunpack.c.l.b16 %v2085
  %v3075 = vunpack.c.h.b16 %v2085
  %v3076 = vunpack.c.l.b16 %v2086
  %v3077 = vunpack.c.h.b16 %v2086
  %v3078 = vunpack.c.l.b16 %v2087
  %v3079 = vunpack.c.h.b16 %v2087
  %v3080 = vunpack.c.l.b16 %v2088
  %v3081 = vunpack.c.h.b16 %v2088
  %v3082 = vunpack.c.l.b16 %v2089
  %v3083 = vunpack.c.h.b16 %v2089
  %v3084 = vunpack.c.l.b16 %v2090
  %v3085 = vunpack.c.h.b16 %v2090
  %v3086 = vunpack.c.l.b16 %v2091
  %v3087 = vunpack.c.h.b16 %v2091
  %v3088 = vunpack.c.l.b16 %v2092
  %v3089 = vunpack.c.h.b16 %v2092
  %v3090 = vunpack.c.l.b16 %v2093
  %v3091 = vunpack.c.h.b16 %v2093
  %v3092 = vunpack.c.l.b16 %v2094
  %v3093 = vunpack.c.h.b16 %v2094
  %v3094 = vunpack.c.l.b16 %v2095
  %v3095 = vunpack.c.h.b16 %v2095
  %v3096 = vunpack.c.l.b16 %v2096
  %v3097 = vunpack.c.h.b16 %v2096
  %v3098 = vunpack.c.l.b16 %v2097
  %v3099 = vunpack.c.h.b16 %v2097
  %v3100 = vunpack.c.l.b16 %v2098
  %v3101 = vunpack.c.h.b16 %v2098
  %v3102 = vunpack.c.l.b16 %v2099
  %v3103 = vunpack.c.h.b16 %v2099
  %v3104 = vunpack.c.l.b16 %v2100
  %v3105 = vunpack.c.h.b16 %v2100
  %v3106 = vunpack.c.l.b16 %v2101
  %v3107 = vunpack.c.h.b16 %v2101
  %v3108 = vunpack.c.l.b16 %v2102
  %v3109 = vunpack.c.h.b16 %v2102
  %v3110 = vunpack.c.l.b16 %v2103
  %v3111 = vunpack.c.h.b16 %v2103
  %v3112 = vunpack.c.l.b16 %v2104
  %v3113 = vunpack.c.h.b16 %v2104
  %v3114 = vunpack.c.l.b16 %v2105
  %v3115 = vunpack.c.h.b16 %v2105
  %v3116 = vunpack.c.l.b16 %v2106
  %v3117 = vunpack.c.h.b16 %v2106
  %v3118 = vunpack.c.l.b16 %v2107
  %v3119 = vunpack.c.h.b16 %v2107
  %v3120 = vunpack.c.l.b16 %v2108
  %v3121 = vunpack.c.h.b16 %v2108
  %v3122 = vunpack.c.l.b16 %v2109
  %v3123 = vunpack.c.h.b16 %v2109
  %v3124 = vunpack.c.l.b16 %v2110
  %v3125 = vunpack.c.h.b16 %v2110
  %v3126 = vunpack.c.l.b16 %v2111
  %v3127 = vunpack.c.h.b16 %v2111
  %v3128 = vunpack.c.l.b16 %v2112
  %v3129 = vunpack.c.h.b16 %v2112
  %v3130 = vunpack.c.l.b16 %v2113
  %v3131 = vunpack.c.h.b16 %v2113
  %v3132 = vunpack.c.l.b16 %v2114
  %v3133 = vunpack.c.h.b16 %v2114
  %v3134 = vunpack.c.l.b16 %v2115
  %v3135 = vunpack.c.h.b16 %v2115
  %v3136 = vunpack.c.l.b16 %v2116
  %v3137 = vunpack.c.h.b16 %v2116
  %v3138 = vunpack.c.l.b16 %v2117
  %v3139 = vunpack.c.h.b16 %v2117
  %v3140 = vunpack.c.l.b16 %v2118
  %v3141 = vunpack.c.h.b16 %v2118
  %v3142 = vunpack.c.l.b16 %v2119
  %v3143 = vunpack.c.h.b16 %v2119
  %v3144 = vunpack.c.l.b16 %v2120
  %v3145 = vunpack.c.h.b16 %v2120
  %v3146 = vunpack.c.l.b16 %v2121
  %v3147 = vunpack.c.h.b16 %v2121
  %v3148 = vunpack.c.l.b16 %v2122
  %v3149 = vunpack.c.h.b16 %v2122
  %v3150 = vunpack.c.l.b16 %v2123
  %v3151 = vunpack.c.h.b16 %v2123
  %v3152 = vunpack.c.l.b16 %v2124
  %v3153 = vunpack.c.h.b16 %v2124
  %v3154 = vunpack.c.l.b16 %v2125
  %v3155 = vunpack.c.h.b16 %v2125
  %v3156 = vunpack.c.l.b16 %v2126
  %v3157 = vunpack.c.h.b16 %v2126
  %v3158 = vunpack.c.l.b16 %v2127
  %v3159 = vunpack.c.h.b16 %v2127
  %v3160 = vunpack.c.l.b16 %v2128
  %v3161 = vunpack.c.h.b16 %v2128
  %v3162 = vunpack.c.l.b16 %v2129
  %v3163 = vunpack.c.h.b16 %v2129
  %v3164 = vunpack.c.l.b16 %v2130
  %v3165 = vunpack.c.h.b16 %v2130
  %v3166 = vunpack.c.l.b16 %v2131
  %v3167 = vunpack.c.h.b16 %v2131
  %v3168 = vunpack.c.l.b16 %v2132
  %v3169 = vunpack.c.h.b16 %v2132
  %v3170 = vunpack.c.l.b16 %v2133
  %v3171 = vunpack.c.h.b16 %v2133
  %v3172 = vunpack.c.l.b16 %v2134
  %v3173 = vunpack.c.h.b16 %v2134
  %v3174 = vunpack.c.l.b16 %v2135
  %v3175 = vunpack.c.h.b16 %v2135
  %v3176 = vunpack.c.l.b16 %v2136
  %v3177 = vunpack.c.h.b16 %v2136
  %v3178 = vunpack.c.l.b16 %v2137
  %v3179 = vunpack.c.h.b16 %v2137
  %v3180 = vunpack.c.l.b16 %v2138
  %v3181 = vunpack.c.h.b16 %v2138
  %v3182 = vunpack.c.l.b16 %v2139
  %v3183 = vunpack.c.h.b16 %v2139
  %v3184 = vunpack.c.l.b16 %v2140
  %v3185 = vunpack.c.h.b16 %v2140
  %v3186 = vunpack.c.l.b16 %v2141
  %v3187 = vunpack.c.h.b16 %v2141
  %v3188 = vunpack.c.l.b16 %v2142
  %v3189 = vunpack.c.h.b16 %v2142
  %v3190 = vunpack.c.l.b16 %v2143
  %v3191 = vunpack.c.h.b16 %v2143
  %v3192 = vunpack.c.l.b16 %v2144
  %v3193 = vunpack.c.h.b16 %v2144
  %v3194 = vunpack.c.l.b16 %v2145
  %v3195 = vunpack.c.h.b16 %v2145
  %v3196 = vunpack.c.l.b16 %v2146
  %v3197 = vunpack.c.h.b16 %v2146
  %v3198 = vunpack.c.l.b16 %v2147
  %v3199 = vunpack.c.h.b16 %v2147
  %v3200 = vunpack.c.l.b16 %v2148
  %v3201 = vunpack.c.h.b16 %v2148
  %v3202 = vunpack.c.l.b16 %v2149
  %v3203 = vunpack.c.h.b16 %v2149
  %v3204 = vunpack.c.l.b16 %v2150
  %v3205 = vunpack.c.h.b16 %v2150
  %v3206 = vunpack.c.l.b16 %v2151
  %v3207 = vunpack.c.h.b16 %v2151
  %v3208 = vunpack.c.l.b16 %v2152
  %v3209 = vunpack.c.h.b16 %v2152
  %v3210 = vunpack.c.l.b16 %v2153
  %v3211 = vunpack.c.h.b16 %v2153
  %v3212 = vunpack.c.l.b16 %v2154
  %v3213 = vunpack.c.h.b16 %v2154
  %v3214 = vunpack.c.l.b16 %v2155
  %v3215 = vunpack.c.h.b16 %v2155
  %v3216 = vunpack.c.l.b16 %v2156
  %v3217 = vunpack.c.h.b16 %v2156
  %v3218 = vunpack.c.l.b16 %v2157
  %v3219 = vunpack.c.h.b16 %v2157
  %v3220 = vunpack.c.l.b16 %v2158
  %v3221 = vunpack.c.h.b16 %v2158
  %v3222 = vunpack.c.l.b16 %v2159
  %v3223 = vunpack.c.h.b16 %v2159
  %v3224 = vunpack.c.l.b16 %v2160
  %v3225 = vunpack.c.h.b16 %v2160
  %v3226 = vunpack.c.l.b16 %v2161
  %v3227 = vunpack.c.h.b16 %v2161
  %v3228 = vunpack.c.l.b16 %v2162
  %v3229 = vunpack.c.h.b16 %v2162
  %v3230 = vunpack.c.l.b16 %v2163
  %v3231 = vunpack.c.h.b16 %v2163
  %v3232 = vunpack.c.l.b16 %v2164
  %v3233 = vunpack.c.h.b16 %v2164
  %v3234 = vunpack.c.l.b16 %v2165
  %v3235 = vunpack.c.h.b16 %v2165
  %v3236 = vunpack.c.l.b16 %v2166
  %v3237 = vunpack.c.h.b16 %v2166
  %v3238 = vunpack.c.l.b16 %v2167
  %v3239 = vunpack.c.h.b16 %v2167
  %v3240 = vunpack.c.l.b16 %v2168
  %v3241 = vunpack.c.h.b16 %v2168
  %v3242 = vunpack.c.l.b16 %v2169
  %v3243 = vunpack.c.h.b16 %v2169
  %v3244 = vunpack.c.l.b16 %v2170
  %v3245 = vunpack.c.h.b16 %v2170
  %v3246 = vunpack.c.l.b16 %v2171
  %v3247 = vunpack.c.h.b16 %v2171
  %v3248 = vunpack.c.l.b16 %v2172
  %v3249 = vunpack.c.h.b16 %v2172
  %v3250 = vunpack.c.l.b16 %v2173
  %v3251 = vunpack.c.h.b16 %v2173
  %v3252 = vunpack.c.l.b16 %v2174
  %v3253 = vunpack.c.h.b16 %v2174
  %v3254 = vunpack.c.l.b16 %v2175
  %v3255 = vunpack.c.h.b16 %v2175
  %v3256 = vunpack.c.l.b16 %v2176
  %v3257 = vunpack.c.h.b16 %v2176
  %v3258 = vunpack.c.l.b16 %v2177
  %v3259 = vunpack.c.h.b16 %v2177
  %v3260 = vunpack.c.l.b16 %v2178
  %v3261 = vunpack.c.h.b16 %v2178
  %v3262 = vunpack.c.l.b16 %v2179
  %v3263 = vunpack.c.h.b16 %v2179
  %v3264 = vunpack.c.l.b16 %v2180
  %v3265 = vunpack.c.h.b16 %v2180
  %v3266 = vunpack.c.l.b16 %v2181
  %v3267 = vunpack.c.h.b16 %v2181
  %v3268 = vunpack.c.l.b16 %v2182
  %v3269 = vunpack.c.h.b16 %v2182
  %v3270 = vunpack.c.l.b16 %v2183
  %v3271 = vunpack.c.h.b16 %v2183
  %v3272 = vunpack.c.l.b16 %v2184
  %v3273 = vunpack.c.h.b16 %v2184
  %v3274 = vunpack.c.l.b16 %v2185
  %v3275 = vunpack.c.h.b16 %v2185
  %v3276 = vunpack.c.l.b16 %v2186
  %v3277 = vunpack.c.h.b16 %v2186
  %v3278 = vunpack.c.l.b16 %v2187
  %v3279 = vunpack.c.h.b16 %v2187
  %v3280 = vunpack.c.l.b16 %v2188
  %v3281 = vunpack.c.h.b16 %v2188
  %v3282 = vunpack.c.l.b16 %v2189
  %v3283 = vunpack.c.h.b16 %v2189
  %v3284 = vunpack.c.l.b16 %v2190
  %v3285 = vunpack.c.h.b16 %v2190
  %v3286 = vunpack.c.l.b16 %v2191
  %v3287 = vunpack.c.h.b16 %v2191
  %v3288 = vunpack.c.l.b16 %v2192
  %v3289 = vunpack.c.h.b16 %v2192
  %v3290 = vunpack.c.l.b16 %v2193
  %v3291 = vunpack.c.h.b16 %v2193
  %v3292 = vunpack.c.l.b16 %v2194
  %v3293 = vunpack.c.h.b16 %v2194
  %v3294 = vunpack.c.l.b16 %v2195
  %v3295 = vunpack.c.h.b16 %v2195
  %v3296 = vunpack.c.l.b16 %v2196
  %v3297 = vunpack.c.h.b16 %v2196
  %v3298 = vunpack.c.l.b16 %v2197
  %v3299 = vunpack.c.h.b16 %v2197
  %v3300 = vunpack.c.l.b16 %v2198
  %v3301 = vunpack.c.h.b16 %v2198
  %v3302 = vunpack.c.l.b16 %v2199
  %v3303 = vunpack.c.h.b16 %v2199
  %v3304 = vunpack.c.l.b16 %v2200
  %v3305 = vunpack.c.h.b16 %v2200
  %v3306 = vunpack.c.l.b16 %v2201
  %v3307 = vunpack.c.h.b16 %v2201
  %v3308 = vunpack.c.l.b16 %v2202
  %v3309 = vunpack.c.h.b16 %v2202
  %v3310 = vunpack.c.l.b16 %v2203
  %v3311 = vunpack.c.h.b16 %v2203
  %v3312 = vunpack.c.l.b16 %v2204
  %v3313 = vunpack.c.h.b16 %v2204
  %v3314 = vunpack.c.l.b16 %v2205
  %v3315 = vunpack.c.h.b16 %v2205
  %v3316 = vunpack.c.l.b16 %v2206
  %v3317 = vunpack.c.h.b16 %v2206
  %v3318 = vunpack.c.l.b16 %v2207
  %v3319 = vunpack.c.h.b16 %v2207
  %v3320 = vunpack.c.l.b16 %v2208
  %v3321 = vunpack.c.h.b16 %v2208
  %v3322 = vunpack.c.l.b16 %v2209
  %v3323 = vunpack.c.h.b16 %v2209
  %v3324 = vunpack.c.l.b16 %v2210
  %v3325 = vunpack.c.h.b16 %v2210
  %v3326 = vunpack.c.l.b16 %v2211
  %v3327 = vunpack.c.h.b16 %v2211
  %v3328 = vunpack.c.l.b16 %v2212
  %v3329 = vunpack.c.h.b16 %v2212
  %v3330 = vunpack.c.l.b16 %v2213
  %v3331 = vunpack.c.h.b16 %v2213
  %v3332 = vunpack.c.l.b16 %v2214
  %v3333 = vunpack.c.h.b16 %v2214
  %v3334 = vunpack.c.l.b16 %v2215
  %v3335 = vunpack.c.h.b16 %v2215
  %v3336 = vunpack.c.l.b16 %v2216
  %v3337 = vunpack.c.h.b16 %v2216
  %v3338 = vunpack.c.l.b16 %v2217
  %v3339 = vunpack.c.h.b16 %v2217
  %v3340 = vunpack.c.l.b16 %v2218
  %v3341 = vunpack.c.h.b16 %v2218
  %v3342 = vunpack.c.l.b16 %v2219
  %v3343 = vunpack.c.h.b16 %v2219
  %v3344 = vunpack.c.l.b16 %v2220
  %v3345 = vunpack.c.h.b16 %v2220
  %v3346 = vunpack.c.l.b16 %v2221
  %v3347 = vunpack.c.h.b16 %v2221
  %v3348 = vunpack.c.l.b16 %v2222
  %v3349 = vunpack.c.h.b16 %v2222
  %v3350 = vunpack.c.l.b16 %v2223
  %v3351 = vunpack.c.h.b16 %v2223
  %v3352 = vunpack.c.l.b16 %v2224
  %v3353 = vunpack.c.h.b16 %v2224
  %v3354 = vunpack.c.l.b16 %v2225
  %v3355 = vunpack.c.h.b16 %v2225
  %v3356 = vunpack.c.l.b16 %v2226
  %v3357 = vunpack.c.h.b16 %v2226
  %v3358 = vunpack.c.l.b16 %v2227
  %v3359 = vunpack.c.h.b16 %v2227
  %v3360 = vunpack.c.l.b16 %v2228
  %v3361 = vunpack.c.h.b16 %v2228
  %v3362 = vunpack.c.l.b16 %v2229
  %v3363 = vunpack.c.h.b16 %v2229
  %v3364 = vunpack.c.l.b16 %v2230
  %v3365 = vunpack.c.h.b16 %v2230
  %v3366 = vunpack.c.l.b16 %v2231
  %v3367 = vunpack.c.h.b16 %v2231
  %v3368 = vunpack.c.l.b16 %v2232
  %v3369 = vunpack.c.h.b16 %v2232
  %v3370 = vunpack.c.l.b16 %v2233
  %v3371 = vunpack.c.h.b16 %v2233
  %v3372 = vunpack.c.l.b16 %v2234
  %v3373 = vunpack.c.h.b16 %v2234
  %v3374 = vunpack.c.l.b16 %v2235
  %v3375 = vunpack.c.h.b16 %v2235
  %v3376 = vunpack.c.l.b16 %v2236
  %v3377 = vunpack.c.h.b16 %v2236
  %v3378 = vunpack.c.l.b16 %v2237
  %v3379 = vunpack.c.h.b16 %v2237
  %v3380 = vunpack.c.l.b16 %v2238
  %v3381 = vunpack.c.h.b16 %v2238
  %v3382 = vunpack.c.l.b16 %v2239
  %v3383 = vunpack.c.h.b16 %v2239
  %v3384 = vunpack.c.l.b16 %v2240
  %v3385 = vunpack.c.h.b16 %v2240
  %v3386 = vunpack.c.l.b16 %v2241
  %v3387 = vunpack.c.h.b16 %v2241
  %v3388 = vunpack.c.l.b16 %v2242
  %v3389 = vunpack.c.h.b16 %v2242
  %v3390 = vunpack.c.l.b16 %v2243
  %v3391 = vunpack.c.h.b16 %v2243
  %v3392 = vunpack.c.l.b16 %v2244
  %v3393 = vunpack.c.h.b16 %v2244
  %v3394 = vunpack.c.l.b16 %v2245
  %v3395 = vunpack.c.h.b16 %v2245
  %v3396 = vunpack.c.l.b16 %v2246
  %v3397 = vunpack.c.h.b16 %v2246
  %v3398 = vunpack.c.l.b16 %v2247
  %v3399 = vunpack.c.h.b16 %v2247
  %v3400 = vunpack.c.l.b16 %v2248
  %v3401 = vunpack.c.h.b16 %v2248
  %v3402 = vunpack.c.l.b16 %v2249
  %v3403 = vunpack.c.h.b16 %v2249
  %v3404 = vunpack.c.l.b16 %v2250
  %v3405 = vunpack.c.h.b16 %v2250
  %v3406 = vunpack.c.l.b16 %v2251
  %v3407 = vunpack.c.h.b16 %v2251
  %v3408 = vunpack.c.l.b16 %v2252
  %v3409 = vunpack.c.h.b16 %v2252
  %v3410 = vunpack.c.l.b16 %v2253
  %v3411 = vunpack.c.h.b16 %v2253
  %v3412 = vunpack.c.l.b16 %v2254
  %v3413 = vunpack.c.h.b16 %v2254
  %v3414 = vunpack.c.l.b16 %v2255
  %v3415 = vunpack.c.h.b16 %v2255
  %v3416 = vunpack.c.l.b16 %v2256
  %v3417 = vunpack.c.h.b16 %v2256
  %v3418 = vunpack.c.l.b16 %v2257
  %v3419 = vunpack.c.h.b16 %v2257
  %v3420 = vunpack.c.l.b16 %v2258
  %v3421 = vunpack.c.h.b16 %v2258
  %v3422 = vunpack.c.l.b16 %v2259
  %v3423 = vunpack.c.h.b16 %v2259
  %v3424 = vunpack.c.l.b16 %v2260
  %v3425 = vunpack.c.h.b16 %v2260
  %v3426 = vunpack.c.l.b16 %v2261
  %v3427 = vunpack.c.h.b16 %v2261
  %v3428 = vunpack.c.l.b16 %v2262
  %v3429 = vunpack.c.h.b16 %v2262
  %v3430 = vunpack.c.l.b16 %v2263
  %v3431 = vunpack.c.h.b16 %v2263
  %v3432 = vunpack.c.l.b16 %v2264
  %v3433 = vunpack.c.h.b16 %v2264
  %v3434 = vunpack.c.l.b16 %v2265
  %v3435 = vunpack.c.h.b16 %v2265
  %v3436 = vunpack.c.l.b16 %v2266
  %v3437 = vunpack.c.h.b16 %v2266
  %v3438 = vunpack.c.l.b16 %v2267
  %v3439 = vunpack.c.h.b16 %v2267
  %v3440 = vunpack.c.l.b16 %v2268
  %v3441 = vunpack.c.h.b16 %v2268
  %v3442 = vunpack.c.l.b16 %v2269
  %v3443 = vunpack.c.h.b16 %v2269
  %v3444 = vunpack.c.l.b16 %v2270
  %v3445 = vunpack.c.h.b16 %v2270
  %v3446 = vunpack.c.l.b16 %v2271
  %v3447 = vunpack.c.h.b16 %v2271
  %v3448 = vunpack.c.l.b16 %v2272
  %v3449 = vunpack.c.h.b16 %v2272
  %v3450 = vunpack.c.l.b16 %v2273
  %v3451 = vunpack.c.h.b16 %v2273
  %v3452 = vunpack.c.l.b16 %v2274
  %v3453 = vunpack.c.h.b16 %v2274
  %v3454 = vunpack.c.l.b16 %v2275
  %v3455 = vunpack.c.h.b16 %v2275
  %v3456 = vunpack.c.l.b16 %v2276
  %v3457 = vunpack.c.h.b16 %v2276
  %v3458 = vunpack.c.l.b16 %v2277
  %v3459 = vunpack.c.h.b16 %v2277
  %v3460 = vunpack.c.l.b16 %v2278
  %v3461 = vunpack.c.h.b16 %v2278
  %v3462 = vunpack.c.l.b16 %v2279
  %v3463 = vunpack.c.h.b16 %v2279
  %v3464 = vunpack.c.l.b16 %v2280
  %v3465 = vunpack.c.h.b16 %v2280
  %v3466 = vunpack.c.l.b16 %v2281
  %v3467 = vunpack.c.h.b16 %v2281
  %v3468 = vunpack.c.l.b16 %v2282
  %v3469 = vunpack.c.h.b16 %v2282
  %v3470 = vunpack.c.l.b16 %v2283
  %v3471 = vunpack.c.h.b16 %v2283
  %v3472 = vunpack.c.l.b16 %v2284
  %v3473 = vunpack.c.h.b16 %v2284
  %v3474 = vunpack.c.l.b16 %v2285
  %v3475 = vunpack.c.h.b16 %v2285
  %v3476 = vunpack.c.l.b16 %v2286
  %v3477 = vunpack.c.h.b16 %v2286
  %v3478 = vunpack.c.l.b16 %v2287
  %v3479 = vunpack.c.h.b16 %v2287
  %v3480 = vunpack.c.l.b16 %v2288
  %v3481 = vunpack.c.h.b16 %v2288
  %v3482 = vunpack.c.l.b16 %v2289
  %v3483 = vunpack.c.h.b16 %v2289
  %v3484 = vunpack.c.l.b16 %v2290
  %v3485 = vunpack.c.h.b16 %v2290
  %v3486 = vunpack.c.l.b16 %v2291
  %v3487 = vunpack.c.h.b16 %v2291
  %v3488 = vunpack.c.l.b16 %v2292
  %v3489 = vunpack.c.h.b16 %v2292
  %v3490 = vunpack.c.l.b16 %v2293
  %v3491 = vunpack.c.h.b16 %v2293
  %v3492 = vunpack.c.l.b16 %v2294
  %v3493 = vunpack.c.h.b16 %v2294
  %v3494 = vunpack.c.l.b16 %v2295
  %v3495 = vunpack.c.h.b16 %v2295
  %v3496 = vunpack.c.l.b16 %v2296
  %v3497 = vunpack.c.h.b16 %v2296
  %v3498 = vunpack.c.l.b16 %v2297
  %v3499 = vunpack.c.h.b16 %v2297
  %v3500 = vunpack.c.l.b16 %v2298
  %v3501 = vunpack.c.h.b16 %v2298
  %v3502 = vunpack.c.l.b16 %v2299
  %v3503 = vunpack.c.h.b16 %v2299
  %v3504 = vunpack.c.l.b16 %v2300
  %v3505 = vunpack.c.h.b16 %v2300
  %v3506 = vunpack.c.l.b16 %v2301
  %v3507 = vunpack.c.h.b16 %v2301
  %v3508 = vunpack.c.l.b16 %v2302
  %v3509 = vunpack.c.h.b16 %v2302
  %v3510 = vunpack.c.l.b16 %v2303
  %v3511 = vunpack.c.h.b16 %v2303
  %v3512 = vunpack.c.l.b16 %v2304
  %v3513 = vunpack.c.h.b16 %v2304
  %v3514 = vunpack.c.l.b16 %v2305
  %v3515 = vunpack.c.h.b16 %v2305
  %v3516 = vunpack.c.l.b16 %v2306
  %v3517 = vunpack.c.h.b16 %v2306
  %v3518 = vunpack.c.l.b16 %v2307
  %v3519 = vunpack.c.h.b16 %v2307
  %v3520 = vunpack.c.l.b16 %v2308
  %v3521 = vunpack.c.h.b16 %v2308
  %v3522 = vunpack.c.l.b16 %v2309
  %v3523 = vunpack.c.h.b16 %v2309
  %v3524 = vunpack.c.l.b16 %v2310
  %v3525 = vunpack.c.h.b16 %v2310
  %v3526 = vunpack.c.l.b16 %v2311
  %v3527 = vunpack.c.h.b16 %v2311
  %v3528 = vunpack.c.l.b16 %v2312
  %v3529 = vunpack.c.h.b16 %v2312
  %v3530 = vunpack.c.l.b16 %v2313
  %v3531 = vunpack.c.h.b16 %v2313
  %v3532 = vunpack.c.l.b16 %v2314
  %v3533 = vunpack.c.h.b16 %v2314
  %v3534 = vunpack.c.l.b16 %v2315
  %v3535 = vunpack.c.h.b16 %v2315
  %v3536 = vunpack.c.l.b16 %v2316
  %v3537 = vunpack.c.h.b16 %v2316
  %v3538 = vunpack.c.l.b16 %v2317
  %v3539 = vunpack.c.h.b16 %v2317
  %v3540 = vunpack.c.l.b16 %v2318
  %v3541 = vunpack.c.h.b16 %v2318
  %v3542 = vunpack.c.l.b16 %v2319
  %v3543 = vunpack.c.h.b16 %v2319
  %v3544 = vunpack.c.l.b16 %v2320
  %v3545 = vunpack.c.h.b16 %v2320
  %v3546 = vunpack.c.l.b16 %v2321
  %v3547 = vunpack.c.h.b16 %v2321
  %v3548 = vunpack.c.l.b16 %v2322
  %v3549 = vunpack.c.h.b16 %v2322
  %v3550 = vunpack.c.l.b16 %v2323
  %v3551 = vunpack.c.h.b16 %v2323
  %v3552 = vunpack.c.l.b16 %v2324
  %v3553 = vunpack.c.h.b16 %v2324
  %v3554 = vunpack.c.l.b16 %v2325
  %v3555 = vunpack.c.h.b16 %v2325
  %v3556 = vunpack.c.l.b16 %v2326
  %v3557 = vunpack.c.h.b16 %v2326
  %v3558 = vunpack.c.l.b16 %v2327
  %v3559 = vunpack.c.h.b16 %v2327
  %v3560 = vunpack.c.l.b16 %v2328
  %v3561 = vunpack.c.h.b16 %v2328
  %v3562 = vunpack.c.l.b16 %v2329
  %v3563 = vunpack.c.h.b16 %v2329
  %v3564 = vunpack.c.l.b16 %v2330
  %v3565 = vunpack.c.h.b16 %v2330
  %v3566 = vunpack.c.l.b16 %v2331
  %v3567 = vunpack.c.h.b16 %v2331
  %v3568 = vunpack.c.l.b16 %v2332
  %v3569 = vunpack.c.h.b16 %v2332
  %v3570 = vunpack.c.l.b16 %v2333
  %v3571 = vunpack.c.h.b16 %v2333
  %v3572 = vunpack.c.l.b16 %v2334
  %v3573 = vunpack.c.h.b16 %v2334
  %v3574 = vunpack.c.l.b16 %v2335
  %v3575 = vunpack.c.h.b16 %v2335
  %v3576 = vunpack.c.l.b16 %v2336
  %v3577 = vunpack.c.h.b16 %v2336
  %v3578 = vunpack.c.l.b16 %v2337
  %v3579 = vunpack.c.h.b16 %v2337
  %v3580 = vunpack.c.l.b16 %v2338
  %v3581 = vunpack.c.h.b16 %v2338
  %v3582 = vunpack.c.l.b16 %v2339
  %v3583 = vunpack.c.h.b16 %v2339
  %v3584 = vunpack.c.l.b16 %v2340
  %v3585 = vunpack.c.h.b16 %v2340
  %v3586 = vunpack.c.l.b16 %v2341
  %v3587 = vunpack.c.h.b16 %v2341
  %v3588 = vunpack.c.l.b16 %v2342
  %v3589 = vunpack.c.h.b16 %v2342
  %v3590 = vunpack.c.l.b16 %v2343
  %v3591 = vunpack.c.h.b16 %v2343
  %v3592 = vunpack.c.l.b16 %v2344
  %v3593 = vunpack.c.h.b16 %v2344
  %v3594 = vunpack.c.l.b16 %v2345
  %v3595 = vunpack.c.h.b16 %v2345
  %v3596 = vunpack.c.l.b16 %v2346
  %v3597 = vunpack.c.h.b16 %v2346
  %v3598 = vunpack.c.l.b16 %v2347
  %v3599 = vunpack.c.h.b16 %v2347
  %v3600 = vunpack.c.l.b16 %v2348
  %v3601 = vunpack.c.h.b16 %v2348
  %v3602 = vunpack.c.l.b16 %v2349
  %v3603 = vunpack.c.h.b16 %v2349
  %v3604 = vunpack.c.l.b16 %v2350
  %v3605 = vunpack.c.h.b16 %v2350
  %v3606 = vunpack.c.l.b16 %v2351
  %v3607 = vunpack.c.h.b16 %v2351
  %v3608 = vunpack.c.l.b16 %v2352
  %v3609 = vunpack.c.h.b16 %v2352
  %v3610 = vunpack.c.l.b16 %v2353
  %v3611 = vunpack.c.h.b16 %v2353
  %v3612 = vunpack.c.l.b16 %v2354
  %v3613 = vunpack.c.h.b16 %v2354
  %v3614 = vunpack.c.l.b16 %v2355
  %v3615 = vunpack.c.h.b16 %v2355
  %v3616 = vunpack.c.l.b16 %v2356
  %v3617 = vunpack.c.h.b16 %v2356
  %v3618 = vunpack.c.l.b16 %v2357
  %v3619 = vunpack.c.h.b16 %v2357
  %v3620 = vunpack.c.l.b16 %v2358
  %v3621 = vunpack.c.h.b16 %v2358
  %v3622 = vunpack.c.l.b16 %v2359
  %v3623 = vunpack.c.h.b16 %v2359
  %v3624 = vunpack.c.l.b16 %v2360
  %v3625 = vunpack.c.h.b16 %v2360
  %v3626 = vunpack.c.l.b16 %v2361
  %v3627 = vunpack.c.h.b16 %v2361
  %v3628 = vunpack.c.l.b16 %v2362
  %v3629 = vunpack.c.h.b16 %v2362
  %v3630 = vunpack.c.l.b16 %v2363
  %v3631 = vunpack.c.h.b16 %v2363
  %v3632 = vunpack.c.l.b16 %v2364
  %v3633 = vunpack.c.h.b16 %v2364
  %v3634 = vunpack.c.l.b16 %v2365
  %v3635 = vunpack.c.h.b16 %v2365
  %v3636 = vunpack.c.l.b16 %v2366
  %v3637 = vunpack.c.h.b16 %v2366
  %v3638 = vunpack.c.l.b16 %v2367
  %v3639 = vunpack.c.h.b16 %v2367
  %v3640 = vunpack.c.l.b16 %v2368
  %v3641 = vunpack.c.h.b16 %v2368
  %v3642 = vunpack.c.l.b16 %v2369
  %v3643 = vunpack.c.h.b16 %v2369
  %v3644 = vunpack.c.l.b16 %v2370
  %v3645 = vunpack.c.h.b16 %v2370
  %v3646 = vunpack.c.l.b16 %v2371
  %v3647 = vunpack.c.h.b16 %v2371
  %v3648 = vunpack.c.l.b16 %v2372
  %v3649 = vunpack.c.h.b16 %v2372
  %v3650 = vunpack.c.l.b16 %v2373
  %v3651 = vunpack.c.h.b16 %v2373
  %v3652 = vunpack.c.l.b16 %v2374
  %v3653 = vunpack.c.h.b16 %v2374
  %v3654 = vunpack.c.l.b16 %v2375
  %v3655 = vunpack.c.h.b16 %v2375
  %v3656 = vunpack.c.l.b16 %v2376
  %v3657 = vunpack.c.h.b16 %v2376
  %v3658 = vunpack.c.l.b16 %v2377
  %v3659 = vunpack.c.h.b16 %v2377
  %v3660 = vunpack.c.l.b16 %v2378
  %v3661 = vunpack.c.h.b16 %v2378
  %v3662 = vunpack.c.l.b16 %v2379
  %v3663 = vunpack.c.h.b16 %v2379
  %v3664 = vunpack.c.l.b16 %v2380
  %v3665 = vunpack.c.h.b16 %v2380
  %v3666 = vunpack.c.l.b16 %v2381
  %v3667 = vunpack.c.h.b16 %v2381
  %v3668 = vunpack.c.l.b16 %v2382
  %v3669 = vunpack.c.h.b16 %v2382
  %v3670 = vunpack.c.l.b16 %v2383
  %v3671 = vunpack.c.h.b16 %v2383
  %v3672 = vunpack.c.l.b16 %v2384
  %v3673 = vunpack.c.h.b16 %v2384
  %v3674 = vunpack.c.l.b16 %v2385
  %v3675 = vunpack.c.h.b16 %v2385
  %v3676 = vunpack.c.l.b16 %v2386
  %v3677 = vunpack.c.h.b16 %v2386
  %v3678 = vunpack.c.l.b16 %v2387
  %v3679 = vunpack.c.h.b16 %v2387
  %v3680 = vunpack.c.l.b16 %v2388
  %v3681 = vunpack.c.h.b16 %v2388
  %v3682 = vunpack.c.l.b16 %v2389
  %v3683 = vunpack.c.h.b16 %v2389
  %v3684 = vpack.c.b16 %v2920, %v2916
  %v3685 = vpack.c.b16 %v2921, %v2917
  %v3686 = vpack.c.b16 %v2922, %v2918
  %v3687 = vpack.c.b16 %v2923, %v2919
  %v3688 = vpack.c.b16 %v2928, %v2924
  %v3689 = vpack.c.b16 %v2929, %v2925
  %v3690 = vpack.c.b16 %v2930, %v2926
  %v3691 = vpack.c.b16 %v2931, %v2927
  %v3692 = vpack.c.b16 %v2936, %v2932
  %v3693 = vpack.c.b16 %v2937, %v2933
  %v3694 = vpack.c.b16 %v2938, %v2934
  %v3695 = vpack.c.b16 %v2939, %v2935
  %v3696 = vpack.c.b16 %v2944, %v2940
  %v3697 = vpack.c.b16 %v2945, %v2941
  %v3698 = vpack.c.b16 %v2946, %v2942
  %v3699 = vpack.c.b16 %v2947, %v2943
  %v3700 = vpack.c.b16 %v2952, %v2948
  %v3701 = vpack.c.b16 %v2953, %v2949
  %v3702 = vpack.c.b16 %v2954, %v2950
  %v3703 = vpack.c.b16 %v2955, %v2951
  %v3704 = vpack.c.b16 %v2960, %v2956
  %v3705 = vpack.c.b16 %v2961, %v2957
  %v3706 = vpack.c.b16 %v2962, %v2958
  %v3707 = vpack.c.b16 %v2963, %v2959
  %v3708 = vpack.c.b16 %v2968, %v2964
  %v3709 = vpack.c.b16 %v2969, %v2965
  %v3710 = vpack.c.b16 %v2970, %v2966
  %v3711 = vpack.c.b16 %v2971, %v2967
  %v3712 = vpack.c.b16 %v2976, %v2972
  %v3713 = vpack.c.b16 %v2977, %v2973
  %v3714 = vpack.c.b16 %v2978, %v2974
  %v3715 = vpack.c.b16 %v2979, %v2975
  %v3716 = vpack.c.b16 %v2984, %v2980
  %v3717 = vpack.c.b16 %v2985, %v2981
  %v3718 = vpack.c.b16 %v2986, %v2982
  %v3719 = vpack.c.b16 %v2987, %v2983
  %v3720 = vpack.c.b16 %v2992, %v2988
  %v3721 = vpack.c.b16 %v2993, %v2989
  %v3722 = vpack.c.b16 %v2994, %v2990
  %v3723 = vpack.c.b16 %v2995, %v2991
  %v3724 = vpack.c.b16 %v3000, %v2996
  %v3725 = vpack.c.b16 %v3001, %v2997
  %v3726 = vpack.c.b16 %v3002, %v2998
  %v3727 = vpack.c.b16 %v3003, %v2999
  %v3728 = vpack.c.b16 %v3008, %v3004
  %v3729 = vpack.c.b16 %v3009, %v3005
  %v3730 = vpack.c.b16 %v3010, %v3006
  %v3731 = vpack.c.b16 %v3011, %v3007
  %v3732 = vpack.c.b16 %v3016, %v3012
  %v3733 = vpack.c.b16 %v3017, %v3013
  %v3734 = vpack.c.b16 %v3018, %v3014
  %v3735 = vpack.c.b16 %v3019, %v3015
  %v3736 = vpack.c.b16 %v3024, %v3020
  %v3737 = vpack.c.b16 %v3025, %v3021
  %v3738 = vpack.c.b16 %v3026, %v3022
  %v3739 = vpack.c.b16 %v3027, %v3023
  %v3740 = vpack.c.b16 %v3032, %v3028
  %v3741 = vpack.c.b16 %v3033, %v3029
  %v3742 = vpack.c.b16 %v3034, %v3030
  %v3743 = vpack.c.b16 %v3035, %v3031
  %v3744 = vpack.c.b16 %v3040, %v3036
  %v3745 = vpack.c.b16 %v3041, %v3037
  %v3746 = vpack.c.b16 %v3042, %v3038
  %v3747 = vpack.c.b16 %v3043, %v3039
  %v3748 = vpack.c.b16 %v3048, %v3044
  %v3749 = vpack.c.b16 %v3049, %v3045
  %v3750 = vpack.c.b16 %v3050, %v3046
  %v3751 = vpack.c.b16 %v3051, %v3047
  %v3752 = vpack.c.b16 %v3056, %v3052
  %v3753 = vpack.c.b16 %v3057, %v3053
  %v3754 = vpack.c.b16 %v3058, %v3054
  %v3755 = vpack.c.b16 %v3059, %v3055
  %v3756 = vpack.c.b16 %v3064, %v3060
  %v3757 = vpack.c.b16 %v3065, %v3061
  %v3758 = vpack.c.b16 %v3066, %v3062
  %v3759 = vpack.c.b16 %v3067, %v3063
  %v3760 = vpack.c.b16 %v3072, %v3068
  %v3761 = vpack.c.b16 %v3073, %v3069
  %v3762 = vpack.c.b16 %v3074, %v3070
  %v3763 = vpack.c.b16 %v3075, %v3071
  %v3764 = vpack.c.b16 %v3080, %v3076
  %v3765 = vpack.c.b16 %v3081, %v3077
  %v3766 = vpack.c.b16 %v3082, %v3078
  %v3767 = vpack.c.b16 %v3083, %v3079
  %v3768 = vpack.c.b16 %v3088, %v3084
  %v3769 = vpack.c.b16 %v3089, %v3085
  %v3770 = vpack.c.b16 %v3090, %v3086
  %v3771 = vpack.c.b16 %v3091, %v3087
  %v3772 = vpack.c.b16 %v3096, %v3092
  %v3773 = vpack.c.b16 %v3097, %v3093
  %v3774 = vpack.c.b16 %v3098, %v3094
  %v3775 = vpack.c.b16 %v3099, %v3095
  %v3776 = vpack.c.b16 %v3104, %v3100
  %v3777 = vpack.c.b16 %v3105, %v3101
  %v3778 = vpack.c.b16 %v3106, %v3102
  %v3779 = vpack.c.b16 %v3107, %v3103
  %v3780 = vpack.c.b16 %v3112, %v3108
  %v3781 = vpack.c.b16 %v3113, %v3109
  %v3782 = vpack.c.b16 %v3114, %v3110
  %v3783 = vpack.c.b16 %v3115, %v3111
  %v3784 = vpack.c.b16 %v3120, %v3116
  %v3785 = vpack.c.b16 %v3121, %v3117
  %v3786 = vpack.c.b16 %v3122, %v3118
  %v3787 = vpack.c.b16 %v3123, %v3119
  %v3788 = vpack.c.b16 %v3128, %v3124
  %v3789 = vpack.c.b16 %v3129, %v3125
  %v3790 = vpack.c.b16 %v3130, %v3126
  %v3791 = vpack.c.b16 %v3131, %v3127
  %v3792 = vpack.c.b16 %v3136, %v3132
  %v3793 = vpack.c.b16 %v3137, %v3133
  %v3794 = vpack.c.b16 %v3138, %v3134
  %v3795 = vpack.c.b16 %v3139, %v3135
  %v3796 = vpack.c.b16 %v3144, %v3140
  %v3797 = vpack.c.b16 %v3145, %v3141
  %v3798 = vpack.c.b16 %v3146, %v3142
  %v3799 = vpack.c.b16 %v3147, %v3143
  %v3800 = vpack.c.b16 %v3152, %v3148
  %v3801 = vpack.c.b16 %v3153, %v3149
  %v3802 = vpack.c.b16 %v3154, %v3150
  %v3803 = vpack.c.b16 %v3155, %v3151
  %v3804 = vpack.c.b16 %v3160, %v3156
  %v3805 = vpack.c.b16 %v3161, %v3157
  %v3806 = vpack.c.b16 %v3162, %v3158
  %v3807 = vpack.c.b16 %v3163, %v3159
  %v3808 = vpack.c.b16 %v3168, %v3164
  %v3809 = vpack.c.b16 %v3169, %v3165
  %v3810 = vpack.c.b16 %v3170, %v3166
  %v3811 = vpack.c.b16 %v3171, %v3167
  %v3812 = vpack.c.b16 %v3176, %v3172
  %v3813 = vpack.c.b16 %v3177, %v3173
  %v3814 = vpack.c.b16 %v3178, %v3174
  %v3815 = vpack.c.b16 %v3179, %v3175
  %v3816 = vpack.c.b16 %v3184, %v3180
  %v3817 = vpack.c.b16 %v3185, %v3181
  %v3818 = vpack.c.b16 %v3186, %v3182
  %v3819 = vpack.c.b16 %v3187, %v3183
  %v3820 = vpack.c.b16 %v3192, %v3188
  %v3821 = vpack.c.b16 %v3193, %v3189
  %v3822 = vpack.c.b16 %v3194, %v3190
  %v3823 = vpack.c.b16 %v3195, %v3191
  %v3824 = vpack.c.b16 %v3200, %v3196
  %v3825 = vpack.c.b16 %v3201, %v3197
  %v3826 = vpack.c.b16 %v3202, %v3198
  %v3827 = vpack.c.b16 %v3203, %v3199
  %v3828 = vpack.c.b16 %v3208, %v3204
  %v3829 = vpack.c.b16 %v3209, %v3205
  %v3830 = vpack.c.b16 %v3210, %v3206
  %v3831 = vpack.c.b16 %v3211, %v3207
  %v3832 = vpack.c.b16 %v3216, %v3212
  %v3833 = vpack.c.b16 %v3217, %v3213
  %v3834 = vpack.c.b16 %v3218, %v3214
  %v3835 = vpack.c.b16 %v3219, %v3215
  %v3836 = vpack.c.b16 %v3224, %v3220
  %v3837 = vpack.c.b16 %v3225, %v3221
  %v3838 = vpack.c.b16 %v3226, %v3222
  %v3839 = vpack.c.b16 %v3227, %v3223
  %v3840 = vpack.c.b16 %v3232, %v3228
  %v3841 = vpack.c.b16 %v3233, %v3229
  %v3842 = vpack.c.b16 %v3234, %v3230
  %v3843 = vpack.c.b16 %v3235, %v3231
  %v3844 = vpack.c.b16 %v3240, %v3236
  %v3845 = vpack.c.b16 %v3241, %v3237
  %v3846 = vpack.c.b16 %v3242, %v3238
  %v3847 = vpack.c.b16 %v3243, %v3239
  %v3848 = vpack.c.b16 %v3248, %v3244
  %v3849 = vpack.c.b16 %v3249, %v3245
  %v3850 = vpack.c.b16 %v3250, %v3246
  %v3851 = vpack.c.b16 %v3251, %v3247
  %v3852 = vpack.c.b16 %v3256, %v3252
  %v3853 = vpack.c.b16 %v3257, %v3253
  %v3854 = vpack.c.b16 %v3258, %v3254
  %v3855 = vpack.c.b16 %v3259, %v3255
  %v3856 = vpack.c.b16 %v3264, %v3260
  %v3857 = vpack.c.b16 %v3265, %v3261
  %v3858 = vpack.c.b16 %v3266, %v3262
  %v3859 = vpack.c.b16 %v3267, %v3263
  %v3860 = vpack.c.b16 %v3272, %v3268
  %v3861 = vpack.c.b16 %v3273, %v3269
  %v3862 = vpack.c.b16 %v3274, %v3270
  %v3863 = vpack.c.b16 %v3275, %v3271
  %v3864 = vpack.c.b16 %v3280, %v3276
  %v3865 = vpack.c.b16 %v3281, %v3277
  %v3866 = vpack.c.b16 %v3282, %v3278
  %v3867 = vpack.c.b16 %v3283, %v3279
  %v3868 = vpack.c.b16 %v3288, %v3284
  %v3869 = vpack.c.b16 %v3289, %v3285
  %v3870 = vpack.c.b16 %v3290, %v3286
  %v3871 = vpack.c.b16 %v3291, %v3287
  %v3872 = vpack.c.b16 %v3296, %v3292
  %v3873 = vpack.c.b16 %v3297, %v3293
  %v3874 = vpack.c.b16 %v3298, %v3294
  %v3875 = vpack.c.b16 %v3299, %v3295
  %v3876 = vpack.c.b16 %v3304, %v3300
  %v3877 = vpack.c.b16 %v3305, %v3301
  %v3878 = vpack.c.b16 %v3306, %v3302
  %v3879 = vpack.c.b16 %v3307, %v3303
  %v3880 = vpack.c.b16 %v3312, %v3308
  %v3881 = vpack.c.b16 %v3313, %v3309
  %v3882 = vpack.c.b16 %v3314, %v3310
  %v3883 = vpack.c.b16 %v3315, %v3311
  %v3884 = vpack.c.b16 %v3320, %v3316
  %v3885 = vpack.c.b16 %v3321, %v3317
  %v3886 = vpack.c.b16 %v3322, %v3318
  %v3887 = vpack.c.b16 %v3323, %v3319
  %v3888 = vpack.c.b16 %v3328, %v3324
  %v3889 = vpack.c.b16 %v3329, %v3325
  %v3890 = vpack.c.b16 %v3330, %v3326
  %v3891 = vpack.c.b16 %v3331, %v3327
  %v3892 = vpack.c.b16 %v3336, %v3332
  %v3893 = vpack.c.b16 %v3337, %v3333
  %v3894 = vpack.c.b16 %v3338, %v3334
  %v3895 = vpack.c.b16 %v3339, %v3335
  %v3896 = vpack.c.b16 %v3344, %v3340
  %v3897 = vpack.c.b16 %v3345, %v3341
  %v3898 = vpack.c.b16 %v3346, %v3342
  %v3899 = vpack.c.b16 %v3347, %v3343
  %v3900 = vpack.c.b16 %v3352, %v3348
  %v3901 = vpack.c.b16 %v3353, %v3349
  %v3902 = vpack.c.b16 %v3354, %v3350
  %v3903 = vpack.c.b16 %v3355, %v3351
  %v3904 = vpack.c.b16 %v3360, %v3356
  %v3905 = vpack.c.b16 %v3361, %v3357
  %v3906 = vpack.c.b16 %v3362, %v3358
  %v3907 = vpack.c.b16 %v3363, %v3359
  %v3908 = vpack.c.b16 %v3368, %v3364
  %v3909 = vpack.c.b16 %v3369, %v3365
  %v3910 = vpack.c.b16 %v3370, %v3366
  %v3911 = vpack.c.b16 %v3371, %v3367
  %v3912 = vpack.c.b16 %v3376, %v3372
  %v3913 = vpack.c.b16 %v3377, %v3373
  %v3914 = vpack.c.b16 %v3378, %v3374
  %v3915 = vpack.c.b16 %v3379, %v3375
  %v3916 = vpack.c.b16 %v3384, %v3380
  %v3917 = vpack.c.b16 %v3385, %v3381
  %v3918 = vpack.c.b16 %v3386, %v3382
  %v3919 = vpack.c.b16 %v3387, %v3383
  %v3920 = vpack.c.b16 %v3392, %v3388
  %v3921 = vpack.c.b16 %v3393, %v3389
  %v3922 = vpack.c.b16 %v3394, %v3390
  %v3923 = vpack.c.b16 %v3395, %v3391
  %v3924 = vpack.c.b16 %v3400, %v3396
  %v3925 = vpack.c.b16 %v3401, %v3397
  %v3926 = vpack.c.b16 %v3402, %v3398
  %v3927 = vpack.c.b16 %v3403, %v3399
  %v3928 = vpack.c.b16 %v3408, %v3404
  %v3929 = vpack.c.b16 %v3409, %v3405
  %v3930 = vpack.c.b16 %v3410, %v3406
  %v3931 = vpack.c.b16 %v3411, %v3407
  %v3932 = vpack.c.b16 %v3416, %v3412
  %v3933 = vpack.c.b16 %v3417, %v3413
  %v3934 = vpack.c.b16 %v3418, %v3414
  %v3935 = vpack.c.b16 %v3419, %v3415
  %v3936 = vpack.c.b16 %v3424, %v3420
  %v3937 = vpack.c.b16 %v3425, %v3421
  %v3938 = vpack.c.b16 %v3426, %v3422
  %v3939 = vpack.c.b16 %v3427, %v3423
  %v3940 = vpack.c.b16 %v3432, %v3428
  %v3941 = vpack.c.b16 %v3433, %v3429
  %v3942 = vpack.c.b16 %v3434, %v3430
  %v3943 = vpack.c.b16 %v3435, %v3431
  %v3944 = vpack.c.b16 %v3440, %v3436
  %v3945 = vpack.c.b16 %v3441, %v3437
  %v3946 = vpack.c.b16 %v3442, %v3438
  %v3947 = vpack.c.b16 %v3443, %v3439
  %v3948 = vpack.c.b16 %v3448, %v3444
  %v3949 = vpack.c.b16 %v3449, %v3445
  %v3950 = vpack.c.b16 %v3450, %v3446
  %v3951 = vpack.c.b16 %v3451, %v3447
  %v3952 = vpack.c.b16 %v3456, %v3452
  %v3953 = vpack.c.b16 %v3457, %v3453
  %v3954 = vpack.c.b16 %v3458, %v3454
  %v3955 = vpack.c.b16 %v3459, %v3455
  %v3956 = vpack.c.b16 %v3464, %v3460
  %v3957 = vpack.c.b16 %v3465, %v3461
  %v3958 = vpack.c.b16 %v3466, %v3462
  %v3959 = vpack.c.b16 %v3467, %v3463
  %v3960 = vpack.c.b16 %v3472, %v3468
  %v3961 = vpack.c.b16 %v3473, %v3469
  %v3962 = vpack.c.b16 %v3474, %v3470
  %v3963 = vpack.c.b16 %v3475, %v3471
  %v3964 = vpack.c.b16 %v3480, %v3476
  %v3965 = vpack.c.b16 %v3481, %v3477
  %v3966 = vpack.c.b16 %v3482, %v3478
  %v3967 = vpack.c.b16 %v3483, %v3479
  %v3968 = vpack.c.b16 %v3488, %v3484
  %v3969 = vpack.c.b16 %v3489, %v3485
  %v3970 = vpack.c.b16 %v3490, %v3486
  %v3971 = vpack.c.b16 %v3491, %v3487
  %v3972 = vpack.c.b16 %v3496, %v3492
  %v3973 = vpack.c.b16 %v3497, %v3493
  %v3974 = vpack.c.b16 %v3498, %v3494
  %v3975 = vpack.c.b16 %v3499, %v3495
  %v3976 = vpack.c.b16 %v3504, %v3500
  %v3977 = vpack.c.b16 %v3505, %v3501
  %v3978 = vpack.c.b16 %v3506, %v3502
  %v3979 = vpack.c.b16 %v3507, %v3503
  %v3980 = vpack.c.b16 %v3512, %v3508
  %v3981 = vpack.c.b16 %v3513, %v3509
  %v3982 = vpack.c.b16 %v3514, %v3510
  %v3983 = vpack.c.b16 %v3515, %v3511
  %v3984 = vpack.c.b16 %v3520, %v3516
  %v3985 = vpack.c.b16 %v3521, %v3517
  %v3986 = vpack.c.b16 %v3522, %v3518
  %v3987 = vpack.c.b16 %v3523, %v3519
  %v3988 = vpack.c.b16 %v3528, %v3524
  %v3989 = vpack.c.b16 %v3529, %v3525
  %v3990 = vpack.c.b16 %v3530, %v3526
  %v3991 = vpack.c.b16 %v3531, %v3527
  %v3992 = vpack.c.b16 %v3536, %v3532
  %v3993 = vpack.c.b16 %v3537, %v3533
  %v3994 = vpack.c.b16 %v3538, %v3534
  %v3995 = vpack.c.b16 %v3539, %v3535
  %v3996 = vpack.c.b16 %v3544, %v3540
  %v3997 = vpack.c.b16 %v3545, %v3541
  %v3998 = vpack.c.b16 %v3546, %v3542
  %v3999 = vpack.c.b16 %v3547, %v3543
  %v4000 = vpack.c.b16 %v3552, %v3548
  %v4001 = vpack.c.b16 %v3553, %v3549
  %v4002 = vpack.c.b16 %v3554, %v3550
  %v4003 = vpack.c.b16 %v3555, %v3551
  %v4004 = vpack.c.b16 %v3560, %v3556
  %v4005 = vpack.c.b16 %v3561, %v3557
  %v4006 = vpack.c.b16 %v3562, %v3558
  %v4007 = vpack.c.b16 %v3563, %v3559
  %v4008 = vpack.c.b16 %v3568, %v3564
  %v4009 = vpack.c.b16 %v3569, %v3565
  %v4010 = vpack.c.b16 %v3570, %v3566
  %v4011 = vpack.c.b16 %v3571, %v3567
  %v4012 = vpack.c.b16 %v3576, %v3572
  %v4013 = vpack.c.b16 %v3577, %v3573
  %v4014 = vpack.c.b16 %v3578, %v3574
  %v4015 = vpack.c.b16 %v3579, %v3575
  %v4016 = vpack.c.b16 %v3584, %v3580
  %v4017 = vpack.c.b16 %v3585, %v3581
  %v4018 = vpack.c.b16 %v3586, %v3582
  %v4019 = vpack.c.b16 %v3587, %v3583
  %v4020 = vpack.c.b16 %v3592, %v3588
  %v4021 = vpack.c.b16 %v3593, %v3589
  %v4022 = vpack.c.b16 %v3594, %v3590
  %v4023 = vpack.c.b16 %v3595, %v3591
  %v4024 = vpack.c.b16 %v3600, %v3596
  %v4025 = vpack.c.b16 %v3601, %v3597
  %v4026 = vpack.c.b16 %v3602, %v3598
  %v4027 = vpack.c.b16 %v3603, %v3599
  %v4028 = vpack.c.b16 %v3608, %v3604
  %v4029 = vpack.c.b16 %v3609, %v3605
  %v4030 = vpack.c.b16 %v3610, %v3606
  %v4031 = vpack.c.b16 %v3611, %v3607
  %v4032 = vpack.c.b16 %v3616, %v3612
  %v4033 = vpack.c.b16 %v3617, %v3613
  %v4034 = vpack.c.b16 %v3618, %v3614
  %v4035 = vpack.c.b16 %v3619, %v3615
  %v4036 = vpack.c.b16 %v3624, %v3620
  %v4037 = vpack.c.b16 %v3625, %v3621
  %v4038 = vpack.c.b16 %v3626, %v3622
  %v4039 = vpack.c.b16 %v3627, %v3623
  %v4040 = vpack.c.b16 %v3632, %v3628
  %v4041 = vpack.c.b16 %v3633, %v3629
  %v4042 = vpack.c.b16 %v3634, %v3630
  %v4043 = vpack.c.b16 %v3635, %v3631
  %v4044 = vpack.c.b16 %v3640, %v3636
  %v4045 = vpack.c.b16 %v3641, %v3637
  %v4046 = vpack.c.b16 %v3642, %v3638
  %v4047 = vpack.c.b16 %v3643, %v3639
  %v4048 = vpack.c.b16 %v3648, %v3644
  %v4049 = vpack.c.b16 %v3649, %v3645
  %v4050 = vpack.c.b16 %v3650, %v3646
  %v4051 = vpack.c.b16 %v3651, %v3647
  %v4052 = vpack.c.b16 %v3656, %v3652
  %v4053 = vpack.c.b16 %v3657, %v3653
  %v4054 = vpack.c.b16 %v3658, %v3654
  %v4055 = vpack.c.b16 %v3659, %v3655
  %v4056 = vpack.c.b16 %v3664, %v3660
  %v4057 = vpack.c.b16 %v3665, %v3661
  %v4058 = vpack.c.b16 %v3666, %v3662
  %v4059 = vpack.c.b16 %v3667, %v3663
  %v4060 = vpack.c.b16 %v3672, %v3668
  %v4061 = vpack.c.b16 %v3673, %v3669
  %v4062 = vpack.c.b16 %v3674, %v3670
  %v4063 = vpack.c.b16 %v3675, %v3671
  %v4064 = vpack.c.b16 %v3680, %v3676
  %v4065 = vpack.c.b16 %v3681, %v3677
  %v4066 = vpack.c.b16 %v3682, %v3678
  %v4067 = vpack.c.b16 %v3683, %v3679
  %4452 = vmatprep.subr.bf16.mxu0 %v3713
  %4453 = vmatpush1.bf16.msra.mxu0 %v3712
  %4454 = vmatprep.subr.bf16.mxu0 %v3709
  %4455 = vmatpush1.bf16.msra.mxu0 %v3708
  %4456 = vmatprep.subr.bf16.mxu0 %v3705
  %4457 = vmatpush1.bf16.msra.mxu0 %v3704
  %4458 = vmatprep.subr.bf16.mxu0 %v3701
  %4459 = vmatpush1.bf16.msra.mxu0 %v3700
  %4460 = vmatprep.subr.bf16.mxu0 %v3697
  %4461 = vmatpush1.bf16.msra.mxu0 %v3696
  %4462 = vmatprep.subr.bf16.mxu0 %v3693
  %4463 = vmatpush1.bf16.msra.mxu0 %v3692
  %4464 = vmatprep.subr.bf16.mxu0 %v3689
  %4465 = vmatpush1.bf16.msra.mxu0 %v3688
  %4466 = vmatprep.subr.bf16.mxu0 %v3685
  %4467 = vmatpush1.bf16.msra.mxu0 %v3684
  %4468 = vmatprep.subr.bf16.mxu0 %v3745
  %4469 = vmatpush2.bf16.msra.mxu0 %v3744
  %4470 = vmatprep.subr.bf16.mxu0 %v3741
  %4471 = vmatpush2.bf16.msra.mxu0 %v3740
  %4472 = vmatprep.subr.bf16.mxu0 %v3737
  %4473 = vmatpush2.bf16.msra.mxu0 %v3736
  %4474 = vmatprep.subr.bf16.mxu0 %v3733
  %4475 = vmatpush2.bf16.msra.mxu0 %v3732
  %4476 = vmatprep.subr.bf16.mxu0 %v3729
  %4477 = vmatpush2.bf16.msra.mxu0 %v3728
  %4478 = vmatprep.subr.bf16.mxu0 %v3725
  %4479 = vmatpush2.bf16.msra.mxu0 %v3724
  %4480 = vmatprep.subr.bf16.mxu0 %v3721
  %4481 = vmatpush2.bf16.msra.mxu0 %v3720
  %4482 = vmatprep.subr.bf16.mxu0 %v3717
  %4483 = vmatpush2.bf16.msra.mxu0 %v3716
  %4484 = vmatprep.mubr.bf16.mxu0 %v2485
  %4485 = vmatmul.mubr.bf16.gmra.mxu0 %v2484
  %v4486 = vpop.f32.mrf.mxu0
  %v4487 = vadd.f32 %v2395, %v4486
  %v4488 = vpop.f32.mrf.mxu0
  %v4489 = vadd.f32 %v2399, %v4488
  %v4490 = vpop.f32.mrf.mxu0
  %v4491 = vadd.f32 %v2395, %v4490
  %v4492 = vpop.f32.mrf.mxu0
  %v4493 = vadd.f32 %v2399, %v4492
  %4494 = vmatprep.mubr.bf16.mxu0 %v2497
  %4495 = vmatmul.mubr.bf16.gmra.mxu0 %v2496
  %v4496 = vpop.f32.mrf.mxu0
  %v4497 = vadd.f32 %v2395, %v4496
  %v4498 = vpop.f32.mrf.mxu0
  %v4499 = vadd.f32 %v2399, %v4498
  %v4500 = vpop.f32.mrf.mxu0
  %v4501 = vadd.f32 %v2395, %v4500
  %v4502 = vpop.f32.mrf.mxu0
  %v4503 = vadd.f32 %v2399, %v4502
  %4504 = vdwg.mxu0
  %4505 = vmatprep.subr.bf16.mxu0 %v3777
  %4506 = vmatpush1.bf16.msra.mxu0 %v3776
  %4507 = vmatprep.subr.bf16.mxu0 %v3773
  %4508 = vmatpush1.bf16.msra.mxu0 %v3772
  %4509 = vmatprep.subr.bf16.mxu0 %v3769
  %4510 = vmatpush1.bf16.msra.mxu0 %v3768
  %4511 = vmatprep.subr.bf16.mxu0 %v3765
  %4512 = vmatpush1.bf16.msra.mxu0 %v3764
  %4513 = vmatprep.subr.bf16.mxu0 %v3761
  %4514 = vmatpush1.bf16.msra.mxu0 %v3760
  %4515 = vmatprep.subr.bf16.mxu0 %v3757
  %4516 = vmatpush1.bf16.msra.mxu0 %v3756
  %4517 = vmatprep.subr.bf16.mxu0 %v3753
  %4518 = vmatpush1.bf16.msra.mxu0 %v3752
  %4519 = vmatprep.subr.bf16.mxu0 %v3749
  %4520 = vmatpush1.bf16.msra.mxu0 %v3748
  %4521 = vmatprep.subr.bf16.mxu0 %v3809
  %4522 = vmatpush2.bf16.msra.mxu0 %v3808
  %4523 = vmatprep.subr.bf16.mxu0 %v3805
  %4524 = vmatpush2.bf16.msra.mxu0 %v3804
  %4525 = vmatprep.subr.bf16.mxu0 %v3801
  %4526 = vmatpush2.bf16.msra.mxu0 %v3800
  %4527 = vmatprep.subr.bf16.mxu0 %v3797
  %4528 = vmatpush2.bf16.msra.mxu0 %v3796
  %4529 = vmatprep.subr.bf16.mxu0 %v3793
  %4530 = vmatpush2.bf16.msra.mxu0 %v3792
  %4531 = vmatprep.subr.bf16.mxu0 %v3789
  %4532 = vmatpush2.bf16.msra.mxu0 %v3788
  %4533 = vmatprep.subr.bf16.mxu0 %v3785
  %4534 = vmatpush2.bf16.msra.mxu0 %v3784
  %4535 = vmatprep.subr.bf16.mxu0 %v3781
  %4536 = vmatpush2.bf16.msra.mxu0 %v3780
  %4537 = vmatprep.mubr.bf16.mxu0 %v2487
  %4538 = vmatmul.mubr.bf16.gmra.mxu0 %v2486
  %v4539 = vpop.f32.mrf.mxu0
  %v4540 = vadd.f32 %v4487, %v4539
  %v4541 = vpop.f32.mrf.mxu0
  %v4542 = vadd.f32 %v4489, %v4541
  %v4543 = vpop.f32.mrf.mxu0
  %v4544 = vadd.f32 %v4491, %v4543
  %v4545 = vpop.f32.mrf.mxu0
  %v4546 = vadd.f32 %v4493, %v4545
  %4547 = vmatprep.mubr.bf16.mxu0 %v2499
  %4548 = vmatmul.mubr.bf16.gmra.mxu0 %v2498
  %v4549 = vpop.f32.mrf.mxu0
  %v4550 = vadd.f32 %v4497, %v4549
  %v4551 = vpop.f32.mrf.mxu0
  %v4552 = vadd.f32 %v4499, %v4551
  %v4553 = vpop.f32.mrf.mxu0
  %v4554 = vadd.f32 %v4501, %v4553
  %v4555 = vpop.f32.mrf.mxu0
  %v4556 = vadd.f32 %v4503, %v4555
  %4557 = vdwg.mxu0
  %4558 = vmatprep.subr.bf16.mxu0 %v3841
  %4559 = vmatpush1.bf16.msra.mxu0 %v3840
  %4560 = vmatprep.subr.bf16.mxu0 %v3837
  %4561 = vmatpush1.bf16.msra.mxu0 %v3836
  %4562 = vmatprep.subr.bf16.mxu0 %v3833
  %4563 = vmatpush1.bf16.msra.mxu0 %v3832
  %4564 = vmatprep.subr.bf16.mxu0 %v3829
  %4565 = vmatpush1.bf16.msra.mxu0 %v3828
  %4566 = vmatprep.subr.bf16.mxu0 %v3825
  %4567 = vmatpush1.bf16.msra.mxu0 %v3824
  %4568 = vmatprep.subr.bf16.mxu0 %v3821
  %4569 = vmatpush1.bf16.msra.mxu0 %v3820
  %4570 = vmatprep.subr.bf16.mxu0 %v3817
  %4571 = vmatpush1.bf16.msra.mxu0 %v3816
  %4572 = vmatprep.subr.bf16.mxu0 %v3813
  %4573 = vmatpush1.bf16.msra.mxu0 %v3812
  %4574 = vmatprep.subr.bf16.mxu0 %v3873
  %4575 = vmatpush2.bf16.msra.mxu0 %v3872
  %4576 = vmatprep.subr.bf16.mxu0 %v3869
  %4577 = vmatpush2.bf16.msra.mxu0 %v3868
  %4578 = vmatprep.subr.bf16.mxu0 %v3865
  %4579 = vmatpush2.bf16.msra.mxu0 %v3864
  %4580 = vmatprep.subr.bf16.mxu0 %v3861
  %4581 = vmatpush2.bf16.msra.mxu0 %v3860
  %4582 = vmatprep.subr.bf16.mxu0 %v3857
  %4583 = vmatpush2.bf16.msra.mxu0 %v3856
  %4584 = vmatprep.subr.bf16.mxu0 %v3853
  %4585 = vmatpush2.bf16.msra.mxu0 %v3852
  %4586 = vmatprep.subr.bf16.mxu0 %v3849
  %4587 = vmatpush2.bf16.msra.mxu0 %v3848
  %4588 = vmatprep.subr.bf16.mxu0 %v3845
  %4589 = vmatpush2.bf16.msra.mxu0 %v3844
  %4590 = vmatprep.mubr.bf16.mxu0 %v2489
  %4591 = vmatmul.mubr.bf16.gmra.mxu0 %v2488
  %v4592 = vpop.f32.mrf.mxu0
  %v4593 = vadd.f32 %v4540, %v4592
  %v4594 = vpop.f32.mrf.mxu0
  %v4595 = vadd.f32 %v4542, %v4594
  %v4596 = vpop.f32.mrf.mxu0
  %v4597 = vadd.f32 %v4544, %v4596
  %v4598 = vpop.f32.mrf.mxu0
  %v4599 = vadd.f32 %v4546, %v4598
  %4600 = vmatprep.mubr.bf16.mxu0 %v2501
  %4601 = vmatmul.mubr.bf16.gmra.mxu0 %v2500
  %v4602 = vpop.f32.mrf.mxu0
  %v4603 = vadd.f32 %v4550, %v4602
  %v4604 = vpop.f32.mrf.mxu0
  %v4605 = vadd.f32 %v4552, %v4604
  %v4606 = vpop.f32.mrf.mxu0
  %v4607 = vadd.f32 %v4554, %v4606
  %v4608 = vpop.f32.mrf.mxu0
  %v4609 = vadd.f32 %v4556, %v4608
  %4610 = vdwg.mxu0
  %4611 = vmatprep.subr.bf16.mxu0 %v3905
  %4612 = vmatpush1.bf16.msra.mxu0 %v3904
  %4613 = vmatprep.subr.bf16.mxu0 %v3901
  %4614 = vmatpush1.bf16.msra.mxu0 %v3900
  %4615 = vmatprep.subr.bf16.mxu0 %v3897
  %4616 = vmatpush1.bf16.msra.mxu0 %v3896
  %4617 = vmatprep.subr.bf16.mxu0 %v3893
  %4618 = vmatpush1.bf16.msra.mxu0 %v3892
  %4619 = vmatprep.subr.bf16.mxu0 %v3889
  %4620 = vmatpush1.bf16.msra.mxu0 %v3888
  %4621 = vmatprep.subr.bf16.mxu0 %v3885
  %4622 = vmatpush1.bf16.msra.mxu0 %v3884
  %4623 = vmatprep.subr.bf16.mxu0 %v3881
  %4624 = vmatpush1.bf16.msra.mxu0 %v3880
  %4625 = vmatprep.subr.bf16.mxu0 %v3877
  %4626 = vmatpush1.bf16.msra.mxu0 %v3876
  %4627 = vmatprep.subr.bf16.mxu0 %v3937
  %4628 = vmatpush2.bf16.msra.mxu0 %v3936
  %4629 = vmatprep.subr.bf16.mxu0 %v3933
  %4630 = vmatpush2.bf16.msra.mxu0 %v3932
  %4631 = vmatprep.subr.bf16.mxu0 %v3929
  %4632 = vmatpush2.bf16.msra.mxu0 %v3928
  %4633 = vmatprep.subr.bf16.mxu0 %v3925
  %4634 = vmatpush2.bf16.msra.mxu0 %v3924
  %4635 = vmatprep.subr.bf16.mxu0 %v3921
  %4636 = vmatpush2.bf16.msra.mxu0 %v3920
  %4637 = vmatprep.subr.bf16.mxu0 %v3917
  %4638 = vmatpush2.bf16.msra.mxu0 %v3916
  %4639 = vmatprep.subr.bf16.mxu0 %v3913
  %4640 = vmatpush2.bf16.msra.mxu0 %v3912
  %4641 = vmatprep.subr.bf16.mxu0 %v3909
  %4642 = vmatpush2.bf16.msra.mxu0 %v3908
  %4643 = vmatprep.mubr.bf16.mxu0 %v2491
  %4644 = vmatmul.mubr.bf16.gmra.mxu0 %v2490
  %v4645 = vpop.f32.mrf.mxu0
  %v4646 = vadd.f32 %v4593, %v4645
  %v4647 = vpop.f32.mrf.mxu0
  %v4648 = vadd.f32 %v4595, %v4647
  %v4649 = vpop.f32.mrf.mxu0
  %v4650 = vadd.f32 %v4597, %v4649
  %v4651 = vpop.f32.mrf.mxu0
  %v4652 = vadd.f32 %v4599, %v4651
  %4653 = vmatprep.mubr.bf16.mxu0 %v2503
  %4654 = vmatmul.mubr.bf16.gmra.mxu0 %v2502
  %v4655 = vpop.f32.mrf.mxu0
  %v4656 = vadd.f32 %v4603, %v4655
  %v4657 = vpop.f32.mrf.mxu0
  %v4658 = vadd.f32 %v4605, %v4657
  %v4659 = vpop.f32.mrf.mxu0
  %v4660 = vadd.f32 %v4607, %v4659
  %v4661 = vpop.f32.mrf.mxu0
  %v4662 = vadd.f32 %v4609, %v4661
  %4663 = vdwg.mxu0
  %4664 = vmatprep.subr.bf16.mxu0 %v3969
  %4665 = vmatpush1.bf16.msra.mxu0 %v3968
  %4666 = vmatprep.subr.bf16.mxu0 %v3965
  %4667 = vmatpush1.bf16.msra.mxu0 %v3964
  %4668 = vmatprep.subr.bf16.mxu0 %v3961
  %4669 = vmatpush1.bf16.msra.mxu0 %v3960
  %4670 = vmatprep.subr.bf16.mxu0 %v3957
  %4671 = vmatpush1.bf16.msra.mxu0 %v3956
  %4672 = vmatprep.subr.bf16.mxu0 %v3953
  %4673 = vmatpush1.bf16.msra.mxu0 %v3952
  %4674 = vmatprep.subr.bf16.mxu0 %v3949
  %4675 = vmatpush1.bf16.msra.mxu0 %v3948
  %4676 = vmatprep.subr.bf16.mxu0 %v3945
  %4677 = vmatpush1.bf16.msra.mxu0 %v3944
  %4678 = vmatprep.subr.bf16.mxu0 %v3941
  %4679 = vmatpush1.bf16.msra.mxu0 %v3940
  %4680 = vmatprep.subr.bf16.mxu0 %v4001
  %4681 = vmatpush2.bf16.msra.mxu0 %v4000
  %4682 = vmatprep.subr.bf16.mxu0 %v3997
  %4683 = vmatpush2.bf16.msra.mxu0 %v3996
  %4684 = vmatprep.subr.bf16.mxu0 %v3993
  %4685 = vmatpush2.bf16.msra.mxu0 %v3992
  %4686 = vmatprep.subr.bf16.mxu0 %v3989
  %4687 = vmatpush2.bf16.msra.mxu0 %v3988
  %4688 = vmatprep.subr.bf16.mxu0 %v3985
  %4689 = vmatpush2.bf16.msra.mxu0 %v3984
  %4690 = vmatprep.subr.bf16.mxu0 %v3981
  %4691 = vmatpush2.bf16.msra.mxu0 %v3980
  %4692 = vmatprep.subr.bf16.mxu0 %v3977
  %4693 = vmatpush2.bf16.msra.mxu0 %v3976
  %4694 = vmatprep.subr.bf16.mxu0 %v3973
  %4695 = vmatpush2.bf16.msra.mxu0 %v3972
  %4696 = vmatprep.mubr.bf16.mxu0 %v2493
  %4697 = vmatmul.mubr.bf16.gmra.mxu0 %v2492
  %v4698 = vpop.f32.mrf.mxu0
  %v4699 = vadd.f32 %v4646, %v4698
  %v4700 = vpop.f32.mrf.mxu0
  %v4701 = vadd.f32 %v4648, %v4700
  %v4702 = vpop.f32.mrf.mxu0
  %v4703 = vadd.f32 %v4650, %v4702
  %v4704 = vpop.f32.mrf.mxu0
  %v4705 = vadd.f32 %v4652, %v4704
  %4706 = vmatprep.mubr.bf16.mxu0 %v2505
  %4707 = vmatmul.mubr.bf16.gmra.mxu0 %v2504
  %v4708 = vpop.f32.mrf.mxu0
  %v4709 = vadd.f32 %v4656, %v4708
  %v4710 = vpop.f32.mrf.mxu0
  %v4711 = vadd.f32 %v4658, %v4710
  %v4712 = vpop.f32.mrf.mxu0
  %v4713 = vadd.f32 %v4660, %v4712
  %v4714 = vpop.f32.mrf.mxu0
  %v4715 = vadd.f32 %v4662, %v4714
  %4716 = vdwg.mxu0
  %4717 = vmatprep.subr.bf16.mxu0 %v4033
  %4718 = vmatpush1.bf16.msra.mxu0 %v4032
  %4719 = vmatprep.subr.bf16.mxu0 %v4029
  %4720 = vmatpush1.bf16.msra.mxu0 %v4028
  %4721 = vmatprep.subr.bf16.mxu0 %v4025
  %4722 = vmatpush1.bf16.msra.mxu0 %v4024
  %4723 = vmatprep.subr.bf16.mxu0 %v4021
  %4724 = vmatpush1.bf16.msra.mxu0 %v4020
  %4725 = vmatprep.subr.bf16.mxu0 %v4017
  %4726 = vmatpush1.bf16.msra.mxu0 %v4016
  %4727 = vmatprep.subr.bf16.mxu0 %v4013
  %4728 = vmatpush1.bf16.msra.mxu0 %v4012
  %4729 = vmatprep.subr.bf16.mxu0 %v4009
  %4730 = vmatpush1.bf16.msra.mxu0 %v4008
  %4731 = vmatprep.subr.bf16.mxu0 %v4005
  %4732 = vmatpush1.bf16.msra.mxu0 %v4004
  %4733 = vmatprep.subr.bf16.mxu0 %v4065
  %4734 = vmatpush2.bf16.msra.mxu0 %v4064
  %4735 = vmatprep.subr.bf16.mxu0 %v4061
  %4736 = vmatpush2.bf16.msra.mxu0 %v4060
  %4737 = vmatprep.subr.bf16.mxu0 %v4057
  %4738 = vmatpush2.bf16.msra.mxu0 %v4056
  %4739 = vmatprep.subr.bf16.mxu0 %v4053
  %4740 = vmatpush2.bf16.msra.mxu0 %v4052
  %4741 = vmatprep.subr.bf16.mxu0 %v4049
  %4742 = vmatpush2.bf16.msra.mxu0 %v4048
  %4743 = vmatprep.subr.bf16.mxu0 %v4045
  %4744 = vmatpush2.bf16.msra.mxu0 %v4044
  %4745 = vmatprep.subr.bf16.mxu0 %v4041
  %4746 = vmatpush2.bf16.msra.mxu0 %v4040
  %4747 = vmatprep.subr.bf16.mxu0 %v4037
  %4748 = vmatpush2.bf16.msra.mxu0 %v4036
  %4749 = vmatprep.mubr.bf16.mxu0 %v2495
  %4750 = vmatmul.mubr.bf16.gmra.mxu0 %v2494
  %v4751 = vpop.f32.mrf.mxu0
  %v4752 = vadd.f32 %v4699, %v4751
  %v4753 = vpop.f32.mrf.mxu0
  %v4754 = vadd.f32 %v4701, %v4753
  %v4755 = vpop.f32.mrf.mxu0
  %v4756 = vadd.f32 %v4703, %v4755
  %v4757 = vpop.f32.mrf.mxu0
  %v4758 = vadd.f32 %v4705, %v4757
  %4759 = vmatprep.mubr.bf16.mxu0 %v2507
  %4760 = vmatmul.mubr.bf16.gmra.mxu0 %v2506
  %v4761 = vpop.f32.mrf.mxu0
  %v4762 = vadd.f32 %v4709, %v4761
  %v4763 = vpop.f32.mrf.mxu0
  %v4764 = vadd.f32 %v4711, %v4763
  %v4765 = vpop.f32.mrf.mxu0
  %v4766 = vadd.f32 %v4713, %v4765
  %v4767 = vpop.f32.mrf.mxu0
  %v4768 = vadd.f32 %v4715, %v4767
  %4769 = vdwg.mxu0
  %4770 = vmatprep.subr.bf16.mxu0 %v3715
  %4771 = vmatpush1.bf16.msra.mxu0 %v3714
  %4772 = vmatprep.subr.bf16.mxu0 %v3711
  %4773 = vmatpush1.bf16.msra.mxu0 %v3710
  %4774 = vmatprep.subr.bf16.mxu0 %v3707
  %4775 = vmatpush1.bf16.msra.mxu0 %v3706
  %4776 = vmatprep.subr.bf16.mxu0 %v3703
  %4777 = vmatpush1.bf16.msra.mxu0 %v3702
  %4778 = vmatprep.subr.bf16.mxu0 %v3699
  %4779 = vmatpush1.bf16.msra.mxu0 %v3698
  %4780 = vmatprep.subr.bf16.mxu0 %v3695
  %4781 = vmatpush1.bf16.msra.mxu0 %v3694
  %4782 = vmatprep.subr.bf16.mxu0 %v3691
  %4783 = vmatpush1.bf16.msra.mxu0 %v3690
  %4784 = vmatprep.subr.bf16.mxu0 %v3687
  %4785 = vmatpush1.bf16.msra.mxu0 %v3686
  %4786 = vmatprep.subr.bf16.mxu0 %v3747
  %4787 = vmatpush2.bf16.msra.mxu0 %v3746
  %4788 = vmatprep.subr.bf16.mxu0 %v3743
  %4789 = vmatpush2.bf16.msra.mxu0 %v3742
  %4790 = vmatprep.subr.bf16.mxu0 %v3739
  %4791 = vmatpush2.bf16.msra.mxu0 %v3738
  %4792 = vmatprep.subr.bf16.mxu0 %v3735
  %4793 = vmatpush2.bf16.msra.mxu0 %v3734
  %4794 = vmatprep.subr.bf16.mxu0 %v3731
  %4795 = vmatpush2.bf16.msra.mxu0 %v3730
  %4796 = vmatprep.subr.bf16.mxu0 %v3727
  %4797 = vmatpush2.bf16.msra.mxu0 %v3726
  %4798 = vmatprep.subr.bf16.mxu0 %v3723
  %4799 = vmatpush2.bf16.msra.mxu0 %v3722
  %4800 = vmatprep.subr.bf16.mxu0 %v3719
  %4801 = vmatpush2.bf16.msra.mxu0 %v3718
  %4802 = vmatprep.mubr.bf16.mxu0 %v2485
  %4803 = vmatmul.mubr.bf16.gmra.mxu0 %v2484
  %v4804 = vpop.f32.mrf.mxu0
  %v4805 = vadd.f32 %v2403, %v4804
  %v4806 = vpop.f32.mrf.mxu0
  %v4807 = vadd.f32 %v2407, %v4806
  %v4808 = vpop.f32.mrf.mxu0
  %v4809 = vadd.f32 %v2403, %v4808
  %v4810 = vpop.f32.mrf.mxu0
  %v4811 = vadd.f32 %v2407, %v4810
  %4812 = vmatprep.mubr.bf16.mxu0 %v2497
  %4813 = vmatmul.mubr.bf16.gmra.mxu0 %v2496
  %v4814 = vpop.f32.mrf.mxu0
  %v4815 = vadd.f32 %v2403, %v4814
  %v4816 = vpop.f32.mrf.mxu0
  %v4817 = vadd.f32 %v2407, %v4816
  %v4818 = vpop.f32.mrf.mxu0
  %v4819 = vadd.f32 %v2403, %v4818
  %v4820 = vpop.f32.mrf.mxu0
  %v4821 = vadd.f32 %v2407, %v4820
  %4822 = vdwg.mxu0
  %4823 = vmatprep.subr.bf16.mxu0 %v3779
  %4824 = vmatpush1.bf16.msra.mxu0 %v3778
  %4825 = vmatprep.subr.bf16.mxu0 %v3775
  %4826 = vmatpush1.bf16.msra.mxu0 %v3774
  %4827 = vmatprep.subr.bf16.mxu0 %v3771
  %4828 = vmatpush1.bf16.msra.mxu0 %v3770
  %4829 = vmatprep.subr.bf16.mxu0 %v3767
  %4830 = vmatpush1.bf16.msra.mxu0 %v3766
  %4831 = vmatprep.subr.bf16.mxu0 %v3763
  %4832 = vmatpush1.bf16.msra.mxu0 %v3762
  %4833 = vmatprep.subr.bf16.mxu0 %v3759
  %4834 = vmatpush1.bf16.msra.mxu0 %v3758
  %4835 = vmatprep.subr.bf16.mxu0 %v3755
  %4836 = vmatpush1.bf16.msra.mxu0 %v3754
  %4837 = vmatprep.subr.bf16.mxu0 %v3751
  %4838 = vmatpush1.bf16.msra.mxu0 %v3750
  %4839 = vmatprep.subr.bf16.mxu0 %v3811
  %4840 = vmatpush2.bf16.msra.mxu0 %v3810
  %4841 = vmatprep.subr.bf16.mxu0 %v3807
  %4842 = vmatpush2.bf16.msra.mxu0 %v3806
  %4843 = vmatprep.subr.bf16.mxu0 %v3803
  %4844 = vmatpush2.bf16.msra.mxu0 %v3802
  %4845 = vmatprep.subr.bf16.mxu0 %v3799
  %4846 = vmatpush2.bf16.msra.mxu0 %v3798
  %4847 = vmatprep.subr.bf16.mxu0 %v3795
  %4848 = vmatpush2.bf16.msra.mxu0 %v3794
  %4849 = vmatprep.subr.bf16.mxu0 %v3791
  %4850 = vmatpush2.bf16.msra.mxu0 %v3790
  %4851 = vmatprep.subr.bf16.mxu0 %v3787
  %4852 = vmatpush2.bf16.msra.mxu0 %v3786
  %4853 = vmatprep.subr.bf16.mxu0 %v3783
  %4854 = vmatpush2.bf16.msra.mxu0 %v3782
  %4855 = vmatprep.mubr.bf16.mxu0 %v2487
  %4856 = vmatmul.mubr.bf16.gmra.mxu0 %v2486
  %v4857 = vpop.f32.mrf.mxu0
  %v4858 = vadd.f32 %v4805, %v4857
  %v4859 = vpop.f32.mrf.mxu0
  %v4860 = vadd.f32 %v4807, %v4859
  %v4861 = vpop.f32.mrf.mxu0
  %v4862 = vadd.f32 %v4809, %v4861
  %v4863 = vpop.f32.mrf.mxu0
  %v4864 = vadd.f32 %v4811, %v4863
  %4865 = vmatprep.mubr.bf16.mxu0 %v2499
  %4866 = vmatmul.mubr.bf16.gmra.mxu0 %v2498
  %v4867 = vpop.f32.mrf.mxu0
  %v4868 = vadd.f32 %v4815, %v4867
  %v4869 = vpop.f32.mrf.mxu0
  %v4870 = vadd.f32 %v4817, %v4869
  %v4871 = vpop.f32.mrf.mxu0
  %v4872 = vadd.f32 %v4819, %v4871
  %v4873 = vpop.f32.mrf.mxu0
  %v4874 = vadd.f32 %v4821, %v4873
  %4875 = vdwg.mxu0
  %4876 = vmatprep.subr.bf16.mxu0 %v3843
  %4877 = vmatpush1.bf16.msra.mxu0 %v3842
  %4878 = vmatprep.subr.bf16.mxu0 %v3839
  %4879 = vmatpush1.bf16.msra.mxu0 %v3838
  %4880 = vmatprep.subr.bf16.mxu0 %v3835
  %4881 = vmatpush1.bf16.msra.mxu0 %v3834
  %4882 = vmatprep.subr.bf16.mxu0 %v3831
  %4883 = vmatpush1.bf16.msra.mxu0 %v3830
  %4884 = vmatprep.subr.bf16.mxu0 %v3827
  %4885 = vmatpush1.bf16.msra.mxu0 %v3826
  %4886 = vmatprep.subr.bf16.mxu0 %v3823
  %4887 = vmatpush1.bf16.msra.mxu0 %v3822
  %4888 = vmatprep.subr.bf16.mxu0 %v3819
  %4889 = vmatpush1.bf16.msra.mxu0 %v3818
  %4890 = vmatprep.subr.bf16.mxu0 %v3815
  %4891 = vmatpush1.bf16.msra.mxu0 %v3814
  %4892 = vmatprep.subr.bf16.mxu0 %v3875
  %4893 = vmatpush2.bf16.msra.mxu0 %v3874
  %4894 = vmatprep.subr.bf16.mxu0 %v3871
  %4895 = vmatpush2.bf16.msra.mxu0 %v3870
  %4896 = vmatprep.subr.bf16.mxu0 %v3867
  %4897 = vmatpush2.bf16.msra.mxu0 %v3866
  %4898 = vmatprep.subr.bf16.mxu0 %v3863
  %4899 = vmatpush2.bf16.msra.mxu0 %v3862
  %4900 = vmatprep.subr.bf16.mxu0 %v3859
  %4901 = vmatpush2.bf16.msra.mxu0 %v3858
  %4902 = vmatprep.subr.bf16.mxu0 %v3855
  %4903 = vmatpush2.bf16.msra.mxu0 %v3854
  %4904 = vmatprep.subr.bf16.mxu0 %v3851
  %4905 = vmatpush2.bf16.msra.mxu0 %v3850
  %4906 = vmatprep.subr.bf16.mxu0 %v3847
  %4907 = vmatpush2.bf16.msra.mxu0 %v3846
  %4908 = vmatprep.mubr.bf16.mxu0 %v2489
  %4909 = vmatmul.mubr.bf16.gmra.mxu0 %v2488
  %v4910 = vpop.f32.mrf.mxu0
  %v4911 = vadd.f32 %v4858, %v4910
  %v4912 = vpop.f32.mrf.mxu0
  %v4913 = vadd.f32 %v4860, %v4912
  %v4914 = vpop.f32.mrf.mxu0
  %v4915 = vadd.f32 %v4862, %v4914
  %v4916 = vpop.f32.mrf.mxu0
  %v4917 = vadd.f32 %v4864, %v4916
  %4918 = vmatprep.mubr.bf16.mxu0 %v2501
  %4919 = vmatmul.mubr.bf16.gmra.mxu0 %v2500
  %v4920 = vpop.f32.mrf.mxu0
  %v4921 = vadd.f32 %v4868, %v4920
  %v4922 = vpop.f32.mrf.mxu0
  %v4923 = vadd.f32 %v4870, %v4922
  %v4924 = vpop.f32.mrf.mxu0
  %v4925 = vadd.f32 %v4872, %v4924
  %v4926 = vpop.f32.mrf.mxu0
  %v4927 = vadd.f32 %v4874, %v4926
  %4928 = vdwg.mxu0
  %4929 = vmatprep.subr.bf16.mxu0 %v3907
  %4930 = vmatpush1.bf16.msra.mxu0 %v3906
  %4931 = vmatprep.subr.bf16.mxu0 %v3903
  %4932 = vmatpush1.bf16.msra.mxu0 %v3902
  %4933 = vmatprep.subr.bf16.mxu0 %v3899
  %4934 = vmatpush1.bf16.msra.mxu0 %v3898
  %4935 = vmatprep.subr.bf16.mxu0 %v3895
  %4936 = vmatpush1.bf16.msra.mxu0 %v3894
  %4937 = vmatprep.subr.bf16.mxu0 %v3891
  %4938 = vmatpush1.bf16.msra.mxu0 %v3890
  %4939 = vmatprep.subr.bf16.mxu0 %v3887
  %4940 = vmatpush1.bf16.msra.mxu0 %v3886
  %4941 = vmatprep.subr.bf16.mxu0 %v3883
  %4942 = vmatpush1.bf16.msra.mxu0 %v3882
  %4943 = vmatprep.subr.bf16.mxu0 %v3879
  %4944 = vmatpush1.bf16.msra.mxu0 %v3878
  %4945 = vmatprep.subr.bf16.mxu0 %v3939
  %4946 = vmatpush2.bf16.msra.mxu0 %v3938
  %4947 = vmatprep.subr.bf16.mxu0 %v3935
  %4948 = vmatpush2.bf16.msra.mxu0 %v3934
  %4949 = vmatprep.subr.bf16.mxu0 %v3931
  %4950 = vmatpush2.bf16.msra.mxu0 %v3930
  %4951 = vmatprep.subr.bf16.mxu0 %v3927
  %4952 = vmatpush2.bf16.msra.mxu0 %v3926
  %4953 = vmatprep.subr.bf16.mxu0 %v3923
  %4954 = vmatpush2.bf16.msra.mxu0 %v3922
  %4955 = vmatprep.subr.bf16.mxu0 %v3919
  %4956 = vmatpush2.bf16.msra.mxu0 %v3918
  %4957 = vmatprep.subr.bf16.mxu0 %v3915
  %4958 = vmatpush2.bf16.msra.mxu0 %v3914
  %4959 = vmatprep.subr.bf16.mxu0 %v3911
  %4960 = vmatpush2.bf16.msra.mxu0 %v3910
  %4961 = vmatprep.mubr.bf16.mxu0 %v2491
  %4962 = vmatmul.mubr.bf16.gmra.mxu0 %v2490
  %v4963 = vpop.f32.mrf.mxu0
  %v4964 = vadd.f32 %v4911, %v4963
  %v4965 = vpop.f32.mrf.mxu0
  %v4966 = vadd.f32 %v4913, %v4965
  %v4967 = vpop.f32.mrf.mxu0
  %v4968 = vadd.f32 %v4915, %v4967
  %v4969 = vpop.f32.mrf.mxu0
  %v4970 = vadd.f32 %v4917, %v4969
  %4971 = vmatprep.mubr.bf16.mxu0 %v2503
  %4972 = vmatmul.mubr.bf16.gmra.mxu0 %v2502
  %v4973 = vpop.f32.mrf.mxu0
  %v4974 = vadd.f32 %v4921, %v4973
  %v4975 = vpop.f32.mrf.mxu0
  %v4976 = vadd.f32 %v4923, %v4975
  %v4977 = vpop.f32.mrf.mxu0
  %v4978 = vadd.f32 %v4925, %v4977
  %v4979 = vpop.f32.mrf.mxu0
  %v4980 = vadd.f32 %v4927, %v4979
  %4981 = vdwg.mxu0
  %4982 = vmatprep.subr.bf16.mxu0 %v3971
  %4983 = vmatpush1.bf16.msra.mxu0 %v3970
  %4984 = vmatprep.subr.bf16.mxu0 %v3967
  %4985 = vmatpush1.bf16.msra.mxu0 %v3966
  %4986 = vmatprep.subr.bf16.mxu0 %v3963
  %4987 = vmatpush1.bf16.msra.mxu0 %v3962
  %4988 = vmatprep.subr.bf16.mxu0 %v3959
  %4989 = vmatpush1.bf16.msra.mxu0 %v3958
  %4990 = vmatprep.subr.bf16.mxu0 %v3955
  %4991 = vmatpush1.bf16.msra.mxu0 %v3954
  %4992 = vmatprep.subr.bf16.mxu0 %v3951
  %4993 = vmatpush1.bf16.msra.mxu0 %v3950
  %4994 = vmatprep.subr.bf16.mxu0 %v3947
  %4995 = vmatpush1.bf16.msra.mxu0 %v3946
  %4996 = vmatprep.subr.bf16.mxu0 %v3943
  %4997 = vmatpush1.bf16.msra.mxu0 %v3942
  %4998 = vmatprep.subr.bf16.mxu0 %v4003
  %4999 = vmatpush2.bf16.msra.mxu0 %v4002
  %5000 = vmatprep.subr.bf16.mxu0 %v3999
  %5001 = vmatpush2.bf16.msra.mxu0 %v3998
  %5002 = vmatprep.subr.bf16.mxu0 %v3995
  %5003 = vmatpush2.bf16.msra.mxu0 %v3994
  %5004 = vmatprep.subr.bf16.mxu0 %v3991
  %5005 = vmatpush2.bf16.msra.mxu0 %v3990
  %5006 = vmatprep.subr.bf16.mxu0 %v3987
  %5007 = vmatpush2.bf16.msra.mxu0 %v3986
  %5008 = vmatprep.subr.bf16.mxu0 %v3983
  %5009 = vmatpush2.bf16.msra.mxu0 %v3982
  %5010 = vmatprep.subr.bf16.mxu0 %v3979
  %5011 = vmatpush2.bf16.msra.mxu0 %v3978
  %5012 = vmatprep.subr.bf16.mxu0 %v3975
  %5013 = vmatpush2.bf16.msra.mxu0 %v3974
  %5014 = vmatprep.mubr.bf16.mxu0 %v2493
  %5015 = vmatmul.mubr.bf16.gmra.mxu0 %v2492
  %v5016 = vpop.f32.mrf.mxu0
  %v5017 = vadd.f32 %v4964, %v5016
  %v5018 = vpop.f32.mrf.mxu0
  %v5019 = vadd.f32 %v4966, %v5018
  %v5020 = vpop.f32.mrf.mxu0
  %v5021 = vadd.f32 %v4968, %v5020
  %v5022 = vpop.f32.mrf.mxu0
  %v5023 = vadd.f32 %v4970, %v5022
  %5024 = vmatprep.mubr.bf16.mxu0 %v2505
  %5025 = vmatmul.mubr.bf16.gmra.mxu0 %v2504
  %v5026 = vpop.f32.mrf.mxu0
  %v5027 = vadd.f32 %v4974, %v5026
  %v5028 = vpop.f32.mrf.mxu0
  %v5029 = vadd.f32 %v4976, %v5028
  %v5030 = vpop.f32.mrf.mxu0
  %v5031 = vadd.f32 %v4978, %v5030
  %v5032 = vpop.f32.mrf.mxu0
  %v5033 = vadd.f32 %v4980, %v5032
  %5034 = vdwg.mxu0
  %5035 = vmatprep.subr.bf16.mxu0 %v4035
  %5036 = vmatpush1.bf16.msra.mxu0 %v4034
  %5037 = vmatprep.subr.bf16.mxu0 %v4031
  %5038 = vmatpush1.bf16.msra.mxu0 %v4030
  %5039 = vmatprep.subr.bf16.mxu0 %v4027
  %5040 = vmatpush1.bf16.msra.mxu0 %v4026
  %5041 = vmatprep.subr.bf16.mxu0 %v4023
  %5042 = vmatpush1.bf16.msra.mxu0 %v4022
  %5043 = vmatprep.subr.bf16.mxu0 %v4019
  %5044 = vmatpush1.bf16.msra.mxu0 %v4018
  %5045 = vmatprep.subr.bf16.mxu0 %v4015
  %5046 = vmatpush1.bf16.msra.mxu0 %v4014
  %5047 = vmatprep.subr.bf16.mxu0 %v4011
  %5048 = vmatpush1.bf16.msra.mxu0 %v4010
  %5049 = vmatprep.subr.bf16.mxu0 %v4007
  %5050 = vmatpush1.bf16.msra.mxu0 %v4006
  %5051 = vmatprep.subr.bf16.mxu0 %v4067
  %5052 = vmatpush2.bf16.msra.mxu0 %v4066
  %5053 = vmatprep.subr.bf16.mxu0 %v4063
  %5054 = vmatpush2.bf16.msra.mxu0 %v4062
  %5055 = vmatprep.subr.bf16.mxu0 %v4059
  %5056 = vmatpush2.bf16.msra.mxu0 %v4058
  %5057 = vmatprep.subr.bf16.mxu0 %v4055
  %5058 = vmatpush2.bf16.msra.mxu0 %v4054
  %5059 = vmatprep.subr.bf16.mxu0 %v4051
  %5060 = vmatpush2.bf16.msra.mxu0 %v4050
  %5061 = vmatprep.subr.bf16.mxu0 %v4047
  %5062 = vmatpush2.bf16.msra.mxu0 %v4046
  %5063 = vmatprep.subr.bf16.mxu0 %v4043
  %5064 = vmatpush2.bf16.msra.mxu0 %v4042
  %5065 = vmatprep.subr.bf16.mxu0 %v4039
  %5066 = vmatpush2.bf16.msra.mxu0 %v4038
  %5067 = vmatprep.mubr.bf16.mxu0 %v2495
  %5068 = vmatmul.mubr.bf16.gmra.mxu0 %v2494
  %v5069 = vpop.f32.mrf.mxu0
  %v5070 = vadd.f32 %v5017, %v5069
  %v5071 = vpop.f32.mrf.mxu0
  %v5072 = vadd.f32 %v5019, %v5071
  %v5073 = vpop.f32.mrf.mxu0
  %v5074 = vadd.f32 %v5021, %v5073
  %v5075 = vpop.f32.mrf.mxu0
  %v5076 = vadd.f32 %v5023, %v5075
  %5077 = vmatprep.mubr.bf16.mxu0 %v2507
  %5078 = vmatmul.mubr.bf16.gmra.mxu0 %v2506
  %v5079 = vpop.f32.mrf.mxu0
  %v5080 = vadd.f32 %v5027, %v5079
  %v5081 = vpop.f32.mrf.mxu0
  %v5082 = vadd.f32 %v5029, %v5081
  %v5083 = vpop.f32.mrf.mxu0
  %v5084 = vadd.f32 %v5031, %v5083
  %v5085 = vpop.f32.mrf.mxu0
  %v5086 = vadd.f32 %v5033, %v5085
  %5087 = vdwg.mxu0
  %v5088 = vmax.f32 %v4752, 0.0
  %v5089 = vmax.f32 %v4754, 0.0
  %v5090 = vmax.f32 %v5070, 0.0
  %v5091 = vmax.f32 %v5072, 0.0
  %v5092 = vmax.f32 %v4756, 0.0
  %v5093 = vmax.f32 %v4758, 0.0
  %v5094 = vmax.f32 %v5074, 0.0
  %v5095 = vmax.f32 %v5076, 0.0
  %v5096 = vmax.f32 %v4762, 0.0
  %v5097 = vmax.f32 %v4764, 0.0
  %v5098 = vmax.f32 %v5080, 0.0
  %v5099 = vmax.f32 %v5082, 0.0
  %v5100 = vmax.f32 %v4766, 0.0
  %v5101 = vmax.f32 %v4768, 0.0
  %v5102 = vmax.f32 %v5084, 0.0
  %v5103 = vmax.f32 %v5086, 0.0
  %5104 = vst [vmem:[%s5] sm:$0xff] %v5088
  %5105 = vst [vmem:[%s5 + $0x8] sm:$0xff] %v5089
  %5106 = vst [vmem:[%s5 + $0x10] sm:$0xff] %v5090
  %5107 = vst [vmem:[%s5 + $0x18] sm:$0xff] %v5091
  %5108 = vst [vmem:[%s5 + $0x20] sm:$0xff] %v5092
  %5109 = vst [vmem:[%s5 + $0x28] sm:$0xff] %v5093
  %5110 = vst [vmem:[%s5 + $0x30] sm:$0xff] %v5094
  %5111 = vst [vmem:[%s5 + $0x38] sm:$0xff] %v5095
  %s5112 = scalar_lea.vmem %s5, 64
  %5113 = vst [vmem:[%s5112] sm:$0xff] %v5096
  %5114 = vst [vmem:[%s5112 + $0x8] sm:$0xff] %v5097
  %5115 = vst [vmem:[%s5112 + $0x10] sm:$0xff] %v5098
  %5116 = vst [vmem:[%s5112 + $0x18] sm:$0xff] %v5099
  %5117 = vst [vmem:[%s5112 + $0x20] sm:$0xff] %v5100
  %5118 = vst [vmem:[%s5112 + $0x28] sm:$0xff] %v5101
  %5119 = vst [vmem:[%s5112 + $0x30] sm:$0xff] %v5102
  %5120 = vst [vmem:[%s5112 + $0x38] sm:$0xff] %v5103
  // Predicated region
  $region22: #{down3_forward.1} parent=0 // pred_check
    _
  $region23: #{down3_forward.1} parent=0 // pred_check_branch
    %5122 = sbr.rel (0) target = $region25
  $region24: #{down3_forward.1} parent=0 // pred_region
    _
  $region25: #{down3_forward.1} parent=0 // pred_fallthru
    _
  // Predicated region
  $region26: #{down3_forward.1} parent=0 // pred_check
    _
  $region27: #{down3_forward.1} parent=0 // pred_check_branch
    %5124 = sbr.rel (0) target = $region29
  $region28: #{down3_forward.1} parent=0 // pred_region
    _
  $region29: #{down3_forward.1} parent=0 // pred_fallthru
    _

</llo_original>
